<compile_context>
chip_gen: v7x
topology: tpu7x:2x2x1
jax: 0.10.0
libtpu: 0.0.40
codegen_flags: <defaults>
</compile_context>

<pallas_src>
import functools

import jax
import jax.numpy as jnp
from jax.experimental import pallas as pl
from jax.experimental.pallas import tpu as pltpu

_LANE = 128      # pad all channel dims to multiples of this (lane-dense)
_TM = 256        # row tile of A / output rows
_TK = 512        # reduction tile over A's columns
_N_ALIGN = 512   # pad node count to a multiple of this (lcm(_TM, _TK))


def _round_up(x, m):
    return (x + m - 1) // m * m


# ----------------------------------------------------------------------------
# Pallas kernel: one fused SAGEConv layer, tiled over (row-tiles, K-tiles of A)
#   out[i-tile] = (sum_k A[i,k-tile] @ x[k-tile]) @ W_l + x[i-tile] @ W_r + b
# ----------------------------------------------------------------------------
def sage_layer_kernel(a_ref, xk_ref, xi_ref, wl_ref, wr_ref, b_ref, o_ref,
                      acc_ref, *, apply_relu):
    k = pl.program_id(1)

    @pl.when(k == 0)
    def _init():
        acc_ref[...] = jnp.zeros_like(acc_ref)

    # Streamed SpMM: acc += A_tile @ x_ktile   (bf16 operands, f32 accumulation)
    acc_ref[...] += jnp.dot(a_ref[...], xk_ref[...],
                            preferred_element_type=jnp.float32)

    @pl.when(k == pl.num_programs(1) - 1)
    def _finalize():
        agg = acc_ref[...].astype(wl_ref.dtype)
        out = jnp.dot(agg, wl_ref[...], preferred_element_type=jnp.float32)
        out = out + jnp.dot(xi_ref[...], wr_ref[...],
                            preferred_element_type=jnp.float32)
        out = out + b_ref[...]          # (1, C_out) broadcasts over rows
        if apply_relu:
            out = jnp.maximum(out, 0.0)
        o_ref[...] = out.astype(o_ref.dtype)


def sage_conv(a_pad, x_pad, w_l, w_r, b, *, apply_relu, out_dtype):
    """One SAGEConv layer via a (row, K) gridded pallas_call on padded operands."""
    n_pad = a_pad.shape[0]
    c_in = x_pad.shape[1]
    c_out = w_l.shape[1]
    tm = min(_TM, n_pad)
    tk = min(_TK, n_pad)
    assert n_pad % tm == 0 and n_pad % tk == 0
    grid = (n_pad // tm, n_pad // tk)

    kernel = functools.partial(sage_layer_kernel, apply_relu=apply_relu)
    return pl.pallas_call(
        kernel,
        out_shape=jax.ShapeDtypeStruct((n_pad, c_out), out_dtype),
        grid_spec=pltpu.PrefetchScalarGridSpec(
            num_scalar_prefetch=0,
            grid=grid,
            in_specs=[
                pl.BlockSpec((tm, tk), lambda i, k: (i, k)),       # A tile (streamed)
                pl.BlockSpec((tk, c_in), lambda i, k: (k, 0)),     # x, neighbor side
                pl.BlockSpec((tm, c_in), lambda i, k: (i, 0)),     # x, self side
                pl.BlockSpec((c_in, c_out), lambda i, k: (0, 0)),  # W_l (resident)
                pl.BlockSpec((c_in, c_out), lambda i, k: (0, 0)),  # W_r (resident)
                pl.BlockSpec((1, c_out), lambda i, k: (0, 0)),     # bias (resident)
            ],
            out_specs=pl.BlockSpec((tm, c_out), lambda i, k: (i, 0)),
            scratch_shapes=[pltpu.VMEM((tm, c_in), jnp.float32)],
        ),
        compiler_params=pltpu.CompilerParams(
            dimension_semantics=("parallel", "arbitrary"),
            vmem_limit_bytes=48 * 1024 * 1024,
        ),
    )(a_pad, x_pad, x_pad, w_l, w_r, b)


# ----------------------------------------------------------------------------
# Padding helpers + full SAGE model forward (ReLU + inference-mode dropout
# between layers, no activation after the last layer).
# ----------------------------------------------------------------------------
def pad_graph_inputs(x, a_mean):
    n, c = x.shape
    n_pad = _round_up(n, _N_ALIGN)
    c_pad = _round_up(c, _LANE)
    a_pad = jnp.zeros((n_pad, n_pad), jnp.bfloat16).at[:n, :n].set(
        a_mean.astype(jnp.bfloat16))
    x_pad = jnp.zeros((n_pad, c_pad), jnp.bfloat16).at[:n, :c].set(
        x.astype(jnp.bfloat16))
    return x_pad, a_pad


def sage_forward(x, a_mean, params, *, out_channels):
    n = x.shape[0]
    x_pad, a_pad = pad_graph_inputs(x, a_mean)
    num_layers = len(params)
    h = x_pad
    for i, (w_l, w_r, b) in enumerate(params):
        is_last = i == num_layers - 1
        h = sage_conv(a_pad, h, w_l, w_r, b,
                      apply_relu=not is_last,
                      out_dtype=jnp.float32 if is_last else jnp.bfloat16)
        # F.dropout(p, training=self.training): identity at inference time.
    return h[:n, :out_channels]


def init_sage_params(key, in_channels, hidden_channels, out_channels, num_layers):
    """Glorot-style init. Weights stored as [C_in_pad, C_out_pad] (transposed
    vs torch's [out, in]) and zero-padded to 128-lane multiples; bf16 weights,
    f32 bias (lin_l has the bias, lin_r does not, as in PyG's SAGEConv)."""
    dims = [in_channels] + [hidden_channels] * (num_layers - 1) + [out_channels]
    params = []
    for i in range(num_layers):
        c_in, c_out = dims[i], dims[i + 1]
        c_in_p, c_out_p = _round_up(c_in, _LANE), _round_up(c_out, _LANE)
        key, k1, k2, k3 = jax.random.split(key, 4)
        scale = (2.0 / (c_in + c_out)) ** 0.5
        w_l = jnp.zeros((c_in_p, c_out_p), jnp.float32).at[:c_in, :c_out].set(
            scale * jax.random.normal(k1, (c_in, c_out), dtype=jnp.float32))
        w_r = jnp.zeros((c_in_p, c_out_p), jnp.float32).at[:c_in, :c_out].set(
            scale * jax.random.normal(k2, (c_in, c_out), dtype=jnp.float32))
        b = jnp.zeros((1, c_out_p), jnp.float32).at[:, :c_out].set(
            0.1 * jax.random.normal(k3, (1, c_out), dtype=jnp.float32))
        params.append((w_l.astype(jnp.bfloat16), w_r.astype(jnp.bfloat16), b))
    return params


if __name__ == "__main__":
    key = jax.random.PRNGKey(0)

    # Small synthetic graph / model sizes (consistent with the OGB-proteins SAGE).
    N = 700                # number of nodes (padded to 1024 -> grid (4, 2))
    IN_CHANNELS = 16
    HIDDEN_CHANNELS = 64
    OUT_CHANNELS = 32
    NUM_LAYERS = 3
    DROPOUT = 0.5          # unused at inference

    key, k_x, k_a = jax.random.split(key, 3)
    x = jax.random.normal(k_x, (N, IN_CHANNELS), dtype=jnp.float32)

    # Random sparse-ish adjacency (dense representation), row-mean normalized:
    # A_mean[i, j] = A[i, j] / deg(i); zero-degree rows -> all zeros (mean aggr).
    adj = (jax.random.uniform(k_a, (N, N)) < 0.05).astype(jnp.float32)
    deg = jnp.sum(adj, axis=1, keepdims=True)
    a_mean = adj / jnp.maximum(deg, 1.0)

    params = init_sage_params(key, IN_CHANNELS, HIDDEN_CHANNELS, OUT_CHANNELS,
                              NUM_LAYERS)

    fwd = jax.jit(functools.partial(sage_forward, out_channels=OUT_CHANNELS))
    out = jax.block_until_ready(fwd(x, a_mean, params))

    # Pure-JAX reference on the same padded bf16 operands (f32 accumulation).
    x_pad, a_pad = pad_graph_inputs(x, a_mean)
    ref = x_pad
    for i, (w_l, w_r, b) in enumerate(params):
        agg = jnp.dot(a_pad, ref, preferred_element_type=jnp.float32)
        o = jnp.dot(agg.astype(jnp.bfloat16), w_l,
                    preferred_element_type=jnp.float32)
        o = o + jnp.dot(ref, w_r, preferred_element_type=jnp.float32)
        o = o + b
        if i != NUM_LAYERS - 1:
            ref = jnp.maximum(o, 0.0).astype(jnp.bfloat16)
        else:
            ref = o
    ref = ref[:N, :OUT_CHANNELS]

    assert out.shape == (N, OUT_CHANNELS)
    assert out.dtype == jnp.float32
    max_err = float(jnp.max(jnp.abs(out - ref)))
    assert jnp.allclose(out, ref, atol=2e-2, rtol=2e-2), max_err

    print("KERNEL_OK")
</pallas_src>

<mosaic_0001>
module attributes {stable_mosaic.version = 11 : i64} {
  func.func @sage_layer_kernel(%arg0: i32, %arg1: i32, %arg2: memref<256x512xbf16, #tpu.memory_space<vmem>>, %arg3: memref<512x128xbf16, #tpu.memory_space<vmem>>, %arg4: memref<256x128xbf16, #tpu.memory_space<vmem>>, %arg5: memref<128x128xbf16, #tpu.memory_space<vmem>>, %arg6: memref<128x128xbf16, #tpu.memory_space<vmem>>, %arg7: memref<1x128xf32, #tpu.memory_space<vmem>>, %arg8: memref<256x128xbf16, #tpu.memory_space<vmem>>, %arg9: memref<256x128xf32, #tpu.memory_space<vmem>>) attributes {dimension_semantics = [#tpu.dimension_semantics<parallel>, #tpu.dimension_semantics<arbitrary>], iteration_bounds = array<i64: 4, 2>, scalar_prefetch = 0 : i64, scratch_operands = 1 : i64, tpu.core_type = #tpu.core_type<tc>, window_params = [{transform_indices = @transform_0, window_bounds = array<i64: 256, 512>}, {transform_indices = @transform_1, window_bounds = array<i64: 512, 128>}, {transform_indices = @transform_2, window_bounds = array<i64: 256, 128>}, {pipeline_mode = #tpu.pipeline_mode<synchronous>, transform_indices = @transform_3, window_bounds = array<i64: 128, 128>}, {pipeline_mode = #tpu.pipeline_mode<synchronous>, transform_indices = @transform_4, window_bounds = array<i64: 128, 128>}, {pipeline_mode = #tpu.pipeline_mode<synchronous>, transform_indices = @transform_5, window_bounds = array<i64: 1, 128>}, {transform_indices = @transform_6, window_bounds = array<i64: 256, 128>}]} {
    %c0_i32 = arith.constant 0 : i32
    %0 = arith.cmpi eq, %arg1, %c0_i32 : i32
    %1 = arith.extui %0 : i1 to i32
    %c0_i32_0 = arith.constant 0 : i32
    %2 = arith.cmpi ne, %1, %c0_i32_0 : i32
    scf.if %2 {
      %cst_9 = arith.constant 0.000000e+00 : f32
      %12 = vector.broadcast %cst_9 : f32 to vector<256x128xf32>
      %c0_10 = arith.constant 0 : index
      %c0_11 = arith.constant 0 : index
      %13 = vector.load %arg9[%c0_10, %c0_11] : memref<256x128xf32, #tpu.memory_space<vmem>>, vector<256x128xf32>
      tpu.vector_store %arg9[%c0_10, %c0_11], %12 {strides = array<i32>} : memref<256x128xf32, #tpu.memory_space<vmem>>, vector<256x128xf32>,
    } else {
    }
    %c0 = arith.constant 0 : index
    %c0_1 = arith.constant 0 : index
    %3 = vector.load %arg9[%c0, %c0_1] : memref<256x128xf32, #tpu.memory_space<vmem>>, vector<256x128xf32>
    %c0_2 = arith.constant 0 : index
    %c0_3 = arith.constant 0 : index
    %4 = vector.load %arg2[%c0_2, %c0_3] : memref<256x512xbf16, #tpu.memory_space<vmem>>, vector<256x512xbf16>
    %c0_4 = arith.constant 0 : index
    %c0_5 = arith.constant 0 : index
    %5 = vector.load %arg3[%c0_4, %c0_5] : memref<512x128xbf16, #tpu.memory_space<vmem>>, vector<512x128xbf16>
    %cst = arith.constant dense<0.000000e+00> : vector<256x128xf32>
    %6 = tpu.matmul %4, %5, %cst {dimension_numbers = #tpu.dot_dimension_numbers<[1], [0], [0], [1], [0, 0, 1, 1], [], []>} : vector<256x512xbf16>, vector<512x128xbf16>, vector<256x128xf32> -> vector<256x128xf32>
    %7 = arith.addf %3, %6 : vector<256x128xf32>
    %c0_6 = arith.constant 0 : index
    %c0_7 = arith.constant 0 : index
    %8 = vector.load %arg9[%c0_6, %c0_7] : memref<256x128xf32, #tpu.memory_space<vmem>>, vector<256x128xf32>
    tpu.vector_store %arg9[%c0_6, %c0_7], %7 {strides = array<i32>} : memref<256x128xf32, #tpu.memory_space<vmem>>, vector<256x128xf32>,
    %c1_i32 = arith.constant 1 : i32
    %9 = arith.cmpi eq, %arg1, %c1_i32 : i32
    %10 = arith.extui %9 : i1 to i32
    %c0_i32_8 = arith.constant 0 : i32
    %11 = arith.cmpi ne, %10, %c0_i32_8 : i32
    scf.if %11 {
      %c0_9 = arith.constant 0 : index
      %c0_10 = arith.constant 0 : index
      %12 = vector.load %arg9[%c0_9, %c0_10] : memref<256x128xf32, #tpu.memory_space<vmem>>, vector<256x128xf32>
      %13 = arith.truncf %12 : vector<256x128xf32> to vector<256x128xbf16>
      %c0_11 = arith.constant 0 : index
      %c0_12 = arith.constant 0 : index
      %14 = vector.load %arg5[%c0_11, %c0_12] : memref<128x128xbf16, #tpu.memory_space<vmem>>, vector<128x128xbf16>
      %cst_13 = arith.constant dense<0.000000e+00> : vector<256x128xf32>
      %15 = tpu.matmul %13, %14, %cst_13 {dimension_numbers = #tpu.dot_dimension_numbers<[1], [0], [0], [1], [0, 0, 1, 1], [], []>} : vector<256x128xbf16>, vector<128x128xbf16>, vector<256x128xf32> -> vector<256x128xf32>
      %c0_14 = arith.constant 0 : index
      %c0_15 = arith.constant 0 : index
      %16 = vector.load %arg4[%c0_14, %c0_15] : memref<256x128xbf16, #tpu.memory_space<vmem>>, vector<256x128xbf16>
      %c0_16 = arith.constant 0 : index
      %c0_17 = arith.constant 0 : index
      %17 = vector.load %arg6[%c0_16, %c0_17] : memref<128x128xbf16, #tpu.memory_space<vmem>>, vector<128x128xbf16>
      %cst_18 = arith.constant dense<0.000000e+00> : vector<256x128xf32>
      %18 = tpu.matmul %16, %17, %cst_18 {dimension_numbers = #tpu.dot_dimension_numbers<[1], [0], [0], [1], [0, 0, 1, 1], [], []>} : vector<256x128xbf16>, vector<128x128xbf16>, vector<256x128xf32> -> vector<256x128xf32>
      %19 = arith.addf %15, %18 : vector<256x128xf32>
      %c0_19 = arith.constant 0 : index
      %c0_20 = arith.constant 0 : index
      %20 = vector.load %arg7[%c0_19, %c0_20] : memref<1x128xf32, #tpu.memory_space<vmem>>, vector<1x128xf32>
      %21 = vector.broadcast %20 : vector<1x128xf32> to vector<256x128xf32>
      %22 = arith.addf %19, %21 : vector<256x128xf32>
      %cst_21 = arith.constant 0.000000e+00 : f32
      %23 = vector.broadcast %cst_21 : f32 to vector<256x128xf32>
      %24 = arith.maximumf %22, %23 : vector<256x128xf32>
      %25 = arith.truncf %24 : vector<256x128xf32> to vector<256x128xbf16>
      %c0_22 = arith.constant 0 : index
      %c0_23 = arith.constant 0 : index
      %26 = vector.load %arg8[%c0_22, %c0_23] : memref<256x128xbf16, #tpu.memory_space<vmem>>, vector<256x128xbf16>
      tpu.vector_store %arg8[%c0_22, %c0_23], %25 {strides = array<i32>} : memref<256x128xbf16, #tpu.memory_space<vmem>>, vector<256x128xbf16>,
    } else {
    }
    return
  }
  func.func @transform_0(%arg0: i32, %arg1: i32) -> (i32, i32) {
    %c0_i32 = arith.constant 0 : i32
    return %arg0, %arg1 : i32, i32
  }
  func.func @transform_1(%arg0: i32, %arg1: i32) -> (i32, i32) {
    %c0_i32 = arith.constant 0 : i32
    %c0_i32_0 = arith.constant 0 : i32
    return %arg1, %c0_i32 : i32, i32
  }
  func.func @transform_2(%arg0: i32, %arg1: i32) -> (i32, i32) {
    %c0_i32 = arith.constant 0 : i32
    %c0_i32_0 = arith.constant 0 : i32
    return %arg0, %c0_i32 : i32, i32
  }
  func.func @transform_3(%arg0: i32, %arg1: i32) -> (i32, i32) {
    %c0_i32 = arith.constant 0 : i32
    %c0_i32_0 = arith.constant 0 : i32
    %c0_i32_1 = arith.constant 0 : i32
    return %c0_i32, %c0_i32_0 : i32, i32
  }
  func.func @transform_4(%arg0: i32, %arg1: i32) -> (i32, i32) {
    %c0_i32 = arith.constant 0 : i32
    %c0_i32_0 = arith.constant 0 : i32
    %c0_i32_1 = arith.constant 0 : i32
    return %c0_i32, %c0_i32_0 : i32, i32
  }
  func.func @transform_5(%arg0: i32, %arg1: i32) -> (i32, i32) {
    %c0_i32 = arith.constant 0 : i32
    %c0_i32_0 = arith.constant 0 : i32
    %c0_i32_1 = arith.constant 0 : i32
    return %c0_i32, %c0_i32_0 : i32, i32
  }
  func.func @transform_6(%arg0: i32, %arg1: i32) -> (i32, i32) {
    %c0_i32 = arith.constant 0 : i32
    %c0_i32_0 = arith.constant 0 : i32
    return %arg0, %c0_i32 : i32, i32
  }
}

module attributes {stable_mosaic.version = 11 : i64} {
  func.func @sage_layer_kernel(%arg0: i32, %arg1: i32, %arg2: memref<256x512xbf16, #tpu.memory_space<vmem>>, %arg3: memref<512x128xbf16, #tpu.memory_space<vmem>>, %arg4: memref<256x128xbf16, #tpu.memory_space<vmem>>, %arg5: memref<128x128xbf16, #tpu.memory_space<vmem>>, %arg6: memref<128x128xbf16, #tpu.memory_space<vmem>>, %arg7: memref<1x128xf32, #tpu.memory_space<vmem>>, %arg8: memref<256x128xf32, #tpu.memory_space<vmem>>, %arg9: memref<256x128xf32, #tpu.memory_space<vmem>>) attributes {dimension_semantics = [#tpu.dimension_semantics<parallel>, #tpu.dimension_semantics<arbitrary>], iteration_bounds = array<i64: 4, 2>, scalar_prefetch = 0 : i64, scratch_operands = 1 : i64, tpu.core_type = #tpu.core_type<tc>, window_params = [{transform_indices = @transform_0, window_bounds = array<i64: 256, 512>}, {transform_indices = @transform_1, window_bounds = array<i64: 512, 128>}, {transform_indices = @transform_2, window_bounds = array<i64: 256, 128>}, {pipeline_mode = #tpu.pipeline_mode<synchronous>, transform_indices = @transform_3, window_bounds = array<i64: 128, 128>}, {pipeline_mode = #tpu.pipeline_mode<synchronous>, transform_indices = @transform_4, window_bounds = array<i64: 128, 128>}, {pipeline_mode = #tpu.pipeline_mode<synchronous>, transform_indices = @transform_5, window_bounds = array<i64: 1, 128>}, {transform_indices = @transform_6, window_bounds = array<i64: 256, 128>}]} {
    %c0_i32 = arith.constant 0 : i32
    %0 = arith.cmpi eq, %arg1, %c0_i32 : i32
    %1 = arith.extui %0 : i1 to i32
    %c0_i32_0 = arith.constant 0 : i32
    %2 = arith.cmpi ne, %1, %c0_i32_0 : i32
    scf.if %2 {
      %cst_9 = arith.constant 0.000000e+00 : f32
      %12 = vector.broadcast %cst_9 : f32 to vector<256x128xf32>
      %c0_10 = arith.constant 0 : index
      %c0_11 = arith.constant 0 : index
      %13 = vector.load %arg9[%c0_10, %c0_11] : memref<256x128xf32, #tpu.memory_space<vmem>>, vector<256x128xf32>
      tpu.vector_store %arg9[%c0_10, %c0_11], %12 {strides = array<i32>} : memref<256x128xf32, #tpu.memory_space<vmem>>, vector<256x128xf32>,
    } else {
    }
    %c0 = arith.constant 0 : index
    %c0_1 = arith.constant 0 : index
    %3 = vector.load %arg9[%c0, %c0_1] : memref<256x128xf32, #tpu.memory_space<vmem>>, vector<256x128xf32>
    %c0_2 = arith.constant 0 : index
    %c0_3 = arith.constant 0 : index
    %4 = vector.load %arg2[%c0_2, %c0_3] : memref<256x512xbf16, #tpu.memory_space<vmem>>, vector<256x512xbf16>
    %c0_4 = arith.constant 0 : index
    %c0_5 = arith.constant 0 : index
    %5 = vector.load %arg3[%c0_4, %c0_5] : memref<512x128xbf16, #tpu.memory_space<vmem>>, vector<512x128xbf16>
    %cst = arith.constant dense<0.000000e+00> : vector<256x128xf32>
    %6 = tpu.matmul %4, %5, %cst {dimension_numbers = #tpu.dot_dimension_numbers<[1], [0], [0], [1], [0, 0, 1, 1], [], []>} : vector<256x512xbf16>, vector<512x128xbf16>, vector<256x128xf32> -> vector<256x128xf32>
    %7 = arith.addf %3, %6 : vector<256x128xf32>
    %c0_6 = arith.constant 0 : index
    %c0_7 = arith.constant 0 : index
    %8 = vector.load %arg9[%c0_6, %c0_7] : memref<256x128xf32, #tpu.memory_space<vmem>>, vector<256x128xf32>
    tpu.vector_store %arg9[%c0_6, %c0_7], %7 {strides = array<i32>} : memref<256x128xf32, #tpu.memory_space<vmem>>, vector<256x128xf32>,
    %c1_i32 = arith.constant 1 : i32
    %9 = arith.cmpi eq, %arg1, %c1_i32 : i32
    %10 = arith.extui %9 : i1 to i32
    %c0_i32_8 = arith.constant 0 : i32
    %11 = arith.cmpi ne, %10, %c0_i32_8 : i32
    scf.if %11 {
      %c0_9 = arith.constant 0 : index
      %c0_10 = arith.constant 0 : index
      %12 = vector.load %arg9[%c0_9, %c0_10] : memref<256x128xf32, #tpu.memory_space<vmem>>, vector<256x128xf32>
      %13 = arith.truncf %12 : vector<256x128xf32> to vector<256x128xbf16>
      %c0_11 = arith.constant 0 : index
      %c0_12 = arith.constant 0 : index
      %14 = vector.load %arg5[%c0_11, %c0_12] : memref<128x128xbf16, #tpu.memory_space<vmem>>, vector<128x128xbf16>
      %cst_13 = arith.constant dense<0.000000e+00> : vector<256x128xf32>
      %15 = tpu.matmul %13, %14, %cst_13 {dimension_numbers = #tpu.dot_dimension_numbers<[1], [0], [0], [1], [0, 0, 1, 1], [], []>} : vector<256x128xbf16>, vector<128x128xbf16>, vector<256x128xf32> -> vector<256x128xf32>
      %c0_14 = arith.constant 0 : index
      %c0_15 = arith.constant 0 : index
      %16 = vector.load %arg4[%c0_14, %c0_15] : memref<256x128xbf16, #tpu.memory_space<vmem>>, vector<256x128xbf16>
      %c0_16 = arith.constant 0 : index
      %c0_17 = arith.constant 0 : index
      %17 = vector.load %arg6[%c0_16, %c0_17] : memref<128x128xbf16, #tpu.memory_space<vmem>>, vector<128x128xbf16>
      %cst_18 = arith.constant dense<0.000000e+00> : vector<256x128xf32>
      %18 = tpu.matmul %16, %17, %cst_18 {dimension_numbers = #tpu.dot_dimension_numbers<[1], [0], [0], [1], [0, 0, 1, 1], [], []>} : vector<256x128xbf16>, vector<128x128xbf16>, vector<256x128xf32> -> vector<256x128xf32>
      %19 = arith.addf %15, %18 : vector<256x128xf32>
      %c0_19 = arith.constant 0 : index
      %c0_20 = arith.constant 0 : index
      %20 = vector.load %arg7[%c0_19, %c0_20] : memref<1x128xf32, #tpu.memory_space<vmem>>, vector<1x128xf32>
      %21 = vector.broadcast %20 : vector<1x128xf32> to vector<256x128xf32>
      %22 = arith.addf %19, %21 : vector<256x128xf32>
      %c0_21 = arith.constant 0 : index
      %c0_22 = arith.constant 0 : index
      %23 = vector.load %arg8[%c0_21, %c0_22] : memref<256x128xf32, #tpu.memory_space<vmem>>, vector<256x128xf32>
      tpu.vector_store %arg8[%c0_21, %c0_22], %22 {strides = array<i32>} : memref<256x128xf32, #tpu.memory_space<vmem>>, vector<256x128xf32>,
    } else {
    }
    return
  }
  func.func @transform_0(%arg0: i32, %arg1: i32) -> (i32, i32) {
    %c0_i32 = arith.constant 0 : i32
    return %arg0, %arg1 : i32, i32
  }
  func.func @transform_1(%arg0: i32, %arg1: i32) -> (i32, i32) {
    %c0_i32 = arith.constant 0 : i32
    %c0_i32_0 = arith.constant 0 : i32
    return %arg1, %c0_i32 : i32, i32
  }
  func.func @transform_2(%arg0: i32, %arg1: i32) -> (i32, i32) {
    %c0_i32 = arith.constant 0 : i32
    %c0_i32_0 = arith.constant 0 : i32
    return %arg0, %c0_i32 : i32, i32
  }
  func.func @transform_3(%arg0: i32, %arg1: i32) -> (i32, i32) {
    %c0_i32 = arith.constant 0 : i32
    %c0_i32_0 = arith.constant 0 : i32
    %c0_i32_1 = arith.constant 0 : i32
    return %c0_i32, %c0_i32_0 : i32, i32
  }
  func.func @transform_4(%arg0: i32, %arg1: i32) -> (i32, i32) {
    %c0_i32 = arith.constant 0 : i32
    %c0_i32_0 = arith.constant 0 : i32
    %c0_i32_1 = arith.constant 0 : i32
    return %c0_i32, %c0_i32_0 : i32, i32
  }
  func.func @transform_5(%arg0: i32, %arg1: i32) -> (i32, i32) {
    %c0_i32 = arith.constant 0 : i32
    %c0_i32_0 = arith.constant 0 : i32
    %c0_i32_1 = arith.constant 0 : i32
    return %c0_i32, %c0_i32_0 : i32, i32
  }
  func.func @transform_6(%arg0: i32, %arg1: i32) -> (i32, i32) {
    %c0_i32 = arith.constant 0 : i32
    %c0_i32_0 = arith.constant 0 : i32
    return %arg0, %c0_i32 : i32, i32
  }
}

</mosaic_0001>

<llo_original>
// kernel: sage_forward.3
$region0: #{sage_forward.3}
  #allocation0 [shape = 'u32[]', space=smem, size = 0x4, offset = 0x4, fixed_abs, tag = 'smem constant byte address 0x4 - core index']
  #allocation1 [shape = 'u32[144,128]{1,0:T(1,128)}', space=vmem, size = 0x12000, scoped, tag = 'internal scratch']
  #allocation2 [shape = 'f32[256,128]{1,0:T(8,128)}', space=vmem, size = 0x20000, scoped, tag = 'scratch operand']
  %s0 = inlined_call_operand.vmem [shape: bf16[1024,1024], index: 0, kind: input, shape index: {}]
  %s1 = inlined_call_operand.vmem [shape: bf16[1024,128], index: 1, kind: input, shape index: {}, may-alias: {1,2}]
  %s2 = inlined_call_operand.vmem [shape: bf16[1024,128], index: 2, kind: input, shape index: {}, may-alias: {1,2}]
  %s3 = inlined_call_operand.vmem [shape: bf16[128,128], index: 3, kind: input, shape index: {}]
  %s4 = inlined_call_operand.vmem [shape: bf16[128,128], index: 4, kind: input, shape index: {}]
  %s5 = inlined_call_operand.vmem [shape: f32[1,128], index: 5, kind: input, shape index: {}]
  %s6 = inlined_call_operand.vmem [shape: bf16[1024,128], index: 6, kind: output, shape index: {}]
  %s7 = sld [smem:[#allocation0]]
  $region88: #{sage_forward.3} parent=0
    _
  %s9 = ssub.s32 1, %s7
  %s10 = scalar_select 0, %s9, %s7
  $region1: #{sage_forward.3} parent=0
    #allocation3 [shape = 'u8[524288]{0}', space=vmem, size = 0x80000, scoped, tag = 'input window, operand 0']
    loop: start=0, step=1, limit=10
    $region2: #{sage_forward.3} parent=1 // loop_pre_header
      _
    $region3: #{sage_forward.3} parent=1 // loop_header
      %s12 = sphi 0, %s16
      %p13 = scmp.ge.s32.totalorder %s12, 10
      %s19 = sphi 0, %s31
      %s20 = sphi 0, %s27
      %s21 = sphi 0, %s19
      %s22 = sphi 0, %s20
      %s23 = sphi 0, %s21
      %s24 = sphi 0, %s22
      %s36 = sphi 0, %s38
      %s39 = sphi 0, %s36
      %s40 = sphi 0, %s39
      %s56 = sphi 0, %s40
      %s62 = sphi 0, %s64
      %s65 = sphi 0, %s62
      %s66 = sphi 0, %s65
      %s82 = sphi 0, %s66
      %s88 = sphi 0, %s90
      %s91 = sphi 0, %s88
      %s92 = sphi 0, %s91
      %s108 = sphi 0, %s92
      %s112 = sphi 0, %s112
      %s114 = sphi 0, %s112
      %s115 = sphi 0, %s114
      %s129 = sphi 0, %s115
      %s133 = sphi 0, %s133
      %s135 = sphi 0, %s133
      %s136 = sphi 0, %s135
      %s150 = sphi 0, %s136
      %s154 = sphi 0, %s154
      %s156 = sphi 0, %s154
      %s157 = sphi 0, %s156
      %s171 = sphi 0, %s157
      %s177 = sphi 0, %s179
      %s180 = sphi 0, %s177
      %s181 = sphi 0, %s180
      %s197 = sphi 0, %s181
    $region4: #{sage_forward.3} parent=1 // loop_header_branch
      %15 = sbr.rel (%p13) target = $region8
    $region5: #{sage_forward.3} parent=1 // loop_body
      %s17 = ssub.s32 %s12, 1
      %s18 = ssub.s32 %s12, 2
      %s25 = sadd.s32 1, %s20
      %p26 = scmp.ge.s32.totalorder %s25, 2
      %s27 = scalar_select %p26, 0, %s25
      %s28 = sadd.s32 1, %s19
      %s29 = scalar_select %p26, %s28, %s19
      %p30 = scmp.ge.s32.totalorder %s29, 4
      %s31 = scalar_select %p30, 0, %s29
      %s32 = ssub.s32 %s19, %s31
      %s33 = ssub.s32 %s20, %s27
      %s34 = sor.u32 %s32, %s33
      %p35 = scmp.eq.s32.totalorder %s34, 0
      %s37 = sadd.s32 %s36, 1
      %s38 = scalar_select %p35, %s36, %s37
      %p41 = pneg %p35
      %p42 = scmp.eq.s32.totalorder %s12, 7
      %p43 = por %p41, %p42
      %p44 = scmp.ne.s32.totalorder %s36, %s39
      %p45 = scmp.eq.s32.totalorder %s12, 0
      %p46 = por %p44, %p45
      %p47 = scmp.ne.s32.totalorder %s36, %s39
      %p48 = scmp.eq.s32.totalorder %s17, 7
      %p49 = por %p47, %p48
      %p50 = scmp.ne.s32.totalorder %s39, %s40
      %p51 = scmp.eq.s32.totalorder %s17, 0
      %p52 = por %p50, %p51
      %p53 = scmp.ne.s32.totalorder %s39, %s40
      %p54 = scmp.eq.s32.totalorder %s18, 7
      %p55 = por %p53, %p54
      %p57 = scmp.ne.s32.totalorder %s40, %s56
      %p58 = scmp.eq.s32.totalorder %s18, 0
      %p59 = por %p57, %p58
      %s60 = ssub.s32 %s20, %s27
      %p61 = scmp.eq.s32.totalorder %s60, 0
      %s63 = sadd.s32 %s62, 1
      %s64 = scalar_select %p61, %s62, %s63
      %p67 = pneg %p61
      %p68 = scmp.eq.s32.totalorder %s12, 7
      %p69 = por %p67, %p68
      %p70 = scmp.ne.s32.totalorder %s62, %s65
      %p71 = scmp.eq.s32.totalorder %s12, 0
      %p72 = por %p70, %p71
      %p73 = scmp.ne.s32.totalorder %s62, %s65
      %p74 = scmp.eq.s32.totalorder %s17, 7
      %p75 = por %p73, %p74
      %p76 = scmp.ne.s32.totalorder %s65, %s66
      %p77 = scmp.eq.s32.totalorder %s17, 0
      %p78 = por %p76, %p77
      %p79 = scmp.ne.s32.totalorder %s65, %s66
      %p80 = scmp.eq.s32.totalorder %s18, 7
      %p81 = por %p79, %p80
      %p83 = scmp.ne.s32.totalorder %s66, %s82
      %p84 = scmp.eq.s32.totalorder %s18, 0
      %p85 = por %p83, %p84
      %s86 = ssub.s32 %s19, %s31
      %p87 = scmp.eq.s32.totalorder %s86, 0
      %s89 = sadd.s32 %s88, 1
      %s90 = scalar_select %p87, %s88, %s89
      %p93 = pneg %p87
      %p94 = scmp.eq.s32.totalorder %s12, 7
      %p95 = por %p93, %p94
      %p96 = scmp.ne.s32.totalorder %s88, %s91
      %p97 = scmp.eq.s32.totalorder %s12, 0
      %p98 = por %p96, %p97
      %p99 = scmp.ne.s32.totalorder %s88, %s91
      %p100 = scmp.eq.s32.totalorder %s17, 7
      %p101 = por %p99, %p100
      %p102 = scmp.ne.s32.totalorder %s91, %s92
      %p103 = scmp.eq.s32.totalorder %s17, 0
      %p104 = por %p102, %p103
      %p105 = scmp.ne.s32.totalorder %s91, %s92
      %p106 = scmp.eq.s32.totalorder %s18, 7
      %p107 = por %p105, %p106
      %p109 = scmp.ne.s32.totalorder %s92, %s108
      %p110 = scmp.eq.s32.totalorder %s18, 0
      %p111 = por %p109, %p110
      %s113 = sadd.s32 %s112, 1
      %p116 = scmp.eq.s32.totalorder %s12, 7
      %p117 = scmp.ne.s32.totalorder %s112, %s114
      %p118 = scmp.eq.s32.totalorder %s12, 0
      %p119 = por %p117, %p118
      %p120 = scmp.ne.s32.totalorder %s112, %s114
      %p121 = scmp.eq.s32.totalorder %s17, 7
      %p122 = por %p120, %p121
      %p123 = scmp.ne.s32.totalorder %s114, %s115
      %p124 = scmp.eq.s32.totalorder %s17, 0
      %p125 = por %p123, %p124
      %p126 = scmp.ne.s32.totalorder %s114, %s115
      %p127 = scmp.eq.s32.totalorder %s18, 7
      %p128 = por %p126, %p127
      %p130 = scmp.ne.s32.totalorder %s115, %s129
      %p131 = scmp.eq.s32.totalorder %s18, 0
      %p132 = por %p130, %p131
      %s134 = sadd.s32 %s133, 1
      %p137 = scmp.eq.s32.totalorder %s12, 7
      %p138 = scmp.ne.s32.totalorder %s133, %s135
      %p139 = scmp.eq.s32.totalorder %s12, 0
      %p140 = por %p138, %p139
      %p141 = scmp.ne.s32.totalorder %s133, %s135
      %p142 = scmp.eq.s32.totalorder %s17, 7
      %p143 = por %p141, %p142
      %p144 = scmp.ne.s32.totalorder %s135, %s136
      %p145 = scmp.eq.s32.totalorder %s17, 0
      %p146 = por %p144, %p145
      %p147 = scmp.ne.s32.totalorder %s135, %s136
      %p148 = scmp.eq.s32.totalorder %s18, 7
      %p149 = por %p147, %p148
      %p151 = scmp.ne.s32.totalorder %s136, %s150
      %p152 = scmp.eq.s32.totalorder %s18, 0
      %p153 = por %p151, %p152
      %s155 = sadd.s32 %s154, 1
      %p158 = scmp.eq.s32.totalorder %s12, 7
      %p159 = scmp.ne.s32.totalorder %s154, %s156
      %p160 = scmp.eq.s32.totalorder %s12, 0
      %p161 = por %p159, %p160
      %p162 = scmp.ne.s32.totalorder %s154, %s156
      %p163 = scmp.eq.s32.totalorder %s17, 7
      %p164 = por %p162, %p163
      %p165 = scmp.ne.s32.totalorder %s156, %s157
      %p166 = scmp.eq.s32.totalorder %s17, 0
      %p167 = por %p165, %p166
      %p168 = scmp.ne.s32.totalorder %s156, %s157
      %p169 = scmp.eq.s32.totalorder %s18, 7
      %p170 = por %p168, %p169
      %p172 = scmp.ne.s32.totalorder %s157, %s171
      %p173 = scmp.eq.s32.totalorder %s18, 0
      %p174 = por %p172, %p173
      %s175 = ssub.s32 %s19, %s31
      %p176 = scmp.eq.s32.totalorder %s175, 0
      %s178 = sadd.s32 %s177, 1
      %s179 = scalar_select %p176, %s177, %s178
      %p182 = pneg %p176
      %p183 = scmp.eq.s32.totalorder %s12, 7
      %p184 = por %p182, %p183
      %p185 = scmp.ne.s32.totalorder %s177, %s180
      %p186 = scmp.eq.s32.totalorder %s12, 0
      %p187 = por %p185, %p186
      %p188 = scmp.ne.s32.totalorder %s177, %s180
      %p189 = scmp.eq.s32.totalorder %s17, 7
      %p190 = por %p188, %p189
      %p191 = scmp.ne.s32.totalorder %s180, %s181
      %p192 = scmp.eq.s32.totalorder %s17, 0
      %p193 = por %p191, %p192
      %p194 = scmp.ne.s32.totalorder %s180, %s181
      %p195 = scmp.eq.s32.totalorder %s18, 7
      %p196 = por %p194, %p195
      %p198 = scmp.ne.s32.totalorder %s181, %s197
      %p199 = scmp.eq.s32.totalorder %s18, 0
      %p200 = por %p198, %p199
      %p201 = scmp.le.s32.totalorder 1, %s12
      %p202 = scmp.lt.s32.totalorder %s12, 9
      %p203 = pnand %p201, %p202
      %p204 = pneg %p203
      // Predicated region
      $region9: #{sage_forward.3} parent=5 // pred_check
        _
      $region10: #{sage_forward.3} parent=5 // pred_check_branch
        %206 = sbr.rel (%p203) target = $region12
      $region11: #{sage_forward.3} parent=5 // pred_region
        %s207 = ssub.s32 %s12, 1
        // Predicated region
        $region13: #{sage_forward.3} parent=11 // pred_check
          %p208 = pneg %p125
        $region14: #{sage_forward.3} parent=11 // pred_check_branch
          %210 = sbr.rel (%p208) target = $region16
        $region15: #{sage_forward.3} parent=11 // pred_region
          _
        $region16: #{sage_forward.3} parent=11 // pred_fallthru
          _
        // Predicated region
        $region17: #{sage_forward.3} parent=11 // pred_check
          %p211 = pneg %p146
        $region18: #{sage_forward.3} parent=11 // pred_check_branch
          %213 = sbr.rel (%p211) target = $region20
        $region19: #{sage_forward.3} parent=11 // pred_region
          _
        $region20: #{sage_forward.3} parent=11 // pred_fallthru
          _
        // Predicated region
        $region21: #{sage_forward.3} parent=11 // pred_check
          %p214 = pneg %p167
        $region22: #{sage_forward.3} parent=11 // pred_check_branch
          %216 = sbr.rel (%p214) target = $region24
        $region23: #{sage_forward.3} parent=11 // pred_region
          _
        $region24: #{sage_forward.3} parent=11 // pred_fallthru
          _
      $region12: #{sage_forward.3} parent=5 // pred_fallthru
        _
      %p217 = scmp.lt.s32.totalorder %s12, 8
      // Predicated region
      $region25: #{sage_forward.3} parent=5 // pred_check
        %p218 = pneg %p217
      $region26: #{sage_forward.3} parent=5 // pred_check_branch
        %220 = sbr.rel (%p218) target = $region28
      $region27: #{sage_forward.3} parent=5 // pred_region
        // Predicated region
        $region29: #{sage_forward.3} parent=27 // pred_check
          %p221 = pneg %p46
        $region30: #{sage_forward.3} parent=27 // pred_check_branch
          %223 = sbr.rel (%p221) target = $region32
        $region31: #{sage_forward.3} parent=27 // pred_region
          %s224 = sand.u32 %s36, 1
          %s225 = sand.u32 %s36, 1
          %s226 = smul.addr %s225, 512
          %s227 = scalar_lea.vmem [#allocation3], %s226
          %s228 = smul.u32 32, %s19
          %s229 = smul.u32 4, %s20
          %s230 = smul.addr %s228, 8
          %s231 = sadd.s32 %s229, %s230
          %s232 = smul.addr %s231, 4
          %s233 = scalar_lea.vmem %s0, %s232
          // Predicated region
          $region33: #{sage_forward.3} parent=31 // pred_check
            _
          $region34: #{sage_forward.3} parent=31 // pred_check_branch
            %235 = sbr.rel (0) target = $region36
          $region35: #{sage_forward.3} parent=31 // pred_region
            // Predicated region
            $region37: #{sage_forward.3} parent=35 // pred_check
              _
            $region38: #{sage_forward.3} parent=35 // pred_check_branch
              %237 = sbr.rel (0) target = $region40
            $region39: #{sage_forward.3} parent=35 // pred_region
              loop: start=0, step=1, limit=1
              $region41: #{sage_forward.3} parent=39 // loop_pre_header
                _
              $region42: #{sage_forward.3} parent=39 // loop_header
                %s239 = sphi 0, %s243
                %p240 = scmp.ge.s32.totalorder %s239, 1
                %s244 = sphi %s233, %s233
                %s245 = sphi %s227, %s227
              $region43: #{sage_forward.3} parent=39 // loop_header_branch
                %242 = sbr.rel (%p240) target = $region47
              $region44: #{sage_forward.3} parent=39 // loop_body
                %v246 = vld [vmem:[%s244] sm:$0xff]
                %247 = vst [vmem:[%s245] sm:$0xff] %v246
                %v248 = vld [vmem:[%s244 + $0x8] sm:$0xff]
                %249 = vst [vmem:[%s245 + $0x8] sm:$0xff] %v248
                %v250 = vld [vmem:[%s244 + $0x20] sm:$0xff]
                %251 = vst [vmem:[%s245 + $0x10] sm:$0xff] %v250
                %v252 = vld [vmem:[%s244 + $0x28] sm:$0xff]
                %253 = vst [vmem:[%s245 + $0x18] sm:$0xff] %v252
                %v254 = vld [vmem:[%s244 + $0x40] sm:$0xff]
                %255 = vst [vmem:[%s245 + $0x20] sm:$0xff] %v254
                %v256 = vld [vmem:[%s244 + $0x48] sm:$0xff]
                %257 = vst [vmem:[%s245 + $0x28] sm:$0xff] %v256
                %v258 = vld [vmem:[%s244 + $0x60] sm:$0xff]
                %259 = vst [vmem:[%s245 + $0x30] sm:$0xff] %v258
                %v260 = vld [vmem:[%s244 + $0x68] sm:$0xff]
                %261 = vst [vmem:[%s245 + $0x38] sm:$0xff] %v260
                %v262 = vld [vmem:[%s244 + $0x80] sm:$0xff]
                %263 = vst [vmem:[%s245 + $0x40] sm:$0xff] %v262
                %v264 = vld [vmem:[%s244 + $0x88] sm:$0xff]
                %265 = vst [vmem:[%s245 + $0x48] sm:$0xff] %v264
                %v266 = vld [vmem:[%s244 + $0xa0] sm:$0xff]
                %267 = vst [vmem:[%s245 + $0x50] sm:$0xff] %v266
                %v268 = vld [vmem:[%s244 + $0xa8] sm:$0xff]
                %269 = vst [vmem:[%s245 + $0x58] sm:$0xff] %v268
                %v270 = vld [vmem:[%s244 + $0xc0] sm:$0xff]
                %271 = vst [vmem:[%s245 + $0x60] sm:$0xff] %v270
                %v272 = vld [vmem:[%s244 + $0xc8] sm:$0xff]
                %273 = vst [vmem:[%s245 + $0x68] sm:$0xff] %v272
                %v274 = vld [vmem:[%s244 + $0xe0] sm:$0xff]
                %275 = vst [vmem:[%s245 + $0x70] sm:$0xff] %v274
                %v276 = vld [vmem:[%s244 + $0xe8] sm:$0xff]
                %277 = vst [vmem:[%s245 + $0x78] sm:$0xff] %v276
                %v278 = vld [vmem:[%s244 + $0x100] sm:$0xff]
                %279 = vst [vmem:[%s245 + $0x80] sm:$0xff] %v278
                %v280 = vld [vmem:[%s244 + $0x108] sm:$0xff]
                %281 = vst [vmem:[%s245 + $0x88] sm:$0xff] %v280
                %v282 = vld [vmem:[%s244 + $0x120] sm:$0xff]
                %283 = vst [vmem:[%s245 + $0x90] sm:$0xff] %v282
                %v284 = vld [vmem:[%s244 + $0x128] sm:$0xff]
                %285 = vst [vmem:[%s245 + $0x98] sm:$0xff] %v284
                %v286 = vld [vmem:[%s244 + $0x140] sm:$0xff]
                %287 = vst [vmem:[%s245 + $0xa0] sm:$0xff] %v286
                %v288 = vld [vmem:[%s244 + $0x148] sm:$0xff]
                %289 = vst [vmem:[%s245 + $0xa8] sm:$0xff] %v288
                %v290 = vld [vmem:[%s244 + $0x160] sm:$0xff]
                %291 = vst [vmem:[%s245 + $0xb0] sm:$0xff] %v290
                %v292 = vld [vmem:[%s244 + $0x168] sm:$0xff]
                %293 = vst [vmem:[%s245 + $0xb8] sm:$0xff] %v292
                %v294 = vld [vmem:[%s244 + $0x180] sm:$0xff]
                %295 = vst [vmem:[%s245 + $0xc0] sm:$0xff] %v294
                %v296 = vld [vmem:[%s244 + $0x188] sm:$0xff]
                %297 = vst [vmem:[%s245 + $0xc8] sm:$0xff] %v296
                %v298 = vld [vmem:[%s244 + $0x1a0] sm:$0xff]
                %299 = vst [vmem:[%s245 + $0xd0] sm:$0xff] %v298
                %v300 = vld [vmem:[%s244 + $0x1a8] sm:$0xff]
                %301 = vst [vmem:[%s245 + $0xd8] sm:$0xff] %v300
                %v302 = vld [vmem:[%s244 + $0x1c0] sm:$0xff]
                %303 = vst [vmem:[%s245 + $0xe0] sm:$0xff] %v302
                %v304 = vld [vmem:[%s244 + $0x1c8] sm:$0xff]
                %305 = vst [vmem:[%s245 + $0xe8] sm:$0xff] %v304
                %v306 = vld [vmem:[%s244 + $0x1e0] sm:$0xff]
                %307 = vst [vmem:[%s245 + $0xf0] sm:$0xff] %v306
                %v308 = vld [vmem:[%s244 + $0x1e8] sm:$0xff]
                %309 = vst [vmem:[%s245 + $0xf8] sm:$0xff] %v308
                %v310 = vld [vmem:[%s244 + $0x200] sm:$0xff]
                %311 = vst [vmem:[%s245 + $0x100] sm:$0xff] %v310
                %v312 = vld [vmem:[%s244 + $0x208] sm:$0xff]
                %313 = vst [vmem:[%s245 + $0x108] sm:$0xff] %v312
                %v314 = vld [vmem:[%s244 + $0x220] sm:$0xff]
                %315 = vst [vmem:[%s245 + $0x110] sm:$0xff] %v314
                %v316 = vld [vmem:[%s244 + $0x228] sm:$0xff]
                %317 = vst [vmem:[%s245 + $0x118] sm:$0xff] %v316
                %v318 = vld [vmem:[%s244 + $0x240] sm:$0xff]
                %319 = vst [vmem:[%s245 + $0x120] sm:$0xff] %v318
                %v320 = vld [vmem:[%s244 + $0x248] sm:$0xff]
                %321 = vst [vmem:[%s245 + $0x128] sm:$0xff] %v320
                %v322 = vld [vmem:[%s244 + $0x260] sm:$0xff]
                %323 = vst [vmem:[%s245 + $0x130] sm:$0xff] %v322
                %v324 = vld [vmem:[%s244 + $0x268] sm:$0xff]
                %325 = vst [vmem:[%s245 + $0x138] sm:$0xff] %v324
                %v326 = vld [vmem:[%s244 + $0x280] sm:$0xff]
                %327 = vst [vmem:[%s245 + $0x140] sm:$0xff] %v326
                %v328 = vld [vmem:[%s244 + $0x288] sm:$0xff]
                %329 = vst [vmem:[%s245 + $0x148] sm:$0xff] %v328
                %v330 = vld [vmem:[%s244 + $0x2a0] sm:$0xff]
                %331 = vst [vmem:[%s245 + $0x150] sm:$0xff] %v330
                %v332 = vld [vmem:[%s244 + $0x2a8] sm:$0xff]
                %333 = vst [vmem:[%s245 + $0x158] sm:$0xff] %v332
                %v334 = vld [vmem:[%s244 + $0x2c0] sm:$0xff]
                %335 = vst [vmem:[%s245 + $0x160] sm:$0xff] %v334
                %v336 = vld [vmem:[%s244 + $0x2c8] sm:$0xff]
                %337 = vst [vmem:[%s245 + $0x168] sm:$0xff] %v336
                %v338 = vld [vmem:[%s244 + $0x2e0] sm:$0xff]
                %339 = vst [vmem:[%s245 + $0x170] sm:$0xff] %v338
                %v340 = vld [vmem:[%s244 + $0x2e8] sm:$0xff]
                %341 = vst [vmem:[%s245 + $0x178] sm:$0xff] %v340
                %v342 = vld [vmem:[%s244 + $0x300] sm:$0xff]
                %343 = vst [vmem:[%s245 + $0x180] sm:$0xff] %v342
                %v344 = vld [vmem:[%s244 + $0x308] sm:$0xff]
                %345 = vst [vmem:[%s245 + $0x188] sm:$0xff] %v344
                %v346 = vld [vmem:[%s244 + $0x320] sm:$0xff]
                %347 = vst [vmem:[%s245 + $0x190] sm:$0xff] %v346
                %v348 = vld [vmem:[%s244 + $0x328] sm:$0xff]
                %349 = vst [vmem:[%s245 + $0x198] sm:$0xff] %v348
                %v350 = vld [vmem:[%s244 + $0x340] sm:$0xff]
                %351 = vst [vmem:[%s245 + $0x1a0] sm:$0xff] %v350
                %v352 = vld [vmem:[%s244 + $0x348] sm:$0xff]
                %353 = vst [vmem:[%s245 + $0x1a8] sm:$0xff] %v352
                %v354 = vld [vmem:[%s244 + $0x360] sm:$0xff]
                %355 = vst [vmem:[%s245 + $0x1b0] sm:$0xff] %v354
                %v356 = vld [vmem:[%s244 + $0x368] sm:$0xff]
                %357 = vst [vmem:[%s245 + $0x1b8] sm:$0xff] %v356
                %v358 = vld [vmem:[%s244 + $0x380] sm:$0xff]
                %359 = vst [vmem:[%s245 + $0x1c0] sm:$0xff] %v358
                %v360 = vld [vmem:[%s244 + $0x388] sm:$0xff]
                %361 = vst [vmem:[%s245 + $0x1c8] sm:$0xff] %v360
                %v362 = vld [vmem:[%s244 + $0x3a0] sm:$0xff]
                %363 = vst [vmem:[%s245 + $0x1d0] sm:$0xff] %v362
                %v364 = vld [vmem:[%s244 + $0x3a8] sm:$0xff]
                %365 = vst [vmem:[%s245 + $0x1d8] sm:$0xff] %v364
                %v366 = vld [vmem:[%s244 + $0x3c0] sm:$0xff]
                %367 = vst [vmem:[%s245 + $0x1e0] sm:$0xff] %v366
                %v368 = vld [vmem:[%s244 + $0x3c8] sm:$0xff]
                %369 = vst [vmem:[%s245 + $0x1e8] sm:$0xff] %v368
                %v370 = vld [vmem:[%s244 + $0x3e0] sm:$0xff]
                %371 = vst [vmem:[%s245 + $0x1f0] sm:$0xff] %v370
                %v372 = vld [vmem:[%s244 + $0x3e8] sm:$0xff]
                %373 = vst [vmem:[%s245 + $0x1f8] sm:$0xff] %v372
              $region45: #{sage_forward.3} parent=39 // loop_footer
                %s243 = sadd.s32 1, %s239
              $region46: #{sage_forward.3} parent=39 // loop_footer_branch
                %238 = sbr.rel target = $region42
              $region47: #{sage_forward.3} parent=39 // loop_exit
                _
            $region40: #{sage_forward.3} parent=35 // pred_fallthru
              _
            // Predicated region
            $region48: #{sage_forward.3} parent=35 // pred_check
              _
            $region49: #{sage_forward.3} parent=35 // pred_check_branch
              %375 = sbr.rel target = $region51
            $region50: #{sage_forward.3} parent=35 // pred_region
              _
            $region51: #{sage_forward.3} parent=35 // pred_fallthru
              _
          $region36: #{sage_forward.3} parent=31 // pred_fallthru
            _
          %376 = vnop
        $region32: #{sage_forward.3} parent=27 // pred_fallthru
          _
        // Predicated region
        $region52: #{sage_forward.3} parent=27 // pred_check
          %p377 = pneg %p72
        $region53: #{sage_forward.3} parent=27 // pred_check_branch
          %379 = sbr.rel (%p377) target = $region55
        $region54: #{sage_forward.3} parent=27 // pred_region
          %s380 = smul.u32 64, %s20
          %p381 = scmp.lt.s32.totalorder %s380, 127
          %s382 = scalar_select %p381, %s380, 127
          %s383 = smul.addr %s382, 4
          %s384 = scalar_lea.vmem %s1, %s383
          %s385 = smul.u32 64, %s20
        $region55: #{sage_forward.3} parent=27 // pred_fallthru
          _
        // Predicated region
        $region56: #{sage_forward.3} parent=27 // pred_check
          %p386 = pneg %p98
        $region57: #{sage_forward.3} parent=27 // pred_check_branch
          %388 = sbr.rel (%p386) target = $region59
        $region58: #{sage_forward.3} parent=27 // pred_region
          %s389 = smul.u32 32, %s19
          %p390 = scmp.lt.s32.totalorder %s389, 127
          %s391 = scalar_select %p390, %s389, 127
          %s392 = smul.addr %s391, 4
          %s393 = scalar_lea.vmem %s2, %s392
          %s394 = smul.u32 32, %s19
        $region59: #{sage_forward.3} parent=27 // pred_fallthru
          _
      $region28: #{sage_forward.3} parent=5 // pred_fallthru
        _
      %p395 = scmp.le.s32.totalorder 1, %s12
      %p396 = scmp.lt.s32.totalorder %s12, 9
      %p397 = pnand %p395, %p396
      %p398 = pneg %p397
      // Predicated region
      $region60: #{sage_forward.3} parent=5 // pred_check
        _
      $region61: #{sage_forward.3} parent=5 // pred_check_branch
        %400 = sbr.rel (%p397) target = $region63
      $region62: #{sage_forward.3} parent=5 // pred_region
        %s401 = ssub.s32 %s12, 1
        %s402 = sand.u32 %s39, 1
        %s403 = sand.u32 %s39, 1
        %s404 = smul.addr %s403, 512
        %s405 = scalar_lea.vmem [#allocation3], %s404
        // Predicated region
        $region64: #{sage_forward.3} parent=62 // pred_check
          %p406 = pneg %p52
        $region65: #{sage_forward.3} parent=62 // pred_check_branch
          %408 = sbr.rel (%p406) target = $region67
        $region66: #{sage_forward.3} parent=62 // pred_region
          _
        $region67: #{sage_forward.3} parent=62 // pred_fallthru
          _
        %s409 = sand.u32 %s39, 1
        %s410 = sand.u32 %s39, 1
        %s411 = smul.addr %s410, 512
        %s412 = scalar_lea.vmem [#allocation3], %s411
        %p413 = pneg %p52
        %p414 = pneg %p49
        %s415 = smul.u32 64, %s22
        %p416 = scmp.lt.s32.totalorder %s415, 127
        %s417 = scalar_select %p416, %s415, 127
        %s418 = smul.addr %s417, 4
        %s419 = scalar_lea.vmem %s1, %s418
        %p420 = pneg %p78
        %p421 = pneg %p75
        %s422 = smul.u32 32, %s21
        %p423 = scmp.lt.s32.totalorder %s422, 127
        %s424 = scalar_select %p423, %s422, 127
        %s425 = smul.addr %s424, 4
        %s426 = scalar_lea.vmem %s2, %s425
        %p427 = pneg %p104
        %p428 = pneg %p101
        %p429 = pneg %p125
        %p430 = pneg %p122
        %p431 = pneg %p146
        %p432 = pneg %p143
        %p433 = pneg %p167
        %p434 = pneg %p164
        %p435 = pneg %p193
        %p436 = pneg %p190
        %s437 = smul.u32 32, %s21
        %p438 = scmp.lt.s32.totalorder %s437, 127
        %s439 = scalar_select %p438, %s437, 127
        %s440 = smul.addr %s439, 4
        %s441 = scalar_lea.vmem %s6, %s440
        %s442 = smul.u32 32, %s21
        %s443 = smul.u32 4, %s22
        %s444 = smul.u32 64, %s22
        %p445 = scmp.lt.s32.totalorder %s444, 127
        %s446 = scalar_select %p445, %s444, 127
        %s447 = smul.addr %s446, 4
        %s448 = scalar_lea.vmem %s1, %s447
        %s449 = smul.u32 64, %s22
        %s450 = smul.u32 32, %s21
        %p451 = scmp.lt.s32.totalorder %s450, 127
        %s452 = scalar_select %p451, %s450, 127
        %s453 = smul.addr %s452, 4
        %s454 = scalar_lea.vmem %s2, %s453
        %s455 = smul.u32 32, %s21
        %s456 = smul.u32 32, %s21
        %p457 = scmp.lt.s32.totalorder %s456, 127
        %s458 = scalar_select %p457, %s456, 127
        %s459 = smul.addr %s458, 4
        %s460 = scalar_lea.vmem %s6, %s459
        %s461 = smul.u32 32, %s21
        %p463 = scmp.eq.s32.totalorder %s22, 0
        // Predicated region
        $region68: #{sage_forward.3} parent=62 // pred_check
          %p464 = pneg %p463
        $region69: #{sage_forward.3} parent=62 // pred_check_branch
          %466 = sbr.rel (%p464) target = $region71
        $region70: #{sage_forward.3} parent=62 // pred_region
          %467 = vst [vmem:[#allocation2] sm:$0xff] 0.0
          %468 = vst [vmem:[#allocation2 + $0x8] sm:$0xff] 0.0
          %469 = vst [vmem:[#allocation2 + $0x10] sm:$0xff] 0.0
          %470 = vst [vmem:[#allocation2 + $0x18] sm:$0xff] 0.0
          %471 = vst [vmem:[#allocation2 + $0x20] sm:$0xff] 0.0
          %472 = vst [vmem:[#allocation2 + $0x28] sm:$0xff] 0.0
          %473 = vst [vmem:[#allocation2 + $0x30] sm:$0xff] 0.0
          %474 = vst [vmem:[#allocation2 + $0x38] sm:$0xff] 0.0
          %475 = vst [vmem:[#allocation2 + $0x40] sm:$0xff] 0.0
          %476 = vst [vmem:[#allocation2 + $0x48] sm:$0xff] 0.0
          %477 = vst [vmem:[#allocation2 + $0x50] sm:$0xff] 0.0
          %478 = vst [vmem:[#allocation2 + $0x58] sm:$0xff] 0.0
          %479 = vst [vmem:[#allocation2 + $0x60] sm:$0xff] 0.0
          %480 = vst [vmem:[#allocation2 + $0x68] sm:$0xff] 0.0
          %481 = vst [vmem:[#allocation2 + $0x70] sm:$0xff] 0.0
          %482 = vst [vmem:[#allocation2 + $0x78] sm:$0xff] 0.0
          %483 = vst [vmem:[#allocation2 + $0x80] sm:$0xff] 0.0
          %484 = vst [vmem:[#allocation2 + $0x88] sm:$0xff] 0.0
          %485 = vst [vmem:[#allocation2 + $0x90] sm:$0xff] 0.0
          %486 = vst [vmem:[#allocation2 + $0x98] sm:$0xff] 0.0
          %487 = vst [vmem:[#allocation2 + $0xa0] sm:$0xff] 0.0
          %488 = vst [vmem:[#allocation2 + $0xa8] sm:$0xff] 0.0
          %489 = vst [vmem:[#allocation2 + $0xb0] sm:$0xff] 0.0
          %490 = vst [vmem:[#allocation2 + $0xb8] sm:$0xff] 0.0
          %491 = vst [vmem:[#allocation2 + $0xc0] sm:$0xff] 0.0
          %492 = vst [vmem:[#allocation2 + $0xc8] sm:$0xff] 0.0
          %493 = vst [vmem:[#allocation2 + $0xd0] sm:$0xff] 0.0
          %494 = vst [vmem:[#allocation2 + $0xd8] sm:$0xff] 0.0
          %495 = vst [vmem:[#allocation2 + $0xe0] sm:$0xff] 0.0
          %496 = vst [vmem:[#allocation2 + $0xe8] sm:$0xff] 0.0
          %497 = vst [vmem:[#allocation2 + $0xf0] sm:$0xff] 0.0
          %498 = vst [vmem:[#allocation2 + $0xf8] sm:$0xff] 0.0
        $region71: #{sage_forward.3} parent=62 // pred_fallthru
          _
        %v499 = vld [vmem:[#allocation2] sm:$0xff]
        %v500 = vld [vmem:[#allocation2 + $0x8] sm:$0xff]
        %v501 = vld [vmem:[#allocation2 + $0x10] sm:$0xff]
        %v502 = vld [vmem:[#allocation2 + $0x18] sm:$0xff]
        %v503 = vld [vmem:[#allocation2 + $0x20] sm:$0xff]
        %v504 = vld [vmem:[#allocation2 + $0x28] sm:$0xff]
        %v505 = vld [vmem:[#allocation2 + $0x30] sm:$0xff]
        %v506 = vld [vmem:[#allocation2 + $0x38] sm:$0xff]
        %v507 = vld [vmem:[#allocation2 + $0x40] sm:$0xff]
        %v508 = vld [vmem:[#allocation2 + $0x48] sm:$0xff]
        %v509 = vld [vmem:[#allocation2 + $0x50] sm:$0xff]
        %v510 = vld [vmem:[#allocation2 + $0x58] sm:$0xff]
        %v511 = vld [vmem:[#allocation2 + $0x60] sm:$0xff]
        %v512 = vld [vmem:[#allocation2 + $0x68] sm:$0xff]
        %v513 = vld [vmem:[#allocation2 + $0x70] sm:$0xff]
        %v514 = vld [vmem:[#allocation2 + $0x78] sm:$0xff]
        %v515 = vld [vmem:[#allocation2 + $0x80] sm:$0xff]
        %v516 = vld [vmem:[#allocation2 + $0x88] sm:$0xff]
        %v517 = vld [vmem:[#allocation2 + $0x90] sm:$0xff]
        %v518 = vld [vmem:[#allocation2 + $0x98] sm:$0xff]
        %v519 = vld [vmem:[#allocation2 + $0xa0] sm:$0xff]
        %v520 = vld [vmem:[#allocation2 + $0xa8] sm:$0xff]
        %v521 = vld [vmem:[#allocation2 + $0xb0] sm:$0xff]
        %v522 = vld [vmem:[#allocation2 + $0xb8] sm:$0xff]
        %v523 = vld [vmem:[#allocation2 + $0xc0] sm:$0xff]
        %v524 = vld [vmem:[#allocation2 + $0xc8] sm:$0xff]
        %v525 = vld [vmem:[#allocation2 + $0xd0] sm:$0xff]
        %v526 = vld [vmem:[#allocation2 + $0xd8] sm:$0xff]
        %v527 = vld [vmem:[#allocation2 + $0xe0] sm:$0xff]
        %v528 = vld [vmem:[#allocation2 + $0xe8] sm:$0xff]
        %v529 = vld [vmem:[#allocation2 + $0xf0] sm:$0xff]
        %v530 = vld [vmem:[#allocation2 + $0xf8] sm:$0xff]
        %v531 = vld [vmem:[%s405] sm:$0xff]
        %v532 = vld [vmem:[%s405 + $0x8] sm:$0xff]
        %v533 = vld [vmem:[%s405 + $0x10] sm:$0xff]
        %v534 = vld [vmem:[%s405 + $0x18] sm:$0xff]
        %v535 = vld [vmem:[%s405 + $0x20] sm:$0xff]
        %v536 = vld [vmem:[%s405 + $0x28] sm:$0xff]
        %v537 = vld [vmem:[%s405 + $0x30] sm:$0xff]
        %v538 = vld [vmem:[%s405 + $0x38] sm:$0xff]
        %v539 = vld [vmem:[%s405 + $0x40] sm:$0xff]
        %v540 = vld [vmem:[%s405 + $0x48] sm:$0xff]
        %v541 = vld [vmem:[%s405 + $0x50] sm:$0xff]
        %v542 = vld [vmem:[%s405 + $0x58] sm:$0xff]
        %v543 = vld [vmem:[%s405 + $0x60] sm:$0xff]
        %v544 = vld [vmem:[%s405 + $0x68] sm:$0xff]
        %v545 = vld [vmem:[%s405 + $0x70] sm:$0xff]
        %v546 = vld [vmem:[%s405 + $0x78] sm:$0xff]
        %v547 = vld [vmem:[%s405 + $0x80] sm:$0xff]
        %v548 = vld [vmem:[%s405 + $0x88] sm:$0xff]
        %v549 = vld [vmem:[%s405 + $0x90] sm:$0xff]
        %v550 = vld [vmem:[%s405 + $0x98] sm:$0xff]
        %v551 = vld [vmem:[%s405 + $0xa0] sm:$0xff]
        %v552 = vld [vmem:[%s405 + $0xa8] sm:$0xff]
        %v553 = vld [vmem:[%s405 + $0xb0] sm:$0xff]
        %v554 = vld [vmem:[%s405 + $0xb8] sm:$0xff]
        %v555 = vld [vmem:[%s405 + $0xc0] sm:$0xff]
        %v556 = vld [vmem:[%s405 + $0xc8] sm:$0xff]
        %v557 = vld [vmem:[%s405 + $0xd0] sm:$0xff]
        %v558 = vld [vmem:[%s405 + $0xd8] sm:$0xff]
        %v559 = vld [vmem:[%s405 + $0xe0] sm:$0xff]
        %v560 = vld [vmem:[%s405 + $0xe8] sm:$0xff]
        %v561 = vld [vmem:[%s405 + $0xf0] sm:$0xff]
        %v562 = vld [vmem:[%s405 + $0xf8] sm:$0xff]
        %v563 = vld [vmem:[%s405 + $0x100] sm:$0xff]
        %v564 = vld [vmem:[%s405 + $0x108] sm:$0xff]
        %v565 = vld [vmem:[%s405 + $0x110] sm:$0xff]
        %v566 = vld [vmem:[%s405 + $0x118] sm:$0xff]
        %v567 = vld [vmem:[%s405 + $0x120] sm:$0xff]
        %v568 = vld [vmem:[%s405 + $0x128] sm:$0xff]
        %v569 = vld [vmem:[%s405 + $0x130] sm:$0xff]
        %v570 = vld [vmem:[%s405 + $0x138] sm:$0xff]
        %v571 = vld [vmem:[%s405 + $0x140] sm:$0xff]
        %v572 = vld [vmem:[%s405 + $0x148] sm:$0xff]
        %v573 = vld [vmem:[%s405 + $0x150] sm:$0xff]
        %v574 = vld [vmem:[%s405 + $0x158] sm:$0xff]
        %v575 = vld [vmem:[%s405 + $0x160] sm:$0xff]
        %v576 = vld [vmem:[%s405 + $0x168] sm:$0xff]
        %v577 = vld [vmem:[%s405 + $0x170] sm:$0xff]
        %v578 = vld [vmem:[%s405 + $0x178] sm:$0xff]
        %v579 = vld [vmem:[%s405 + $0x180] sm:$0xff]
        %v580 = vld [vmem:[%s405 + $0x188] sm:$0xff]
        %v581 = vld [vmem:[%s405 + $0x190] sm:$0xff]
        %v582 = vld [vmem:[%s405 + $0x198] sm:$0xff]
        %v583 = vld [vmem:[%s405 + $0x1a0] sm:$0xff]
        %v584 = vld [vmem:[%s405 + $0x1a8] sm:$0xff]
        %v585 = vld [vmem:[%s405 + $0x1b0] sm:$0xff]
        %v586 = vld [vmem:[%s405 + $0x1b8] sm:$0xff]
        %v587 = vld [vmem:[%s405 + $0x1c0] sm:$0xff]
        %v588 = vld [vmem:[%s405 + $0x1c8] sm:$0xff]
        %v589 = vld [vmem:[%s405 + $0x1d0] sm:$0xff]
        %v590 = vld [vmem:[%s405 + $0x1d8] sm:$0xff]
        %v591 = vld [vmem:[%s405 + $0x1e0] sm:$0xff]
        %v592 = vld [vmem:[%s405 + $0x1e8] sm:$0xff]
        %v593 = vld [vmem:[%s405 + $0x1f0] sm:$0xff]
        %v594 = vld [vmem:[%s405 + $0x1f8] sm:$0xff]
        %v595 = vld [vmem:[%s448] sm:$0xf]
        %v596 = vld [vmem:[%s448 + $0x4] sm:$0xf]
        %v597 = vld [vmem:[%s448 + $0x8] sm:$0xf]
        %v598 = vld [vmem:[%s448 + $0xc] sm:$0xf]
        %v599 = vld [vmem:[%s448 + $0x10] sm:$0xf]
        %v600 = vld [vmem:[%s448 + $0x14] sm:$0xf]
        %v601 = vld [vmem:[%s448 + $0x18] sm:$0xf]
        %v602 = vld [vmem:[%s448 + $0x1c] sm:$0xf]
        %v603 = vld [vmem:[%s448 + $0x20] sm:$0xf]
        %v604 = vld [vmem:[%s448 + $0x24] sm:$0xf]
        %v605 = vld [vmem:[%s448 + $0x28] sm:$0xf]
        %v606 = vld [vmem:[%s448 + $0x2c] sm:$0xf]
        %v607 = vld [vmem:[%s448 + $0x30] sm:$0xf]
        %v608 = vld [vmem:[%s448 + $0x34] sm:$0xf]
        %v609 = vld [vmem:[%s448 + $0x38] sm:$0xf]
        %v610 = vld [vmem:[%s448 + $0x3c] sm:$0xf]
        %v611 = vld [vmem:[%s448 + $0x40] sm:$0xf]
        %v612 = vld [vmem:[%s448 + $0x44] sm:$0xf]
        %v613 = vld [vmem:[%s448 + $0x48] sm:$0xf]
        %v614 = vld [vmem:[%s448 + $0x4c] sm:$0xf]
        %v615 = vld [vmem:[%s448 + $0x50] sm:$0xf]
        %v616 = vld [vmem:[%s448 + $0x54] sm:$0xf]
        %v617 = vld [vmem:[%s448 + $0x58] sm:$0xf]
        %v618 = vld [vmem:[%s448 + $0x5c] sm:$0xf]
        %v619 = vld [vmem:[%s448 + $0x60] sm:$0xf]
        %v620 = vld [vmem:[%s448 + $0x64] sm:$0xf]
        %v621 = vld [vmem:[%s448 + $0x68] sm:$0xf]
        %v622 = vld [vmem:[%s448 + $0x6c] sm:$0xf]
        %v623 = vld [vmem:[%s448 + $0x70] sm:$0xf]
        %v624 = vld [vmem:[%s448 + $0x74] sm:$0xf]
        %v625 = vld [vmem:[%s448 + $0x78] sm:$0xf]
        %v626 = vld [vmem:[%s448 + $0x7c] sm:$0xf]
        %v627 = vld [vmem:[%s448 + $0x80] sm:$0xf]
        %v628 = vld [vmem:[%s448 + $0x84] sm:$0xf]
        %v629 = vld [vmem:[%s448 + $0x88] sm:$0xf]
        %v630 = vld [vmem:[%s448 + $0x8c] sm:$0xf]
        %v631 = vld [vmem:[%s448 + $0x90] sm:$0xf]
        %v632 = vld [vmem:[%s448 + $0x94] sm:$0xf]
        %v633 = vld [vmem:[%s448 + $0x98] sm:$0xf]
        %v634 = vld [vmem:[%s448 + $0x9c] sm:$0xf]
        %v635 = vld [vmem:[%s448 + $0xa0] sm:$0xf]
        %v636 = vld [vmem:[%s448 + $0xa4] sm:$0xf]
        %v637 = vld [vmem:[%s448 + $0xa8] sm:$0xf]
        %v638 = vld [vmem:[%s448 + $0xac] sm:$0xf]
        %v639 = vld [vmem:[%s448 + $0xb0] sm:$0xf]
        %v640 = vld [vmem:[%s448 + $0xb4] sm:$0xf]
        %v641 = vld [vmem:[%s448 + $0xb8] sm:$0xf]
        %v642 = vld [vmem:[%s448 + $0xbc] sm:$0xf]
        %v643 = vld [vmem:[%s448 + $0xc0] sm:$0xf]
        %v644 = vld [vmem:[%s448 + $0xc4] sm:$0xf]
        %v645 = vld [vmem:[%s448 + $0xc8] sm:$0xf]
        %v646 = vld [vmem:[%s448 + $0xcc] sm:$0xf]
        %v647 = vld [vmem:[%s448 + $0xd0] sm:$0xf]
        %v648 = vld [vmem:[%s448 + $0xd4] sm:$0xf]
        %v649 = vld [vmem:[%s448 + $0xd8] sm:$0xf]
        %v650 = vld [vmem:[%s448 + $0xdc] sm:$0xf]
        %v651 = vld [vmem:[%s448 + $0xe0] sm:$0xf]
        %v652 = vld [vmem:[%s448 + $0xe4] sm:$0xf]
        %v653 = vld [vmem:[%s448 + $0xe8] sm:$0xf]
        %v654 = vld [vmem:[%s448 + $0xec] sm:$0xf]
        %v655 = vld [vmem:[%s448 + $0xf0] sm:$0xf]
        %v656 = vld [vmem:[%s448 + $0xf4] sm:$0xf]
        %v657 = vld [vmem:[%s448 + $0xf8] sm:$0xf]
        %v658 = vld [vmem:[%s448 + $0xfc] sm:$0xf]
        %v723 = vunpack.c.l.b16 %v531
        %v724 = vunpack.c.h.b16 %v531
        %v725 = vunpack.c.l.b16 %v532
        %v726 = vunpack.c.h.b16 %v532
        %v727 = vunpack.c.l.b16 %v533
        %v728 = vunpack.c.h.b16 %v533
        %v729 = vunpack.c.l.b16 %v534
        %v730 = vunpack.c.h.b16 %v534
        %v731 = vunpack.c.l.b16 %v535
        %v732 = vunpack.c.h.b16 %v535
        %v733 = vunpack.c.l.b16 %v536
        %v734 = vunpack.c.h.b16 %v536
        %v735 = vunpack.c.l.b16 %v537
        %v736 = vunpack.c.h.b16 %v537
        %v737 = vunpack.c.l.b16 %v538
        %v738 = vunpack.c.h.b16 %v538
        %v739 = vunpack.c.l.b16 %v539
        %v740 = vunpack.c.h.b16 %v539
        %v741 = vunpack.c.l.b16 %v540
        %v742 = vunpack.c.h.b16 %v540
        %v743 = vunpack.c.l.b16 %v541
        %v744 = vunpack.c.h.b16 %v541
        %v745 = vunpack.c.l.b16 %v542
        %v746 = vunpack.c.h.b16 %v542
        %v747 = vunpack.c.l.b16 %v543
        %v748 = vunpack.c.h.b16 %v543
        %v749 = vunpack.c.l.b16 %v544
        %v750 = vunpack.c.h.b16 %v544
        %v751 = vunpack.c.l.b16 %v545
        %v752 = vunpack.c.h.b16 %v545
        %v753 = vunpack.c.l.b16 %v546
        %v754 = vunpack.c.h.b16 %v546
        %v755 = vunpack.c.l.b16 %v547
        %v756 = vunpack.c.h.b16 %v547
        %v757 = vunpack.c.l.b16 %v548
        %v758 = vunpack.c.h.b16 %v548
        %v759 = vunpack.c.l.b16 %v549
        %v760 = vunpack.c.h.b16 %v549
        %v761 = vunpack.c.l.b16 %v550
        %v762 = vunpack.c.h.b16 %v550
        %v763 = vunpack.c.l.b16 %v551
        %v764 = vunpack.c.h.b16 %v551
        %v765 = vunpack.c.l.b16 %v552
        %v766 = vunpack.c.h.b16 %v552
        %v767 = vunpack.c.l.b16 %v553
        %v768 = vunpack.c.h.b16 %v553
        %v769 = vunpack.c.l.b16 %v554
        %v770 = vunpack.c.h.b16 %v554
        %v771 = vunpack.c.l.b16 %v555
        %v772 = vunpack.c.h.b16 %v555
        %v773 = vunpack.c.l.b16 %v556
        %v774 = vunpack.c.h.b16 %v556
        %v775 = vunpack.c.l.b16 %v557
        %v776 = vunpack.c.h.b16 %v557
        %v777 = vunpack.c.l.b16 %v558
        %v778 = vunpack.c.h.b16 %v558
        %v779 = vunpack.c.l.b16 %v559
        %v780 = vunpack.c.h.b16 %v559
        %v781 = vunpack.c.l.b16 %v560
        %v782 = vunpack.c.h.b16 %v560
        %v783 = vunpack.c.l.b16 %v561
        %v784 = vunpack.c.h.b16 %v561
        %v785 = vunpack.c.l.b16 %v562
        %v786 = vunpack.c.h.b16 %v562
        %v787 = vunpack.c.l.b16 %v563
        %v788 = vunpack.c.h.b16 %v563
        %v789 = vunpack.c.l.b16 %v564
        %v790 = vunpack.c.h.b16 %v564
        %v791 = vunpack.c.l.b16 %v565
        %v792 = vunpack.c.h.b16 %v565
        %v793 = vunpack.c.l.b16 %v566
        %v794 = vunpack.c.h.b16 %v566
        %v795 = vunpack.c.l.b16 %v567
        %v796 = vunpack.c.h.b16 %v567
        %v797 = vunpack.c.l.b16 %v568
        %v798 = vunpack.c.h.b16 %v568
        %v799 = vunpack.c.l.b16 %v569
        %v800 = vunpack.c.h.b16 %v569
        %v801 = vunpack.c.l.b16 %v570
        %v802 = vunpack.c.h.b16 %v570
        %v803 = vunpack.c.l.b16 %v571
        %v804 = vunpack.c.h.b16 %v571
        %v805 = vunpack.c.l.b16 %v572
        %v806 = vunpack.c.h.b16 %v572
        %v807 = vunpack.c.l.b16 %v573
        %v808 = vunpack.c.h.b16 %v573
        %v809 = vunpack.c.l.b16 %v574
        %v810 = vunpack.c.h.b16 %v574
        %v811 = vunpack.c.l.b16 %v575
        %v812 = vunpack.c.h.b16 %v575
        %v813 = vunpack.c.l.b16 %v576
        %v814 = vunpack.c.h.b16 %v576
        %v815 = vunpack.c.l.b16 %v577
        %v816 = vunpack.c.h.b16 %v577
        %v817 = vunpack.c.l.b16 %v578
        %v818 = vunpack.c.h.b16 %v578
        %v819 = vunpack.c.l.b16 %v579
        %v820 = vunpack.c.h.b16 %v579
        %v821 = vunpack.c.l.b16 %v580
        %v822 = vunpack.c.h.b16 %v580
        %v823 = vunpack.c.l.b16 %v581
        %v824 = vunpack.c.h.b16 %v581
        %v825 = vunpack.c.l.b16 %v582
        %v826 = vunpack.c.h.b16 %v582
        %v827 = vunpack.c.l.b16 %v583
        %v828 = vunpack.c.h.b16 %v583
        %v829 = vunpack.c.l.b16 %v584
        %v830 = vunpack.c.h.b16 %v584
        %v831 = vunpack.c.l.b16 %v585
        %v832 = vunpack.c.h.b16 %v585
        %v833 = vunpack.c.l.b16 %v586
        %v834 = vunpack.c.h.b16 %v586
        %v835 = vunpack.c.l.b16 %v587
        %v836 = vunpack.c.h.b16 %v587
        %v837 = vunpack.c.l.b16 %v588
        %v838 = vunpack.c.h.b16 %v588
        %v839 = vunpack.c.l.b16 %v589
        %v840 = vunpack.c.h.b16 %v589
        %v841 = vunpack.c.l.b16 %v590
        %v842 = vunpack.c.h.b16 %v590
        %v843 = vunpack.c.l.b16 %v591
        %v844 = vunpack.c.h.b16 %v591
        %v845 = vunpack.c.l.b16 %v592
        %v846 = vunpack.c.h.b16 %v592
        %v847 = vunpack.c.l.b16 %v593
        %v848 = vunpack.c.h.b16 %v593
        %v849 = vunpack.c.l.b16 %v594
        %v850 = vunpack.c.h.b16 %v594
        %v851 = vpack.c.b16 %v727, %v723
        %v852 = vpack.c.b16 %v728, %v724
        %v853 = vpack.c.b16 %v729, %v725
        %v854 = vpack.c.b16 %v730, %v726
        %v855 = vpack.c.b16 %v735, %v731
        %v856 = vpack.c.b16 %v736, %v732
        %v857 = vpack.c.b16 %v737, %v733
        %v858 = vpack.c.b16 %v738, %v734
        %v859 = vpack.c.b16 %v743, %v739
        %v860 = vpack.c.b16 %v744, %v740
        %v861 = vpack.c.b16 %v745, %v741
        %v862 = vpack.c.b16 %v746, %v742
        %v863 = vpack.c.b16 %v751, %v747
        %v864 = vpack.c.b16 %v752, %v748
        %v865 = vpack.c.b16 %v753, %v749
        %v866 = vpack.c.b16 %v754, %v750
        %v867 = vpack.c.b16 %v759, %v755
        %v868 = vpack.c.b16 %v760, %v756
        %v869 = vpack.c.b16 %v761, %v757
        %v870 = vpack.c.b16 %v762, %v758
        %v871 = vpack.c.b16 %v767, %v763
        %v872 = vpack.c.b16 %v768, %v764
        %v873 = vpack.c.b16 %v769, %v765
        %v874 = vpack.c.b16 %v770, %v766
        %v875 = vpack.c.b16 %v775, %v771
        %v876 = vpack.c.b16 %v776, %v772
        %v877 = vpack.c.b16 %v777, %v773
        %v878 = vpack.c.b16 %v778, %v774
        %v879 = vpack.c.b16 %v783, %v779
        %v880 = vpack.c.b16 %v784, %v780
        %v881 = vpack.c.b16 %v785, %v781
        %v882 = vpack.c.b16 %v786, %v782
        %v883 = vpack.c.b16 %v791, %v787
        %v884 = vpack.c.b16 %v792, %v788
        %v885 = vpack.c.b16 %v793, %v789
        %v886 = vpack.c.b16 %v794, %v790
        %v887 = vpack.c.b16 %v799, %v795
        %v888 = vpack.c.b16 %v800, %v796
        %v889 = vpack.c.b16 %v801, %v797
        %v890 = vpack.c.b16 %v802, %v798
        %v891 = vpack.c.b16 %v807, %v803
        %v892 = vpack.c.b16 %v808, %v804
        %v893 = vpack.c.b16 %v809, %v805
        %v894 = vpack.c.b16 %v810, %v806
        %v895 = vpack.c.b16 %v815, %v811
        %v896 = vpack.c.b16 %v816, %v812
        %v897 = vpack.c.b16 %v817, %v813
        %v898 = vpack.c.b16 %v818, %v814
        %v899 = vpack.c.b16 %v823, %v819
        %v900 = vpack.c.b16 %v824, %v820
        %v901 = vpack.c.b16 %v825, %v821
        %v902 = vpack.c.b16 %v826, %v822
        %v903 = vpack.c.b16 %v831, %v827
        %v904 = vpack.c.b16 %v832, %v828
        %v905 = vpack.c.b16 %v833, %v829
        %v906 = vpack.c.b16 %v834, %v830
        %v907 = vpack.c.b16 %v839, %v835
        %v908 = vpack.c.b16 %v840, %v836
        %v909 = vpack.c.b16 %v841, %v837
        %v910 = vpack.c.b16 %v842, %v838
        %v911 = vpack.c.b16 %v847, %v843
        %v912 = vpack.c.b16 %v848, %v844
        %v913 = vpack.c.b16 %v849, %v845
        %v914 = vpack.c.b16 %v850, %v846
        %v1043 = vunpack.c.l.b16 %v595
        %v1044 = vunpack.c.l.b16 %v596
        %v1045 = vunpack.c.l.b16 %v597
        %v1046 = vunpack.c.l.b16 %v598
        %v1047 = vunpack.c.l.b16 %v599
        %v1048 = vunpack.c.l.b16 %v600
        %v1049 = vunpack.c.l.b16 %v601
        %v1050 = vunpack.c.l.b16 %v602
        %v1051 = vunpack.c.l.b16 %v603
        %v1052 = vunpack.c.l.b16 %v604
        %v1053 = vunpack.c.l.b16 %v605
        %v1054 = vunpack.c.l.b16 %v606
        %v1055 = vunpack.c.l.b16 %v607
        %v1056 = vunpack.c.l.b16 %v608
        %v1057 = vunpack.c.l.b16 %v609
        %v1058 = vunpack.c.l.b16 %v610
        %v1059 = vunpack.c.l.b16 %v611
        %v1060 = vunpack.c.l.b16 %v612
        %v1061 = vunpack.c.l.b16 %v613
        %v1062 = vunpack.c.l.b16 %v614
        %v1063 = vunpack.c.l.b16 %v615
        %v1064 = vunpack.c.l.b16 %v616
        %v1065 = vunpack.c.l.b16 %v617
        %v1066 = vunpack.c.l.b16 %v618
        %v1067 = vunpack.c.l.b16 %v619
        %v1068 = vunpack.c.l.b16 %v620
        %v1069 = vunpack.c.l.b16 %v621
        %v1070 = vunpack.c.l.b16 %v622
        %v1071 = vunpack.c.l.b16 %v623
        %v1072 = vunpack.c.l.b16 %v624
        %v1073 = vunpack.c.l.b16 %v625
        %v1074 = vunpack.c.l.b16 %v626
        %v1075 = vunpack.c.l.b16 %v627
        %v1076 = vunpack.c.l.b16 %v628
        %v1077 = vunpack.c.l.b16 %v629
        %v1078 = vunpack.c.l.b16 %v630
        %v1079 = vunpack.c.l.b16 %v631
        %v1080 = vunpack.c.l.b16 %v632
        %v1081 = vunpack.c.l.b16 %v633
        %v1082 = vunpack.c.l.b16 %v634
        %v1083 = vunpack.c.l.b16 %v635
        %v1084 = vunpack.c.l.b16 %v636
        %v1085 = vunpack.c.l.b16 %v637
        %v1086 = vunpack.c.l.b16 %v638
        %v1087 = vunpack.c.l.b16 %v639
        %v1088 = vunpack.c.l.b16 %v640
        %v1089 = vunpack.c.l.b16 %v641
        %v1090 = vunpack.c.l.b16 %v642
        %v1091 = vunpack.c.l.b16 %v643
        %v1092 = vunpack.c.l.b16 %v644
        %v1093 = vunpack.c.l.b16 %v645
        %v1094 = vunpack.c.l.b16 %v646
        %v1095 = vunpack.c.l.b16 %v647
        %v1096 = vunpack.c.l.b16 %v648
        %v1097 = vunpack.c.l.b16 %v649
        %v1098 = vunpack.c.l.b16 %v650
        %v1099 = vunpack.c.l.b16 %v651
        %v1100 = vunpack.c.l.b16 %v652
        %v1101 = vunpack.c.l.b16 %v653
        %v1102 = vunpack.c.l.b16 %v654
        %v1103 = vunpack.c.l.b16 %v655
        %v1104 = vunpack.c.l.b16 %v656
        %v1105 = vunpack.c.l.b16 %v657
        %v1106 = vunpack.c.l.b16 %v658
        %v1107 = vpack.c.b16 %v1044, %v1043
        %v1108 = vpack.c.b16 %v1046, %v1045
        %v1109 = vpack.c.b16 %v1048, %v1047
        %v1110 = vpack.c.b16 %v1050, %v1049
        %v1111 = vpack.c.b16 %v1052, %v1051
        %v1112 = vpack.c.b16 %v1054, %v1053
        %v1113 = vpack.c.b16 %v1056, %v1055
        %v1114 = vpack.c.b16 %v1058, %v1057
        %v1115 = vpack.c.b16 %v1060, %v1059
        %v1116 = vpack.c.b16 %v1062, %v1061
        %v1117 = vpack.c.b16 %v1064, %v1063
        %v1118 = vpack.c.b16 %v1066, %v1065
        %v1119 = vpack.c.b16 %v1068, %v1067
        %v1120 = vpack.c.b16 %v1070, %v1069
        %v1121 = vpack.c.b16 %v1072, %v1071
        %v1122 = vpack.c.b16 %v1074, %v1073
        %v1123 = vpack.c.b16 %v1076, %v1075
        %v1124 = vpack.c.b16 %v1078, %v1077
        %v1125 = vpack.c.b16 %v1080, %v1079
        %v1126 = vpack.c.b16 %v1082, %v1081
        %v1127 = vpack.c.b16 %v1084, %v1083
        %v1128 = vpack.c.b16 %v1086, %v1085
        %v1129 = vpack.c.b16 %v1088, %v1087
        %v1130 = vpack.c.b16 %v1090, %v1089
        %v1131 = vpack.c.b16 %v1092, %v1091
        %v1132 = vpack.c.b16 %v1094, %v1093
        %v1133 = vpack.c.b16 %v1096, %v1095
        %v1134 = vpack.c.b16 %v1098, %v1097
        %v1135 = vpack.c.b16 %v1100, %v1099
        %v1136 = vpack.c.b16 %v1102, %v1101
        %v1137 = vpack.c.b16 %v1104, %v1103
        %v1138 = vpack.c.b16 %v1106, %v1105
        %1171 = vmatprep.subr.bf16.mxu0 0
        %1172 = vmatpush1.bf16.msra.mxu0 %v1107
        %1173 = vmatprep.subr.bf16.mxu0 0
        %1174 = vmatpush1.bf16.msra.mxu0 %v1108
        %1175 = vmatprep.subr.bf16.mxu0 0
        %1176 = vmatpush1.bf16.msra.mxu0 %v1109
        %1177 = vmatprep.subr.bf16.mxu0 0
        %1178 = vmatpush1.bf16.msra.mxu0 %v1110
        %1179 = vmatprep.subr.bf16.mxu0 0
        %1180 = vmatpush1.bf16.msra.mxu0 %v1111
        %1181 = vmatprep.subr.bf16.mxu0 0
        %1182 = vmatpush1.bf16.msra.mxu0 %v1112
        %1183 = vmatprep.subr.bf16.mxu0 0
        %1184 = vmatpush1.bf16.msra.mxu0 %v1113
        %1185 = vmatprep.subr.bf16.mxu0 0
        %1186 = vmatpush1.bf16.msra.mxu0 %v1114
        %1187 = vmatprep.subr.bf16.mxu0 0
        %1188 = vmatpush1.bf16.msra.mxu0 %v1115
        %1189 = vmatprep.subr.bf16.mxu0 0
        %1190 = vmatpush1.bf16.msra.mxu0 %v1116
        %1191 = vmatprep.subr.bf16.mxu0 0
        %1192 = vmatpush1.bf16.msra.mxu0 %v1117
        %1193 = vmatprep.subr.bf16.mxu0 0
        %1194 = vmatpush1.bf16.msra.mxu0 %v1118
        %1195 = vmatprep.subr.bf16.mxu0 0
        %1196 = vmatpush1.bf16.msra.mxu0 %v1119
        %1197 = vmatprep.subr.bf16.mxu0 0
        %1198 = vmatpush1.bf16.msra.mxu0 %v1120
        %1199 = vmatprep.subr.bf16.mxu0 0
        %1200 = vmatpush1.bf16.msra.mxu0 %v1121
        %1201 = vmatprep.subr.bf16.mxu0 0
        %1202 = vmatpush1.bf16.msra.mxu0 %v1122
        %1203 = vmatprep.mubr.bf16.mxu0 %v852
        %1204 = vmatmul.mubr.bf16.gmra.mrb[0].mxu0 %v851
        %v1205 = vpop.f32.mrb[0].mxu0
        %v1206 = vadd.f32 0.0, %v1205
        %v1207 = vpop.f32.mrb[0].mxu0
        %v1208 = vpop.f32.mrb[0].mxu0
        %v1209 = vadd.f32 0.0, %v1208
        %v1210 = vpop.f32.mrb[0].mxu0
        %1211 = vmatprep.mubr.bf16.mxu0 %v856
        %1212 = vmatmul.mubr.bf16.gmra.mrb[0].mxu0 %v855
        %v1213 = vpop.f32.mrb[0].mxu0
        %v1214 = vadd.f32 0.0, %v1213
        %v1215 = vpop.f32.mrb[0].mxu0
        %v1216 = vpop.f32.mrb[0].mxu0
        %v1217 = vadd.f32 0.0, %v1216
        %v1218 = vpop.f32.mrb[0].mxu0
        %1219 = vmatprep.mubr.bf16.mxu0 %v860
        %1220 = vmatmul.mubr.bf16.gmra.mrb[0].mxu0 %v859
        %v1221 = vpop.f32.mrb[0].mxu0
        %v1222 = vadd.f32 0.0, %v1221
        %v1223 = vpop.f32.mrb[0].mxu0
        %v1224 = vpop.f32.mrb[0].mxu0
        %v1225 = vadd.f32 0.0, %v1224
        %v1226 = vpop.f32.mrb[0].mxu0
        %1227 = vmatprep.mubr.bf16.mxu0 %v864
        %1228 = vmatmul.mubr.bf16.gmra.mrb[0].mxu0 %v863
        %v1229 = vpop.f32.mrb[0].mxu0
        %v1230 = vadd.f32 0.0, %v1229
        %v1231 = vpop.f32.mrb[0].mxu0
        %v1232 = vpop.f32.mrb[0].mxu0
        %v1233 = vadd.f32 0.0, %v1232
        %v1234 = vpop.f32.mrb[0].mxu0
        %1235 = vmatprep.mubr.bf16.mxu0 %v868
        %1236 = vmatmul.mubr.bf16.gmra.mrb[0].mxu0 %v867
        %v1237 = vpop.f32.mrb[0].mxu0
        %v1238 = vadd.f32 0.0, %v1237
        %v1239 = vpop.f32.mrb[0].mxu0
        %v1240 = vpop.f32.mrb[0].mxu0
        %v1241 = vadd.f32 0.0, %v1240
        %v1242 = vpop.f32.mrb[0].mxu0
        %1243 = vmatprep.mubr.bf16.mxu0 %v872
        %1244 = vmatmul.mubr.bf16.gmra.mrb[0].mxu0 %v871
        %v1245 = vpop.f32.mrb[0].mxu0
        %v1246 = vadd.f32 0.0, %v1245
        %v1247 = vpop.f32.mrb[0].mxu0
        %v1248 = vpop.f32.mrb[0].mxu0
        %v1249 = vadd.f32 0.0, %v1248
        %v1250 = vpop.f32.mrb[0].mxu0
        %1251 = vmatprep.mubr.bf16.mxu0 %v876
        %1252 = vmatmul.mubr.bf16.gmra.mrb[0].mxu0 %v875
        %v1253 = vpop.f32.mrb[0].mxu0
        %v1254 = vadd.f32 0.0, %v1253
        %v1255 = vpop.f32.mrb[0].mxu0
        %v1256 = vpop.f32.mrb[0].mxu0
        %v1257 = vadd.f32 0.0, %v1256
        %v1258 = vpop.f32.mrb[0].mxu0
        %1259 = vmatprep.mubr.bf16.mxu0 %v880
        %1260 = vmatmul.mubr.bf16.gmra.mrb[0].mxu0 %v879
        %v1261 = vpop.f32.mrb[0].mxu0
        %v1262 = vadd.f32 0.0, %v1261
        %v1263 = vpop.f32.mrb[0].mxu0
        %v1264 = vpop.f32.mrb[0].mxu0
        %v1265 = vadd.f32 0.0, %v1264
        %v1266 = vpop.f32.mrb[0].mxu0
        %1267 = vmatprep.mubr.bf16.mxu0 %v884
        %1268 = vmatmul.mubr.bf16.gmra.mrb[0].mxu0 %v883
        %v1269 = vpop.f32.mrb[0].mxu0
        %v1270 = vadd.f32 0.0, %v1269
        %v1271 = vpop.f32.mrb[0].mxu0
        %v1272 = vpop.f32.mrb[0].mxu0
        %v1273 = vadd.f32 0.0, %v1272
        %v1274 = vpop.f32.mrb[0].mxu0
        %1275 = vmatprep.mubr.bf16.mxu0 %v888
        %1276 = vmatmul.mubr.bf16.gmra.mrb[0].mxu0 %v887
        %v1277 = vpop.f32.mrb[0].mxu0
        %v1278 = vadd.f32 0.0, %v1277
        %v1279 = vpop.f32.mrb[0].mxu0
        %v1280 = vpop.f32.mrb[0].mxu0
        %v1281 = vadd.f32 0.0, %v1280
        %v1282 = vpop.f32.mrb[0].mxu0
        %1283 = vmatprep.mubr.bf16.mxu0 %v892
        %1284 = vmatmul.mubr.bf16.gmra.mrb[0].mxu0 %v891
        %v1285 = vpop.f32.mrb[0].mxu0
        %v1286 = vadd.f32 0.0, %v1285
        %v1287 = vpop.f32.mrb[0].mxu0
        %v1288 = vpop.f32.mrb[0].mxu0
        %v1289 = vadd.f32 0.0, %v1288
        %v1290 = vpop.f32.mrb[0].mxu0
        %1291 = vmatprep.mubr.bf16.mxu0 %v896
        %1292 = vmatmul.mubr.bf16.gmra.mrb[0].mxu0 %v895
        %v1293 = vpop.f32.mrb[0].mxu0
        %v1294 = vadd.f32 0.0, %v1293
        %v1295 = vpop.f32.mrb[0].mxu0
        %v1296 = vpop.f32.mrb[0].mxu0
        %v1297 = vadd.f32 0.0, %v1296
        %v1298 = vpop.f32.mrb[0].mxu0
        %1299 = vmatprep.mubr.bf16.mxu0 %v900
        %1300 = vmatmul.mubr.bf16.gmra.mrb[0].mxu0 %v899
        %v1301 = vpop.f32.mrb[0].mxu0
        %v1302 = vadd.f32 0.0, %v1301
        %v1303 = vpop.f32.mrb[0].mxu0
        %v1304 = vpop.f32.mrb[0].mxu0
        %v1305 = vadd.f32 0.0, %v1304
        %v1306 = vpop.f32.mrb[0].mxu0
        %1307 = vmatprep.mubr.bf16.mxu0 %v904
        %1308 = vmatmul.mubr.bf16.gmra.mrb[0].mxu0 %v903
        %v1309 = vpop.f32.mrb[0].mxu0
        %v1310 = vadd.f32 0.0, %v1309
        %v1311 = vpop.f32.mrb[0].mxu0
        %v1312 = vpop.f32.mrb[0].mxu0
        %v1313 = vadd.f32 0.0, %v1312
        %v1314 = vpop.f32.mrb[0].mxu0
        %1315 = vmatprep.mubr.bf16.mxu0 %v908
        %1316 = vmatmul.mubr.bf16.gmra.mrb[0].mxu0 %v907
        %v1317 = vpop.f32.mrb[0].mxu0
        %v1318 = vadd.f32 0.0, %v1317
        %v1319 = vpop.f32.mrb[0].mxu0
        %v1320 = vpop.f32.mrb[0].mxu0
        %v1321 = vadd.f32 0.0, %v1320
        %v1322 = vpop.f32.mrb[0].mxu0
        %1323 = vmatprep.mubr.bf16.mxu0 %v912
        %1324 = vmatmul.mubr.bf16.gmra.mrb[0].mxu0 %v911
        %v1325 = vpop.f32.mrb[0].mxu0
        %v1326 = vadd.f32 0.0, %v1325
        %v1327 = vpop.f32.mrb[0].mxu0
        %v1328 = vpop.f32.mrb[0].mxu0
        %v1329 = vadd.f32 0.0, %v1328
        %v1330 = vpop.f32.mrb[0].mxu0
        %1331 = vdwg.mxu0
        %1332 = vmatprep.subr.bf16.mxu0 0
        %1333 = vmatpush1.bf16.msra.mxu0 %v1123
        %1334 = vmatprep.subr.bf16.mxu0 0
        %1335 = vmatpush1.bf16.msra.mxu0 %v1124
        %1336 = vmatprep.subr.bf16.mxu0 0
        %1337 = vmatpush1.bf16.msra.mxu0 %v1125
        %1338 = vmatprep.subr.bf16.mxu0 0
        %1339 = vmatpush1.bf16.msra.mxu0 %v1126
        %1340 = vmatprep.subr.bf16.mxu0 0
        %1341 = vmatpush1.bf16.msra.mxu0 %v1127
        %1342 = vmatprep.subr.bf16.mxu0 0
        %1343 = vmatpush1.bf16.msra.mxu0 %v1128
        %1344 = vmatprep.subr.bf16.mxu0 0
        %1345 = vmatpush1.bf16.msra.mxu0 %v1129
        %1346 = vmatprep.subr.bf16.mxu0 0
        %1347 = vmatpush1.bf16.msra.mxu0 %v1130
        %1348 = vmatprep.subr.bf16.mxu0 0
        %1349 = vmatpush1.bf16.msra.mxu0 %v1131
        %1350 = vmatprep.subr.bf16.mxu0 0
        %1351 = vmatpush1.bf16.msra.mxu0 %v1132
        %1352 = vmatprep.subr.bf16.mxu0 0
        %1353 = vmatpush1.bf16.msra.mxu0 %v1133
        %1354 = vmatprep.subr.bf16.mxu0 0
        %1355 = vmatpush1.bf16.msra.mxu0 %v1134
        %1356 = vmatprep.subr.bf16.mxu0 0
        %1357 = vmatpush1.bf16.msra.mxu0 %v1135
        %1358 = vmatprep.subr.bf16.mxu0 0
        %1359 = vmatpush1.bf16.msra.mxu0 %v1136
        %1360 = vmatprep.subr.bf16.mxu0 0
        %1361 = vmatpush1.bf16.msra.mxu0 %v1137
        %1362 = vmatprep.subr.bf16.mxu0 0
        %1363 = vmatpush1.bf16.msra.mxu0 %v1138
        %1364 = vmatprep.mubr.bf16.mxu0 %v854
        %1365 = vmatmul.mubr.bf16.gmra.mrb[0].mxu0 %v853
        %v1366 = vpop.f32.mrb[0].mxu0
        %v1367 = vadd.f32 %v1206, %v1366
        %v1368 = vpop.f32.mrb[0].mxu0
        %v1369 = vpop.f32.mrb[0].mxu0
        %v1370 = vadd.f32 %v1209, %v1369
        %v1371 = vpop.f32.mrb[0].mxu0
        %1372 = vmatprep.mubr.bf16.mxu0 %v858
        %1373 = vmatmul.mubr.bf16.gmra.mrb[0].mxu0 %v857
        %v1374 = vpop.f32.mrb[0].mxu0
        %v1375 = vadd.f32 %v1214, %v1374
        %v1376 = vpop.f32.mrb[0].mxu0
        %v1377 = vpop.f32.mrb[0].mxu0
        %v1378 = vadd.f32 %v1217, %v1377
        %v1379 = vpop.f32.mrb[0].mxu0
        %1380 = vmatprep.mubr.bf16.mxu0 %v862
        %1381 = vmatmul.mubr.bf16.gmra.mrb[0].mxu0 %v861
        %v1382 = vpop.f32.mrb[0].mxu0
        %v1383 = vadd.f32 %v1222, %v1382
        %v1384 = vpop.f32.mrb[0].mxu0
        %v1385 = vpop.f32.mrb[0].mxu0
        %v1386 = vadd.f32 %v1225, %v1385
        %v1387 = vpop.f32.mrb[0].mxu0
        %1388 = vmatprep.mubr.bf16.mxu0 %v866
        %1389 = vmatmul.mubr.bf16.gmra.mrb[0].mxu0 %v865
        %v1390 = vpop.f32.mrb[0].mxu0
        %v1391 = vadd.f32 %v1230, %v1390
        %v1392 = vpop.f32.mrb[0].mxu0
        %v1393 = vpop.f32.mrb[0].mxu0
        %v1394 = vadd.f32 %v1233, %v1393
        %v1395 = vpop.f32.mrb[0].mxu0
        %1396 = vmatprep.mubr.bf16.mxu0 %v870
        %1397 = vmatmul.mubr.bf16.gmra.mrb[0].mxu0 %v869
        %v1398 = vpop.f32.mrb[0].mxu0
        %v1399 = vadd.f32 %v1238, %v1398
        %v1400 = vpop.f32.mrb[0].mxu0
        %v1401 = vpop.f32.mrb[0].mxu0
        %v1402 = vadd.f32 %v1241, %v1401
        %v1403 = vpop.f32.mrb[0].mxu0
        %1404 = vmatprep.mubr.bf16.mxu0 %v874
        %1405 = vmatmul.mubr.bf16.gmra.mrb[0].mxu0 %v873
        %v1406 = vpop.f32.mrb[0].mxu0
        %v1407 = vadd.f32 %v1246, %v1406
        %v1408 = vpop.f32.mrb[0].mxu0
        %v1409 = vpop.f32.mrb[0].mxu0
        %v1410 = vadd.f32 %v1249, %v1409
        %v1411 = vpop.f32.mrb[0].mxu0
        %1412 = vmatprep.mubr.bf16.mxu0 %v878
        %1413 = vmatmul.mubr.bf16.gmra.mrb[0].mxu0 %v877
        %v1414 = vpop.f32.mrb[0].mxu0
        %v1415 = vadd.f32 %v1254, %v1414
        %v1416 = vpop.f32.mrb[0].mxu0
        %v1417 = vpop.f32.mrb[0].mxu0
        %v1418 = vadd.f32 %v1257, %v1417
        %v1419 = vpop.f32.mrb[0].mxu0
        %1420 = vmatprep.mubr.bf16.mxu0 %v882
        %1421 = vmatmul.mubr.bf16.gmra.mrb[0].mxu0 %v881
        %v1422 = vpop.f32.mrb[0].mxu0
        %v1423 = vadd.f32 %v1262, %v1422
        %v1424 = vpop.f32.mrb[0].mxu0
        %v1425 = vpop.f32.mrb[0].mxu0
        %v1426 = vadd.f32 %v1265, %v1425
        %v1427 = vpop.f32.mrb[0].mxu0
        %1428 = vmatprep.mubr.bf16.mxu0 %v886
        %1429 = vmatmul.mubr.bf16.gmra.mrb[0].mxu0 %v885
        %v1430 = vpop.f32.mrb[0].mxu0
        %v1431 = vadd.f32 %v1270, %v1430
        %v1432 = vpop.f32.mrb[0].mxu0
        %v1433 = vpop.f32.mrb[0].mxu0
        %v1434 = vadd.f32 %v1273, %v1433
        %v1435 = vpop.f32.mrb[0].mxu0
        %1436 = vmatprep.mubr.bf16.mxu0 %v890
        %1437 = vmatmul.mubr.bf16.gmra.mrb[0].mxu0 %v889
        %v1438 = vpop.f32.mrb[0].mxu0
        %v1439 = vadd.f32 %v1278, %v1438
        %v1440 = vpop.f32.mrb[0].mxu0
        %v1441 = vpop.f32.mrb[0].mxu0
        %v1442 = vadd.f32 %v1281, %v1441
        %v1443 = vpop.f32.mrb[0].mxu0
        %1444 = vmatprep.mubr.bf16.mxu0 %v894
        %1445 = vmatmul.mubr.bf16.gmra.mrb[0].mxu0 %v893
        %v1446 = vpop.f32.mrb[0].mxu0
        %v1447 = vadd.f32 %v1286, %v1446
        %v1448 = vpop.f32.mrb[0].mxu0
        %v1449 = vpop.f32.mrb[0].mxu0
        %v1450 = vadd.f32 %v1289, %v1449
        %v1451 = vpop.f32.mrb[0].mxu0
        %1452 = vmatprep.mubr.bf16.mxu0 %v898
        %1453 = vmatmul.mubr.bf16.gmra.mrb[0].mxu0 %v897
        %v1454 = vpop.f32.mrb[0].mxu0
        %v1455 = vadd.f32 %v1294, %v1454
        %v1456 = vpop.f32.mrb[0].mxu0
        %v1457 = vpop.f32.mrb[0].mxu0
        %v1458 = vadd.f32 %v1297, %v1457
        %v1459 = vpop.f32.mrb[0].mxu0
        %1460 = vmatprep.mubr.bf16.mxu0 %v902
        %1461 = vmatmul.mubr.bf16.gmra.mrb[0].mxu0 %v901
        %v1462 = vpop.f32.mrb[0].mxu0
        %v1463 = vadd.f32 %v1302, %v1462
        %v1464 = vpop.f32.mrb[0].mxu0
        %v1465 = vpop.f32.mrb[0].mxu0
        %v1466 = vadd.f32 %v1305, %v1465
        %v1467 = vpop.f32.mrb[0].mxu0
        %1468 = vmatprep.mubr.bf16.mxu0 %v906
        %1469 = vmatmul.mubr.bf16.gmra.mrb[0].mxu0 %v905
        %v1470 = vpop.f32.mrb[0].mxu0
        %v1471 = vadd.f32 %v1310, %v1470
        %v1472 = vpop.f32.mrb[0].mxu0
        %v1473 = vpop.f32.mrb[0].mxu0
        %v1474 = vadd.f32 %v1313, %v1473
        %v1475 = vpop.f32.mrb[0].mxu0
        %1476 = vmatprep.mubr.bf16.mxu0 %v910
        %1477 = vmatmul.mubr.bf16.gmra.mrb[0].mxu0 %v909
        %v1478 = vpop.f32.mrb[0].mxu0
        %v1479 = vadd.f32 %v1318, %v1478
        %v1480 = vpop.f32.mrb[0].mxu0
        %v1481 = vpop.f32.mrb[0].mxu0
        %v1482 = vadd.f32 %v1321, %v1481
        %v1483 = vpop.f32.mrb[0].mxu0
        %1484 = vmatprep.mubr.bf16.mxu0 %v914
        %1485 = vmatmul.mubr.bf16.gmra.mrb[0].mxu0 %v913
        %v1486 = vpop.f32.mrb[0].mxu0
        %v1487 = vadd.f32 %v1326, %v1486
        %v1488 = vpop.f32.mrb[0].mxu0
        %v1489 = vpop.f32.mrb[0].mxu0
        %v1490 = vadd.f32 %v1329, %v1489
        %v1491 = vpop.f32.mrb[0].mxu0
        %1492 = vdwg.mxu0
        %v1493 = vadd.f32 %v499, %v1367
        %v1494 = vadd.f32 %v500, %v1370
        %v1495 = vadd.f32 %v501, %v1375
        %v1496 = vadd.f32 %v502, %v1378
        %v1497 = vadd.f32 %v503, %v1383
        %v1498 = vadd.f32 %v504, %v1386
        %v1499 = vadd.f32 %v505, %v1391
        %v1500 = vadd.f32 %v506, %v1394
        %v1501 = vadd.f32 %v507, %v1399
        %v1502 = vadd.f32 %v508, %v1402
        %v1503 = vadd.f32 %v509, %v1407
        %v1504 = vadd.f32 %v510, %v1410
        %v1505 = vadd.f32 %v511, %v1415
        %v1506 = vadd.f32 %v512, %v1418
        %v1507 = vadd.f32 %v513, %v1423
        %v1508 = vadd.f32 %v514, %v1426
        %v1509 = vadd.f32 %v515, %v1431
        %v1510 = vadd.f32 %v516, %v1434
        %v1511 = vadd.f32 %v517, %v1439
        %v1512 = vadd.f32 %v518, %v1442
        %v1513 = vadd.f32 %v519, %v1447
        %v1514 = vadd.f32 %v520, %v1450
        %v1515 = vadd.f32 %v521, %v1455
        %v1516 = vadd.f32 %v522, %v1458
        %v1517 = vadd.f32 %v523, %v1463
        %v1518 = vadd.f32 %v524, %v1466
        %v1519 = vadd.f32 %v525, %v1471
        %v1520 = vadd.f32 %v526, %v1474
        %v1521 = vadd.f32 %v527, %v1479
        %v1522 = vadd.f32 %v528, %v1482
        %v1523 = vadd.f32 %v529, %v1487
        %v1524 = vadd.f32 %v530, %v1490
        %1525 = vst [vmem:[#allocation2] sm:$0xff] %v1493
        %1526 = vst [vmem:[#allocation2 + $0x8] sm:$0xff] %v1494
        %1527 = vst [vmem:[#allocation2 + $0x10] sm:$0xff] %v1495
        %1528 = vst [vmem:[#allocation2 + $0x18] sm:$0xff] %v1496
        %1529 = vst [vmem:[#allocation2 + $0x20] sm:$0xff] %v1497
        %1530 = vst [vmem:[#allocation2 + $0x28] sm:$0xff] %v1498
        %1531 = vst [vmem:[#allocation2 + $0x30] sm:$0xff] %v1499
        %1532 = vst [vmem:[#allocation2 + $0x38] sm:$0xff] %v1500
        %1533 = vst [vmem:[#allocation2 + $0x40] sm:$0xff] %v1501
        %1534 = vst [vmem:[#allocation2 + $0x48] sm:$0xff] %v1502
        %1535 = vst [vmem:[#allocation2 + $0x50] sm:$0xff] %v1503
        %1536 = vst [vmem:[#allocation2 + $0x58] sm:$0xff] %v1504
        %1537 = vst [vmem:[#allocation2 + $0x60] sm:$0xff] %v1505
        %1538 = vst [vmem:[#allocation2 + $0x68] sm:$0xff] %v1506
        %1539 = vst [vmem:[#allocation2 + $0x70] sm:$0xff] %v1507
        %1540 = vst [vmem:[#allocation2 + $0x78] sm:$0xff] %v1508
        %1541 = vst [vmem:[#allocation2 + $0x80] sm:$0xff] %v1509
        %1542 = vst [vmem:[#allocation2 + $0x88] sm:$0xff] %v1510
        %1543 = vst [vmem:[#allocation2 + $0x90] sm:$0xff] %v1511
        %1544 = vst [vmem:[#allocation2 + $0x98] sm:$0xff] %v1512
        %1545 = vst [vmem:[#allocation2 + $0xa0] sm:$0xff] %v1513
        %1546 = vst [vmem:[#allocation2 + $0xa8] sm:$0xff] %v1514
        %1547 = vst [vmem:[#allocation2 + $0xb0] sm:$0xff] %v1515
        %1548 = vst [vmem:[#allocation2 + $0xb8] sm:$0xff] %v1516
        %1549 = vst [vmem:[#allocation2 + $0xc0] sm:$0xff] %v1517
        %1550 = vst [vmem:[#allocation2 + $0xc8] sm:$0xff] %v1518
        %1551 = vst [vmem:[#allocation2 + $0xd0] sm:$0xff] %v1519
        %1552 = vst [vmem:[#allocation2 + $0xd8] sm:$0xff] %v1520
        %1553 = vst [vmem:[#allocation2 + $0xe0] sm:$0xff] %v1521
        %1554 = vst [vmem:[#allocation2 + $0xe8] sm:$0xff] %v1522
        %1555 = vst [vmem:[#allocation2 + $0xf0] sm:$0xff] %v1523
        %1556 = vst [vmem:[#allocation2 + $0xf8] sm:$0xff] %v1524
        %p1557 = scmp.eq.s32.totalorder %s22, 1
        // Predicated region
        $region72: #{sage_forward.3} parent=62 // pred_check
          %p1558 = pneg %p1557
        $region73: #{sage_forward.3} parent=62 // pred_check_branch
          %1560 = sbr.rel (%p1558) target = $region75
        $region74: #{sage_forward.3} parent=62 // pred_region
          %v1561 = vld [vmem:[#allocation2] sm:$0xff]
          %v1562 = vld [vmem:[#allocation2 + $0x8] sm:$0xff]
          %v1563 = vld [vmem:[#allocation2 + $0x10] sm:$0xff]
          %v1564 = vld [vmem:[#allocation2 + $0x18] sm:$0xff]
          %v1565 = vld [vmem:[#allocation2 + $0x20] sm:$0xff]
          %v1566 = vld [vmem:[#allocation2 + $0x28] sm:$0xff]
          %v1567 = vld [vmem:[#allocation2 + $0x30] sm:$0xff]
          %v1568 = vld [vmem:[#allocation2 + $0x38] sm:$0xff]
          %v1569 = vld [vmem:[#allocation2 + $0x40] sm:$0xff]
          %v1570 = vld [vmem:[#allocation2 + $0x48] sm:$0xff]
          %v1571 = vld [vmem:[#allocation2 + $0x50] sm:$0xff]
          %v1572 = vld [vmem:[#allocation2 + $0x58] sm:$0xff]
          %v1573 = vld [vmem:[#allocation2 + $0x60] sm:$0xff]
          %v1574 = vld [vmem:[#allocation2 + $0x68] sm:$0xff]
          %v1575 = vld [vmem:[#allocation2 + $0x70] sm:$0xff]
          %v1576 = vld [vmem:[#allocation2 + $0x78] sm:$0xff]
          %v1577 = vld [vmem:[#allocation2 + $0x80] sm:$0xff]
          %v1578 = vld [vmem:[#allocation2 + $0x88] sm:$0xff]
          %v1579 = vld [vmem:[#allocation2 + $0x90] sm:$0xff]
          %v1580 = vld [vmem:[#allocation2 + $0x98] sm:$0xff]
          %v1581 = vld [vmem:[#allocation2 + $0xa0] sm:$0xff]
          %v1582 = vld [vmem:[#allocation2 + $0xa8] sm:$0xff]
          %v1583 = vld [vmem:[#allocation2 + $0xb0] sm:$0xff]
          %v1584 = vld [vmem:[#allocation2 + $0xb8] sm:$0xff]
          %v1585 = vld [vmem:[#allocation2 + $0xc0] sm:$0xff]
          %v1586 = vld [vmem:[#allocation2 + $0xc8] sm:$0xff]
          %v1587 = vld [vmem:[#allocation2 + $0xd0] sm:$0xff]
          %v1588 = vld [vmem:[#allocation2 + $0xd8] sm:$0xff]
          %v1589 = vld [vmem:[#allocation2 + $0xe0] sm:$0xff]
          %v1590 = vld [vmem:[#allocation2 + $0xe8] sm:$0xff]
          %v1591 = vld [vmem:[#allocation2 + $0xf0] sm:$0xff]
          %v1592 = vld [vmem:[#allocation2 + $0xf8] sm:$0xff]
          %v1593 = vpack.c.bf16 %v1562, %v1561
          %v1594 = vpack.c.bf16 %v1564, %v1563
          %v1595 = vpack.c.bf16 %v1566, %v1565
          %v1596 = vpack.c.bf16 %v1568, %v1567
          %v1597 = vpack.c.bf16 %v1570, %v1569
          %v1598 = vpack.c.bf16 %v1572, %v1571
          %v1599 = vpack.c.bf16 %v1574, %v1573
          %v1600 = vpack.c.bf16 %v1576, %v1575
          %v1601 = vpack.c.bf16 %v1578, %v1577
          %v1602 = vpack.c.bf16 %v1580, %v1579
          %v1603 = vpack.c.bf16 %v1582, %v1581
          %v1604 = vpack.c.bf16 %v1584, %v1583
          %v1605 = vpack.c.bf16 %v1586, %v1585
          %v1606 = vpack.c.bf16 %v1588, %v1587
          %v1607 = vpack.c.bf16 %v1590, %v1589
          %v1608 = vpack.c.bf16 %v1592, %v1591
          %v1609 = vld [vmem:[%s3] sm:$0xf]
          %v1610 = vld [vmem:[%s3 + $0x4] sm:$0xf]
          %v1611 = vld [vmem:[%s3 + $0x8] sm:$0xf]
          %v1612 = vld [vmem:[%s3 + $0xc] sm:$0xf]
          %v1613 = vld [vmem:[%s3 + $0x10] sm:$0xf]
          %v1614 = vld [vmem:[%s3 + $0x14] sm:$0xf]
          %v1615 = vld [vmem:[%s3 + $0x18] sm:$0xf]
          %v1616 = vld [vmem:[%s3 + $0x1c] sm:$0xf]
          %v1617 = vld [vmem:[%s3 + $0x20] sm:$0xf]
          %v1618 = vld [vmem:[%s3 + $0x24] sm:$0xf]
          %v1619 = vld [vmem:[%s3 + $0x28] sm:$0xf]
          %v1620 = vld [vmem:[%s3 + $0x2c] sm:$0xf]
          %v1621 = vld [vmem:[%s3 + $0x30] sm:$0xf]
          %v1622 = vld [vmem:[%s3 + $0x34] sm:$0xf]
          %v1623 = vld [vmem:[%s3 + $0x38] sm:$0xf]
          %v1624 = vld [vmem:[%s3 + $0x3c] sm:$0xf]
          %v1625 = vld [vmem:[%s454] sm:$0xf]
          %v1626 = vld [vmem:[%s454 + $0x4] sm:$0xf]
          %v1627 = vld [vmem:[%s454 + $0x8] sm:$0xf]
          %v1628 = vld [vmem:[%s454 + $0xc] sm:$0xf]
          %v1629 = vld [vmem:[%s454 + $0x10] sm:$0xf]
          %v1630 = vld [vmem:[%s454 + $0x14] sm:$0xf]
          %v1631 = vld [vmem:[%s454 + $0x18] sm:$0xf]
          %v1632 = vld [vmem:[%s454 + $0x1c] sm:$0xf]
          %v1633 = vld [vmem:[%s454 + $0x20] sm:$0xf]
          %v1634 = vld [vmem:[%s454 + $0x24] sm:$0xf]
          %v1635 = vld [vmem:[%s454 + $0x28] sm:$0xf]
          %v1636 = vld [vmem:[%s454 + $0x2c] sm:$0xf]
          %v1637 = vld [vmem:[%s454 + $0x30] sm:$0xf]
          %v1638 = vld [vmem:[%s454 + $0x34] sm:$0xf]
          %v1639 = vld [vmem:[%s454 + $0x38] sm:$0xf]
          %v1640 = vld [vmem:[%s454 + $0x3c] sm:$0xf]
          %v1641 = vld [vmem:[%s454 + $0x40] sm:$0xf]
          %v1642 = vld [vmem:[%s454 + $0x44] sm:$0xf]
          %v1643 = vld [vmem:[%s454 + $0x48] sm:$0xf]
          %v1644 = vld [vmem:[%s454 + $0x4c] sm:$0xf]
          %v1645 = vld [vmem:[%s454 + $0x50] sm:$0xf]
          %v1646 = vld [vmem:[%s454 + $0x54] sm:$0xf]
          %v1647 = vld [vmem:[%s454 + $0x58] sm:$0xf]
          %v1648 = vld [vmem:[%s454 + $0x5c] sm:$0xf]
          %v1649 = vld [vmem:[%s454 + $0x60] sm:$0xf]
          %v1650 = vld [vmem:[%s454 + $0x64] sm:$0xf]
          %v1651 = vld [vmem:[%s454 + $0x68] sm:$0xf]
          %v1652 = vld [vmem:[%s454 + $0x6c] sm:$0xf]
          %v1653 = vld [vmem:[%s454 + $0x70] sm:$0xf]
          %v1654 = vld [vmem:[%s454 + $0x74] sm:$0xf]
          %v1655 = vld [vmem:[%s454 + $0x78] sm:$0xf]
          %v1656 = vld [vmem:[%s454 + $0x7c] sm:$0xf]
          %v1657 = vld [vmem:[%s4] sm:$0xf]
          %v1658 = vld [vmem:[%s4 + $0x4] sm:$0xf]
          %v1659 = vld [vmem:[%s4 + $0x8] sm:$0xf]
          %v1660 = vld [vmem:[%s4 + $0xc] sm:$0xf]
          %v1661 = vld [vmem:[%s4 + $0x10] sm:$0xf]
          %v1662 = vld [vmem:[%s4 + $0x14] sm:$0xf]
          %v1663 = vld [vmem:[%s4 + $0x18] sm:$0xf]
          %v1664 = vld [vmem:[%s4 + $0x1c] sm:$0xf]
          %v1665 = vld [vmem:[%s4 + $0x20] sm:$0xf]
          %v1666 = vld [vmem:[%s4 + $0x24] sm:$0xf]
          %v1667 = vld [vmem:[%s4 + $0x28] sm:$0xf]
          %v1668 = vld [vmem:[%s4 + $0x2c] sm:$0xf]
          %v1669 = vld [vmem:[%s4 + $0x30] sm:$0xf]
          %v1670 = vld [vmem:[%s4 + $0x34] sm:$0xf]
          %v1671 = vld [vmem:[%s4 + $0x38] sm:$0xf]
          %v1672 = vld [vmem:[%s4 + $0x3c] sm:$0xf]
          %v1705 = vunpack.c.l.b16 %v1625
          %v1706 = vunpack.c.l.b16 %v1626
          %v1707 = vunpack.c.l.b16 %v1627
          %v1708 = vunpack.c.l.b16 %v1628
          %v1709 = vunpack.c.l.b16 %v1629
          %v1710 = vunpack.c.l.b16 %v1630
          %v1711 = vunpack.c.l.b16 %v1631
          %v1712 = vunpack.c.l.b16 %v1632
          %v1713 = vunpack.c.l.b16 %v1633
          %v1714 = vunpack.c.l.b16 %v1634
          %v1715 = vunpack.c.l.b16 %v1635
          %v1716 = vunpack.c.l.b16 %v1636
          %v1717 = vunpack.c.l.b16 %v1637
          %v1718 = vunpack.c.l.b16 %v1638
          %v1719 = vunpack.c.l.b16 %v1639
          %v1720 = vunpack.c.l.b16 %v1640
          %v1721 = vunpack.c.l.b16 %v1641
          %v1722 = vunpack.c.l.b16 %v1642
          %v1723 = vunpack.c.l.b16 %v1643
          %v1724 = vunpack.c.l.b16 %v1644
          %v1725 = vunpack.c.l.b16 %v1645
          %v1726 = vunpack.c.l.b16 %v1646
          %v1727 = vunpack.c.l.b16 %v1647
          %v1728 = vunpack.c.l.b16 %v1648
          %v1729 = vunpack.c.l.b16 %v1649
          %v1730 = vunpack.c.l.b16 %v1650
          %v1731 = vunpack.c.l.b16 %v1651
          %v1732 = vunpack.c.l.b16 %v1652
          %v1733 = vunpack.c.l.b16 %v1653
          %v1734 = vunpack.c.l.b16 %v1654
          %v1735 = vunpack.c.l.b16 %v1655
          %v1736 = vunpack.c.l.b16 %v1656
          %v1737 = vpack.c.b16 %v1706, %v1705
          %v1738 = vpack.c.b16 %v1708, %v1707
          %v1739 = vpack.c.b16 %v1710, %v1709
          %v1740 = vpack.c.b16 %v1712, %v1711
          %v1741 = vpack.c.b16 %v1714, %v1713
          %v1742 = vpack.c.b16 %v1716, %v1715
          %v1743 = vpack.c.b16 %v1718, %v1717
          %v1744 = vpack.c.b16 %v1720, %v1719
          %v1745 = vpack.c.b16 %v1722, %v1721
          %v1746 = vpack.c.b16 %v1724, %v1723
          %v1747 = vpack.c.b16 %v1726, %v1725
          %v1748 = vpack.c.b16 %v1728, %v1727
          %v1749 = vpack.c.b16 %v1730, %v1729
          %v1750 = vpack.c.b16 %v1732, %v1731
          %v1751 = vpack.c.b16 %v1734, %v1733
          %v1752 = vpack.c.b16 %v1736, %v1735
          %v1785 = vunpack.c.l.b16 %v1657
          %v1786 = vunpack.c.l.b16 %v1658
          %v1787 = vunpack.c.l.b16 %v1659
          %v1788 = vunpack.c.l.b16 %v1660
          %v1789 = vunpack.c.l.b16 %v1661
          %v1790 = vunpack.c.l.b16 %v1662
          %v1791 = vunpack.c.l.b16 %v1663
          %v1792 = vunpack.c.l.b16 %v1664
          %v1793 = vunpack.c.l.b16 %v1665
          %v1794 = vunpack.c.l.b16 %v1666
          %v1795 = vunpack.c.l.b16 %v1667
          %v1796 = vunpack.c.l.b16 %v1668
          %v1797 = vunpack.c.l.b16 %v1669
          %v1798 = vunpack.c.l.b16 %v1670
          %v1799 = vunpack.c.l.b16 %v1671
          %v1800 = vunpack.c.l.b16 %v1672
          %v1801 = vpack.c.b16 %v1786, %v1785
          %v1802 = vpack.c.b16 %v1788, %v1787
          %v1803 = vpack.c.b16 %v1790, %v1789
          %v1804 = vpack.c.b16 %v1792, %v1791
          %v1805 = vpack.c.b16 %v1794, %v1793
          %v1806 = vpack.c.b16 %v1796, %v1795
          %v1807 = vpack.c.b16 %v1798, %v1797
          %v1808 = vpack.c.b16 %v1800, %v1799
          %1817 = vmatprep.subr.bf16.mxu0 0
          %1818 = vmatpush1.bf16.msra.mxu0 %v1801
          %1819 = vmatprep.subr.bf16.mxu0 0
          %1820 = vmatpush1.bf16.msra.mxu0 %v1802
          %1821 = vmatprep.subr.bf16.mxu0 0
          %1822 = vmatpush1.bf16.msra.mxu0 %v1803
          %1823 = vmatprep.subr.bf16.mxu0 0
          %1824 = vmatpush1.bf16.msra.mxu0 %v1804
          %1825 = vmatprep.subr.bf16.mxu0 0
          %1826 = vmatpush1.bf16.msra.mxu0 %v1805
          %1827 = vmatprep.subr.bf16.mxu0 0
          %1828 = vmatpush1.bf16.msra.mxu0 %v1806
          %1829 = vmatprep.subr.bf16.mxu0 0
          %1830 = vmatpush1.bf16.msra.mxu0 %v1807
          %1831 = vmatprep.subr.bf16.mxu0 0
          %1832 = vmatpush1.bf16.msra.mxu0 %v1808
          %1833 = vmatprep.subr.bf16.mxu0 0
          %1834 = vmatpush1.bf16.msra.mxu0 0
          %1835 = vmatprep.subr.bf16.mxu0 0
          %1836 = vmatpush1.bf16.msra.mxu0 0
          %1837 = vmatprep.subr.bf16.mxu0 0
          %1838 = vmatpush1.bf16.msra.mxu0 0
          %1839 = vmatprep.subr.bf16.mxu0 0
          %1840 = vmatpush1.bf16.msra.mxu0 0
          %1841 = vmatprep.subr.bf16.mxu0 0
          %1842 = vmatpush1.bf16.msra.mxu0 0
          %1843 = vmatprep.subr.bf16.mxu0 0
          %1844 = vmatpush1.bf16.msra.mxu0 0
          %1845 = vmatprep.subr.bf16.mxu0 0
          %1846 = vmatpush1.bf16.msra.mxu0 0
          %1847 = vmatprep.subr.bf16.mxu0 0
          %1848 = vmatpush1.bf16.msra.mxu0 0
          %1849 = vmatprep.mubr.bf16.mxu0 0
          %1850 = vmatmul.mubr.bf16.gmra.mrb[0].mxu0 %v1737
          %v1851 = vpop.f32.mrb[0].mxu0
          %v1852 = vadd.f32 0.0, %v1851
          %v1853 = vpop.f32.mrb[0].mxu0
          %v1854 = vpop.f32.mrb[0].mxu0
          %v1855 = vadd.f32 0.0, %v1854
          %v1856 = vpop.f32.mrb[0].mxu0
          %1857 = vmatprep.mubr.bf16.mxu0 0
          %1858 = vmatmul.mubr.bf16.gmra.mrb[0].mxu0 %v1738
          %v1859 = vpop.f32.mrb[0].mxu0
          %v1860 = vadd.f32 0.0, %v1859
          %v1861 = vpop.f32.mrb[0].mxu0
          %v1862 = vpop.f32.mrb[0].mxu0
          %v1863 = vadd.f32 0.0, %v1862
          %v1864 = vpop.f32.mrb[0].mxu0
          %1865 = vmatprep.mubr.bf16.mxu0 0
          %1866 = vmatmul.mubr.bf16.gmra.mrb[0].mxu0 %v1739
          %v1867 = vpop.f32.mrb[0].mxu0
          %v1868 = vadd.f32 0.0, %v1867
          %v1869 = vpop.f32.mrb[0].mxu0
          %v1870 = vpop.f32.mrb[0].mxu0
          %v1871 = vadd.f32 0.0, %v1870
          %v1872 = vpop.f32.mrb[0].mxu0
          %1873 = vmatprep.mubr.bf16.mxu0 0
          %1874 = vmatmul.mubr.bf16.gmra.mrb[0].mxu0 %v1740
          %v1875 = vpop.f32.mrb[0].mxu0
          %v1876 = vadd.f32 0.0, %v1875
          %v1877 = vpop.f32.mrb[0].mxu0
          %v1878 = vpop.f32.mrb[0].mxu0
          %v1879 = vadd.f32 0.0, %v1878
          %v1880 = vpop.f32.mrb[0].mxu0
          %1881 = vmatprep.mubr.bf16.mxu0 0
          %1882 = vmatmul.mubr.bf16.gmra.mrb[0].mxu0 %v1741
          %v1883 = vpop.f32.mrb[0].mxu0
          %v1884 = vadd.f32 0.0, %v1883
          %v1885 = vpop.f32.mrb[0].mxu0
          %v1886 = vpop.f32.mrb[0].mxu0
          %v1887 = vadd.f32 0.0, %v1886
          %v1888 = vpop.f32.mrb[0].mxu0
          %1889 = vmatprep.mubr.bf16.mxu0 0
          %1890 = vmatmul.mubr.bf16.gmra.mrb[0].mxu0 %v1742
          %v1891 = vpop.f32.mrb[0].mxu0
          %v1892 = vadd.f32 0.0, %v1891
          %v1893 = vpop.f32.mrb[0].mxu0
          %v1894 = vpop.f32.mrb[0].mxu0
          %v1895 = vadd.f32 0.0, %v1894
          %v1896 = vpop.f32.mrb[0].mxu0
          %1897 = vmatprep.mubr.bf16.mxu0 0
          %1898 = vmatmul.mubr.bf16.gmra.mrb[0].mxu0 %v1743
          %v1899 = vpop.f32.mrb[0].mxu0
          %v1900 = vadd.f32 0.0, %v1899
          %v1901 = vpop.f32.mrb[0].mxu0
          %v1902 = vpop.f32.mrb[0].mxu0
          %v1903 = vadd.f32 0.0, %v1902
          %v1904 = vpop.f32.mrb[0].mxu0
          %1905 = vmatprep.mubr.bf16.mxu0 0
          %1906 = vmatmul.mubr.bf16.gmra.mrb[0].mxu0 %v1744
          %v1907 = vpop.f32.mrb[0].mxu0
          %v1908 = vadd.f32 0.0, %v1907
          %v1909 = vpop.f32.mrb[0].mxu0
          %v1910 = vpop.f32.mrb[0].mxu0
          %v1911 = vadd.f32 0.0, %v1910
          %v1912 = vpop.f32.mrb[0].mxu0
          %1913 = vmatprep.mubr.bf16.mxu0 0
          %1914 = vmatmul.mubr.bf16.gmra.mrb[0].mxu0 %v1745
          %v1915 = vpop.f32.mrb[0].mxu0
          %v1916 = vadd.f32 0.0, %v1915
          %v1917 = vpop.f32.mrb[0].mxu0
          %v1918 = vpop.f32.mrb[0].mxu0
          %v1919 = vadd.f32 0.0, %v1918
          %v1920 = vpop.f32.mrb[0].mxu0
          %1921 = vmatprep.mubr.bf16.mxu0 0
          %1922 = vmatmul.mubr.bf16.gmra.mrb[0].mxu0 %v1746
          %v1923 = vpop.f32.mrb[0].mxu0
          %v1924 = vadd.f32 0.0, %v1923
          %v1925 = vpop.f32.mrb[0].mxu0
          %v1926 = vpop.f32.mrb[0].mxu0
          %v1927 = vadd.f32 0.0, %v1926
          %v1928 = vpop.f32.mrb[0].mxu0
          %1929 = vmatprep.mubr.bf16.mxu0 0
          %1930 = vmatmul.mubr.bf16.gmra.mrb[0].mxu0 %v1747
          %v1931 = vpop.f32.mrb[0].mxu0
          %v1932 = vadd.f32 0.0, %v1931
          %v1933 = vpop.f32.mrb[0].mxu0
          %v1934 = vpop.f32.mrb[0].mxu0
          %v1935 = vadd.f32 0.0, %v1934
          %v1936 = vpop.f32.mrb[0].mxu0
          %1937 = vmatprep.mubr.bf16.mxu0 0
          %1938 = vmatmul.mubr.bf16.gmra.mrb[0].mxu0 %v1748
          %v1939 = vpop.f32.mrb[0].mxu0
          %v1940 = vadd.f32 0.0, %v1939
          %v1941 = vpop.f32.mrb[0].mxu0
          %v1942 = vpop.f32.mrb[0].mxu0
          %v1943 = vadd.f32 0.0, %v1942
          %v1944 = vpop.f32.mrb[0].mxu0
          %1945 = vmatprep.mubr.bf16.mxu0 0
          %1946 = vmatmul.mubr.bf16.gmra.mrb[0].mxu0 %v1749
          %v1947 = vpop.f32.mrb[0].mxu0
          %v1948 = vadd.f32 0.0, %v1947
          %v1949 = vpop.f32.mrb[0].mxu0
          %v1950 = vpop.f32.mrb[0].mxu0
          %v1951 = vadd.f32 0.0, %v1950
          %v1952 = vpop.f32.mrb[0].mxu0
          %1953 = vmatprep.mubr.bf16.mxu0 0
          %1954 = vmatmul.mubr.bf16.gmra.mrb[0].mxu0 %v1750
          %v1955 = vpop.f32.mrb[0].mxu0
          %v1956 = vadd.f32 0.0, %v1955
          %v1957 = vpop.f32.mrb[0].mxu0
          %v1958 = vpop.f32.mrb[0].mxu0
          %v1959 = vadd.f32 0.0, %v1958
          %v1960 = vpop.f32.mrb[0].mxu0
          %1961 = vmatprep.mubr.bf16.mxu0 0
          %1962 = vmatmul.mubr.bf16.gmra.mrb[0].mxu0 %v1751
          %v1963 = vpop.f32.mrb[0].mxu0
          %v1964 = vadd.f32 0.0, %v1963
          %v1965 = vpop.f32.mrb[0].mxu0
          %v1966 = vpop.f32.mrb[0].mxu0
          %v1967 = vadd.f32 0.0, %v1966
          %v1968 = vpop.f32.mrb[0].mxu0
          %1969 = vmatprep.mubr.bf16.mxu0 0
          %1970 = vmatmul.mubr.bf16.gmra.mrb[0].mxu0 %v1752
          %v1971 = vpop.f32.mrb[0].mxu0
          %v1972 = vadd.f32 0.0, %v1971
          %v1973 = vpop.f32.mrb[0].mxu0
          %v1974 = vpop.f32.mrb[0].mxu0
          %v1975 = vadd.f32 0.0, %v1974
          %v1976 = vpop.f32.mrb[0].mxu0
          %1977 = vdwg.mxu0
          %v1994 = vunpack.c.l.b16 %v1609
          %v1995 = vunpack.c.l.b16 %v1610
          %v1996 = vunpack.c.l.b16 %v1611
          %v1997 = vunpack.c.l.b16 %v1612
          %v1998 = vunpack.c.l.b16 %v1613
          %v1999 = vunpack.c.l.b16 %v1614
          %v2000 = vunpack.c.l.b16 %v1615
          %v2001 = vunpack.c.l.b16 %v1616
          %v2002 = vunpack.c.l.b16 %v1617
          %v2003 = vunpack.c.l.b16 %v1618
          %v2004 = vunpack.c.l.b16 %v1619
          %v2005 = vunpack.c.l.b16 %v1620
          %v2006 = vunpack.c.l.b16 %v1621
          %v2007 = vunpack.c.l.b16 %v1622
          %v2008 = vunpack.c.l.b16 %v1623
          %v2009 = vunpack.c.l.b16 %v1624
          %v2010 = vpack.c.b16 %v1995, %v1994
          %v2011 = vpack.c.b16 %v1997, %v1996
          %v2012 = vpack.c.b16 %v1999, %v1998
          %v2013 = vpack.c.b16 %v2001, %v2000
          %v2014 = vpack.c.b16 %v2003, %v2002
          %v2015 = vpack.c.b16 %v2005, %v2004
          %v2016 = vpack.c.b16 %v2007, %v2006
          %v2017 = vpack.c.b16 %v2009, %v2008
          %2026 = vmatprep.subr.bf16.mxu0 0
          %2027 = vmatpush1.bf16.msra.mxu0 %v2010
          %2028 = vmatprep.subr.bf16.mxu0 0
          %2029 = vmatpush1.bf16.msra.mxu0 %v2011
          %2030 = vmatprep.subr.bf16.mxu0 0
          %2031 = vmatpush1.bf16.msra.mxu0 %v2012
          %2032 = vmatprep.subr.bf16.mxu0 0
          %2033 = vmatpush1.bf16.msra.mxu0 %v2013
          %2034 = vmatprep.subr.bf16.mxu0 0
          %2035 = vmatpush1.bf16.msra.mxu0 %v2014
          %2036 = vmatprep.subr.bf16.mxu0 0
          %2037 = vmatpush1.bf16.msra.mxu0 %v2015
          %2038 = vmatprep.subr.bf16.mxu0 0
          %2039 = vmatpush1.bf16.msra.mxu0 %v2016
          %2040 = vmatprep.subr.bf16.mxu0 0
          %2041 = vmatpush1.bf16.msra.mxu0 %v2017
          %2042 = vmatprep.subr.bf16.mxu0 0
          %2043 = vmatpush1.bf16.msra.mxu0 0
          %2044 = vmatprep.subr.bf16.mxu0 0
          %2045 = vmatpush1.bf16.msra.mxu0 0
          %2046 = vmatprep.subr.bf16.mxu0 0
          %2047 = vmatpush1.bf16.msra.mxu0 0
          %2048 = vmatprep.subr.bf16.mxu0 0
          %2049 = vmatpush1.bf16.msra.mxu0 0
          %2050 = vmatprep.subr.bf16.mxu0 0
          %2051 = vmatpush1.bf16.msra.mxu0 0
          %2052 = vmatprep.subr.bf16.mxu0 0
          %2053 = vmatpush1.bf16.msra.mxu0 0
          %2054 = vmatprep.subr.bf16.mxu0 0
          %2055 = vmatpush1.bf16.msra.mxu0 0
          %2056 = vmatprep.subr.bf16.mxu0 0
          %2057 = vmatpush1.bf16.msra.mxu0 0
          %2058 = vmatprep.mubr.bf16.mxu0 0
          %2059 = vmatmul.mubr.bf16.gmra.mrb[0].mxu0 %v1593
          %v2060 = vpop.f32.mrb[0].mxu0
          %v2061 = vadd.f32 %v1852, %v2060
          %v2062 = vpop.f32.mrb[0].mxu0
          %v2063 = vpop.f32.mrb[0].mxu0
          %v2064 = vadd.f32 %v1855, %v2063
          %v2065 = vpop.f32.mrb[0].mxu0
          %2066 = vmatprep.mubr.bf16.mxu0 0
          %2067 = vmatmul.mubr.bf16.gmra.mrb[0].mxu0 %v1594
          %v2068 = vpop.f32.mrb[0].mxu0
          %v2069 = vadd.f32 %v1860, %v2068
          %v2070 = vpop.f32.mrb[0].mxu0
          %v2071 = vpop.f32.mrb[0].mxu0
          %v2072 = vadd.f32 %v1863, %v2071
          %v2073 = vpop.f32.mrb[0].mxu0
          %2074 = vmatprep.mubr.bf16.mxu0 0
          %2075 = vmatmul.mubr.bf16.gmra.mrb[0].mxu0 %v1595
          %v2076 = vpop.f32.mrb[0].mxu0
          %v2077 = vadd.f32 %v1868, %v2076
          %v2078 = vpop.f32.mrb[0].mxu0
          %v2079 = vpop.f32.mrb[0].mxu0
          %v2080 = vadd.f32 %v1871, %v2079
          %v2081 = vpop.f32.mrb[0].mxu0
          %2082 = vmatprep.mubr.bf16.mxu0 0
          %2083 = vmatmul.mubr.bf16.gmra.mrb[0].mxu0 %v1596
          %v2084 = vpop.f32.mrb[0].mxu0
          %v2085 = vadd.f32 %v1876, %v2084
          %v2086 = vpop.f32.mrb[0].mxu0
          %v2087 = vpop.f32.mrb[0].mxu0
          %v2088 = vadd.f32 %v1879, %v2087
          %v2089 = vpop.f32.mrb[0].mxu0
          %2090 = vmatprep.mubr.bf16.mxu0 0
          %2091 = vmatmul.mubr.bf16.gmra.mrb[0].mxu0 %v1597
          %v2092 = vpop.f32.mrb[0].mxu0
          %v2093 = vadd.f32 %v1884, %v2092
          %v2094 = vpop.f32.mrb[0].mxu0
          %v2095 = vpop.f32.mrb[0].mxu0
          %v2096 = vadd.f32 %v1887, %v2095
          %v2097 = vpop.f32.mrb[0].mxu0
          %2098 = vmatprep.mubr.bf16.mxu0 0
          %2099 = vmatmul.mubr.bf16.gmra.mrb[0].mxu0 %v1598
          %v2100 = vpop.f32.mrb[0].mxu0
          %v2101 = vadd.f32 %v1892, %v2100
          %v2102 = vpop.f32.mrb[0].mxu0
          %v2103 = vpop.f32.mrb[0].mxu0
          %v2104 = vadd.f32 %v1895, %v2103
          %v2105 = vpop.f32.mrb[0].mxu0
          %2106 = vmatprep.mubr.bf16.mxu0 0
          %2107 = vmatmul.mubr.bf16.gmra.mrb[0].mxu0 %v1599
          %v2108 = vpop.f32.mrb[0].mxu0
          %v2109 = vadd.f32 %v1900, %v2108
          %v2110 = vpop.f32.mrb[0].mxu0
          %v2111 = vpop.f32.mrb[0].mxu0
          %v2112 = vadd.f32 %v1903, %v2111
          %v2113 = vpop.f32.mrb[0].mxu0
          %2114 = vmatprep.mubr.bf16.mxu0 0
          %2115 = vmatmul.mubr.bf16.gmra.mrb[0].mxu0 %v1600
          %v2116 = vpop.f32.mrb[0].mxu0
          %v2117 = vadd.f32 %v1908, %v2116
          %v2118 = vpop.f32.mrb[0].mxu0
          %v2119 = vpop.f32.mrb[0].mxu0
          %v2120 = vadd.f32 %v1911, %v2119
          %v2121 = vpop.f32.mrb[0].mxu0
          %2122 = vmatprep.mubr.bf16.mxu0 0
          %2123 = vmatmul.mubr.bf16.gmra.mrb[0].mxu0 %v1601
          %v2124 = vpop.f32.mrb[0].mxu0
          %v2125 = vadd.f32 %v1916, %v2124
          %v2126 = vpop.f32.mrb[0].mxu0
          %v2127 = vpop.f32.mrb[0].mxu0
          %v2128 = vadd.f32 %v1919, %v2127
          %v2129 = vpop.f32.mrb[0].mxu0
          %2130 = vmatprep.mubr.bf16.mxu0 0
          %2131 = vmatmul.mubr.bf16.gmra.mrb[0].mxu0 %v1602
          %v2132 = vpop.f32.mrb[0].mxu0
          %v2133 = vadd.f32 %v1924, %v2132
          %v2134 = vpop.f32.mrb[0].mxu0
          %v2135 = vpop.f32.mrb[0].mxu0
          %v2136 = vadd.f32 %v1927, %v2135
          %v2137 = vpop.f32.mrb[0].mxu0
          %2138 = vmatprep.mubr.bf16.mxu0 0
          %2139 = vmatmul.mubr.bf16.gmra.mrb[0].mxu0 %v1603
          %v2140 = vpop.f32.mrb[0].mxu0
          %v2141 = vadd.f32 %v1932, %v2140
          %v2142 = vpop.f32.mrb[0].mxu0
          %v2143 = vpop.f32.mrb[0].mxu0
          %v2144 = vadd.f32 %v1935, %v2143
          %v2145 = vpop.f32.mrb[0].mxu0
          %2146 = vmatprep.mubr.bf16.mxu0 0
          %2147 = vmatmul.mubr.bf16.gmra.mrb[0].mxu0 %v1604
          %v2148 = vpop.f32.mrb[0].mxu0
          %v2149 = vadd.f32 %v1940, %v2148
          %v2150 = vpop.f32.mrb[0].mxu0
          %v2151 = vpop.f32.mrb[0].mxu0
          %v2152 = vadd.f32 %v1943, %v2151
          %v2153 = vpop.f32.mrb[0].mxu0
          %2154 = vmatprep.mubr.bf16.mxu0 0
          %2155 = vmatmul.mubr.bf16.gmra.mrb[0].mxu0 %v1605
          %v2156 = vpop.f32.mrb[0].mxu0
          %v2157 = vadd.f32 %v1948, %v2156
          %v2158 = vpop.f32.mrb[0].mxu0
          %v2159 = vpop.f32.mrb[0].mxu0
          %v2160 = vadd.f32 %v1951, %v2159
          %v2161 = vpop.f32.mrb[0].mxu0
          %2162 = vmatprep.mubr.bf16.mxu0 0
          %2163 = vmatmul.mubr.bf16.gmra.mrb[0].mxu0 %v1606
          %v2164 = vpop.f32.mrb[0].mxu0
          %v2165 = vadd.f32 %v1956, %v2164
          %v2166 = vpop.f32.mrb[0].mxu0
          %v2167 = vpop.f32.mrb[0].mxu0
          %v2168 = vadd.f32 %v1959, %v2167
          %v2169 = vpop.f32.mrb[0].mxu0
          %2170 = vmatprep.mubr.bf16.mxu0 0
          %2171 = vmatmul.mubr.bf16.gmra.mrb[0].mxu0 %v1607
          %v2172 = vpop.f32.mrb[0].mxu0
          %v2173 = vadd.f32 %v1964, %v2172
          %v2174 = vpop.f32.mrb[0].mxu0
          %v2175 = vpop.f32.mrb[0].mxu0
          %v2176 = vadd.f32 %v1967, %v2175
          %v2177 = vpop.f32.mrb[0].mxu0
          %2178 = vmatprep.mubr.bf16.mxu0 0
          %2179 = vmatmul.mubr.bf16.gmra.mrb[0].mxu0 %v1608
          %v2180 = vpop.f32.mrb[0].mxu0
          %v2181 = vadd.f32 %v1972, %v2180
          %v2182 = vpop.f32.mrb[0].mxu0
          %v2183 = vpop.f32.mrb[0].mxu0
          %v2184 = vadd.f32 %v1975, %v2183
          %v2185 = vpop.f32.mrb[0].mxu0
          %2186 = vdwg.mxu0
          %v2187 = vld [vmem:[%s5] sm:$0x1]
          %v2189 = vlaneseq
          %v2190 = vshrl.u32 %v2189, 7
          %v2191 = vsub.s32 0, %v2190
          %v2192 = vrot.slane %v2187, %v2191
          %v2194 = vadd.f32 %v2061, %v2192
          %v2195 = vadd.f32 %v2064, %v2192
          %v2196 = vadd.f32 %v2069, %v2192
          %v2197 = vadd.f32 %v2072, %v2192
          %v2198 = vadd.f32 %v2077, %v2192
          %v2199 = vadd.f32 %v2080, %v2192
          %v2200 = vadd.f32 %v2085, %v2192
          %v2201 = vadd.f32 %v2088, %v2192
          %v2202 = vadd.f32 %v2093, %v2192
          %v2203 = vadd.f32 %v2096, %v2192
          %v2204 = vadd.f32 %v2101, %v2192
          %v2205 = vadd.f32 %v2104, %v2192
          %v2206 = vadd.f32 %v2109, %v2192
          %v2207 = vadd.f32 %v2112, %v2192
          %v2208 = vadd.f32 %v2117, %v2192
          %v2209 = vadd.f32 %v2120, %v2192
          %v2210 = vadd.f32 %v2125, %v2192
          %v2211 = vadd.f32 %v2128, %v2192
          %v2212 = vadd.f32 %v2133, %v2192
          %v2213 = vadd.f32 %v2136, %v2192
          %v2214 = vadd.f32 %v2141, %v2192
          %v2215 = vadd.f32 %v2144, %v2192
          %v2216 = vadd.f32 %v2149, %v2192
          %v2217 = vadd.f32 %v2152, %v2192
          %v2218 = vadd.f32 %v2157, %v2192
          %v2219 = vadd.f32 %v2160, %v2192
          %v2220 = vadd.f32 %v2165, %v2192
          %v2221 = vadd.f32 %v2168, %v2192
          %v2222 = vadd.f32 %v2173, %v2192
          %v2223 = vadd.f32 %v2176, %v2192
          %v2224 = vadd.f32 %v2181, %v2192
          %v2225 = vadd.f32 %v2184, %v2192
          %v2226 = vmax.f32 %v2194, 0.0
          %v2227 = vmax.f32 %v2195, 0.0
          %v2228 = vmax.f32 %v2196, 0.0
          %v2229 = vmax.f32 %v2197, 0.0
          %v2230 = vmax.f32 %v2198, 0.0
          %v2231 = vmax.f32 %v2199, 0.0
          %v2232 = vmax.f32 %v2200, 0.0
          %v2233 = vmax.f32 %v2201, 0.0
          %v2234 = vmax.f32 %v2202, 0.0
          %v2235 = vmax.f32 %v2203, 0.0
          %v2236 = vmax.f32 %v2204, 0.0
          %v2237 = vmax.f32 %v2205, 0.0
          %v2238 = vmax.f32 %v2206, 0.0
          %v2239 = vmax.f32 %v2207, 0.0
          %v2240 = vmax.f32 %v2208, 0.0
          %v2241 = vmax.f32 %v2209, 0.0
          %v2242 = vmax.f32 %v2210, 0.0
          %v2243 = vmax.f32 %v2211, 0.0
          %v2244 = vmax.f32 %v2212, 0.0
          %v2245 = vmax.f32 %v2213, 0.0
          %v2246 = vmax.f32 %v2214, 0.0
          %v2247 = vmax.f32 %v2215, 0.0
          %v2248 = vmax.f32 %v2216, 0.0
          %v2249 = vmax.f32 %v2217, 0.0
          %v2250 = vmax.f32 %v2218, 0.0
          %v2251 = vmax.f32 %v2219, 0.0
          %v2252 = vmax.f32 %v2220, 0.0
          %v2253 = vmax.f32 %v2221, 0.0
          %v2254 = vmax.f32 %v2222, 0.0
          %v2255 = vmax.f32 %v2223, 0.0
          %v2256 = vmax.f32 %v2224, 0.0
          %v2257 = vmax.f32 %v2225, 0.0
          %v2258 = vpack.c.bf16 %v2227, %v2226
          %v2259 = vpack.c.bf16 %v2229, %v2228
          %v2260 = vpack.c.bf16 %v2231, %v2230
          %v2261 = vpack.c.bf16 %v2233, %v2232
          %v2262 = vpack.c.bf16 %v2235, %v2234
          %v2263 = vpack.c.bf16 %v2237, %v2236
          %v2264 = vpack.c.bf16 %v2239, %v2238
          %v2265 = vpack.c.bf16 %v2241, %v2240
          %v2266 = vpack.c.bf16 %v2243, %v2242
          %v2267 = vpack.c.bf16 %v2245, %v2244
          %v2268 = vpack.c.bf16 %v2247, %v2246
          %v2269 = vpack.c.bf16 %v2249, %v2248
          %v2270 = vpack.c.bf16 %v2251, %v2250
          %v2271 = vpack.c.bf16 %v2253, %v2252
          %v2272 = vpack.c.bf16 %v2255, %v2254
          %v2273 = vpack.c.bf16 %v2257, %v2256
          %v2290 = vunpack.c.l.b16 %v2258
          %v2291 = vunpack.c.h.b16 %v2258
          %v2292 = vunpack.c.l.b16 %v2259
          %v2293 = vunpack.c.h.b16 %v2259
          %v2294 = vunpack.c.l.b16 %v2260
          %v2295 = vunpack.c.h.b16 %v2260
          %v2296 = vunpack.c.l.b16 %v2261
          %v2297 = vunpack.c.h.b16 %v2261
          %v2298 = vunpack.c.l.b16 %v2262
          %v2299 = vunpack.c.h.b16 %v2262
          %v2300 = vunpack.c.l.b16 %v2263
          %v2301 = vunpack.c.h.b16 %v2263
          %v2302 = vunpack.c.l.b16 %v2264
          %v2303 = vunpack.c.h.b16 %v2264
          %v2304 = vunpack.c.l.b16 %v2265
          %v2305 = vunpack.c.h.b16 %v2265
          %v2306 = vunpack.c.l.b16 %v2266
          %v2307 = vunpack.c.h.b16 %v2266
          %v2308 = vunpack.c.l.b16 %v2267
          %v2309 = vunpack.c.h.b16 %v2267
          %v2310 = vunpack.c.l.b16 %v2268
          %v2311 = vunpack.c.h.b16 %v2268
          %v2312 = vunpack.c.l.b16 %v2269
          %v2313 = vunpack.c.h.b16 %v2269
          %v2314 = vunpack.c.l.b16 %v2270
          %v2315 = vunpack.c.h.b16 %v2270
          %v2316 = vunpack.c.l.b16 %v2271
          %v2317 = vunpack.c.h.b16 %v2271
          %v2318 = vunpack.c.l.b16 %v2272
          %v2319 = vunpack.c.h.b16 %v2272
          %v2320 = vunpack.c.l.b16 %v2273
          %v2321 = vunpack.c.h.b16 %v2273
          %v2322 = vpack.c.b16 %v2290, %v2290
          %v2323 = vpack.c.b16 %v2291, %v2291
          %v2324 = vpack.c.b16 %v2292, %v2292
          %v2325 = vpack.c.b16 %v2293, %v2293
          %v2326 = vpack.c.b16 %v2294, %v2294
          %v2327 = vpack.c.b16 %v2295, %v2295
          %v2328 = vpack.c.b16 %v2296, %v2296
          %v2329 = vpack.c.b16 %v2297, %v2297
          %v2330 = vpack.c.b16 %v2298, %v2298
          %v2331 = vpack.c.b16 %v2299, %v2299
          %v2332 = vpack.c.b16 %v2300, %v2300
          %v2333 = vpack.c.b16 %v2301, %v2301
          %v2334 = vpack.c.b16 %v2302, %v2302
          %v2335 = vpack.c.b16 %v2303, %v2303
          %v2336 = vpack.c.b16 %v2304, %v2304
          %v2337 = vpack.c.b16 %v2305, %v2305
          %v2338 = vpack.c.b16 %v2306, %v2306
          %v2339 = vpack.c.b16 %v2307, %v2307
          %v2340 = vpack.c.b16 %v2308, %v2308
          %v2341 = vpack.c.b16 %v2309, %v2309
          %v2342 = vpack.c.b16 %v2310, %v2310
          %v2343 = vpack.c.b16 %v2311, %v2311
          %v2344 = vpack.c.b16 %v2312, %v2312
          %v2345 = vpack.c.b16 %v2313, %v2313
          %v2346 = vpack.c.b16 %v2314, %v2314
          %v2347 = vpack.c.b16 %v2315, %v2315
          %v2348 = vpack.c.b16 %v2316, %v2316
          %v2349 = vpack.c.b16 %v2317, %v2317
          %v2350 = vpack.c.b16 %v2318, %v2318
          %v2351 = vpack.c.b16 %v2319, %v2319
          %v2352 = vpack.c.b16 %v2320, %v2320
          %v2353 = vpack.c.b16 %v2321, %v2321
          %2386 = vst [vmem:[%s460] sm:$0xf] %v2322
          %2387 = vst [vmem:[%s460 + $0x4] sm:$0xf] %v2323
          %2388 = vst [vmem:[%s460 + $0x8] sm:$0xf] %v2324
          %2389 = vst [vmem:[%s460 + $0xc] sm:$0xf] %v2325
          %2390 = vst [vmem:[%s460 + $0x10] sm:$0xf] %v2326
          %2391 = vst [vmem:[%s460 + $0x14] sm:$0xf] %v2327
          %2392 = vst [vmem:[%s460 + $0x18] sm:$0xf] %v2328
          %2393 = vst [vmem:[%s460 + $0x1c] sm:$0xf] %v2329
          %2394 = vst [vmem:[%s460 + $0x20] sm:$0xf] %v2330
          %2395 = vst [vmem:[%s460 + $0x24] sm:$0xf] %v2331
          %2396 = vst [vmem:[%s460 + $0x28] sm:$0xf] %v2332
          %2397 = vst [vmem:[%s460 + $0x2c] sm:$0xf] %v2333
          %2398 = vst [vmem:[%s460 + $0x30] sm:$0xf] %v2334
          %2399 = vst [vmem:[%s460 + $0x34] sm:$0xf] %v2335
          %2400 = vst [vmem:[%s460 + $0x38] sm:$0xf] %v2336
          %2401 = vst [vmem:[%s460 + $0x3c] sm:$0xf] %v2337
          %2402 = vst [vmem:[%s460 + $0x40] sm:$0xf] %v2338
          %2403 = vst [vmem:[%s460 + $0x44] sm:$0xf] %v2339
          %2404 = vst [vmem:[%s460 + $0x48] sm:$0xf] %v2340
          %2405 = vst [vmem:[%s460 + $0x4c] sm:$0xf] %v2341
          %2406 = vst [vmem:[%s460 + $0x50] sm:$0xf] %v2342
          %2407 = vst [vmem:[%s460 + $0x54] sm:$0xf] %v2343
          %2408 = vst [vmem:[%s460 + $0x58] sm:$0xf] %v2344
          %2409 = vst [vmem:[%s460 + $0x5c] sm:$0xf] %v2345
          %2410 = vst [vmem:[%s460 + $0x60] sm:$0xf] %v2346
          %2411 = vst [vmem:[%s460 + $0x64] sm:$0xf] %v2347
          %2412 = vst [vmem:[%s460 + $0x68] sm:$0xf] %v2348
          %2413 = vst [vmem:[%s460 + $0x6c] sm:$0xf] %v2349
          %2414 = vst [vmem:[%s460 + $0x70] sm:$0xf] %v2350
          %2415 = vst [vmem:[%s460 + $0x74] sm:$0xf] %v2351
          %2416 = vst [vmem:[%s460 + $0x78] sm:$0xf] %v2352
          %2417 = vst [vmem:[%s460 + $0x7c] sm:$0xf] %v2353
        $region75: #{sage_forward.3} parent=62 // pred_fallthru
          _
        %s2418 = smul.u32 32, %s21
        %p2419 = scmp.lt.s32.totalorder %s2418, 127
        %s2420 = scalar_select %p2419, %s2418, 127
        %s2421 = smul.addr %s2420, 4
        %s2422 = scalar_lea.vmem %s6, %s2421
        // Predicated region
        $region76: #{sage_forward.3} parent=62 // pred_check
          %p2423 = pneg %p190
        $region77: #{sage_forward.3} parent=62 // pred_check_branch
          %2425 = sbr.rel (%p2423) target = $region79
        $region78: #{sage_forward.3} parent=62 // pred_region
          %s2426 = smul.u32 32, %s21
        $region79: #{sage_forward.3} parent=62 // pred_fallthru
          _
      $region63: #{sage_forward.3} parent=5 // pred_fallthru
        _
      %p2427 = scmp.le.s32.totalorder 2, %s12
      // Predicated region
      $region80: #{sage_forward.3} parent=5 // pred_check
        %p2428 = pneg %p2427
      $region81: #{sage_forward.3} parent=5 // pred_check_branch
        %2430 = sbr.rel (%p2428) target = $region83
      $region82: #{sage_forward.3} parent=5 // pred_region
        %s2431 = ssub.s32 %s12, 2
        // Predicated region
        $region84: #{sage_forward.3} parent=82 // pred_check
          %p2432 = pneg %p196
        $region85: #{sage_forward.3} parent=82 // pred_check_branch
          %2434 = sbr.rel (%p2432) target = $region87
        $region86: #{sage_forward.3} parent=82 // pred_region
          %s2435 = smul.u32 32, %s23
          %p2436 = scmp.lt.s32.totalorder %s2435, 127
          %s2437 = scalar_select %p2436, %s2435, 127
          %s2438 = smul.addr %s2437, 4
          %s2439 = scalar_lea.vmem %s6, %s2438
        $region87: #{sage_forward.3} parent=82 // pred_fallthru
          _
      $region83: #{sage_forward.3} parent=5 // pred_fallthru
        _
    $region6: #{sage_forward.3} parent=1 // loop_footer
      %s16 = sadd.s32 1, %s12
    $region7: #{sage_forward.3} parent=1 // loop_footer_branch
      %11 = sbr.rel target = $region3
    $region8: #{sage_forward.3} parent=1 // loop_exit
      _

// kernel: sage_forward.5
$region0: #{sage_forward.5}
  #allocation0 [shape = 'u32[]', space=smem, size = 0x4, offset = 0x4, fixed_abs, tag = 'smem constant byte address 0x4 - core index']
  #allocation1 [shape = 'u32[144,128]{1,0:T(1,128)}', space=vmem, size = 0x12000, scoped, tag = 'internal scratch']
  #allocation2 [shape = 'f32[256,128]{1,0:T(8,128)}', space=vmem, size = 0x20000, scoped, tag = 'scratch operand']
  %s0 = inlined_call_operand.vmem [shape: bf16[1024,1024], index: 0, kind: input, shape index: {}]
  %s1 = inlined_call_operand.vmem [shape: bf16[1024,128], index: 1, kind: input, shape index: {}, may-alias: {1,2}]
  %s2 = inlined_call_operand.vmem [shape: bf16[1024,128], index: 2, kind: input, shape index: {}, may-alias: {1,2}]
  %s3 = inlined_call_operand.vmem [shape: bf16[128,128], index: 3, kind: input, shape index: {}]
  %s4 = inlined_call_operand.vmem [shape: bf16[128,128], index: 4, kind: input, shape index: {}]
  %s5 = inlined_call_operand.vmem [shape: f32[1,128], index: 5, kind: input, shape index: {}]
  %s6 = inlined_call_operand.vmem [shape: f32[1024,128], index: 6, kind: output, shape index: {}]
  %s7 = sld [smem:[#allocation0]]
  $region88: #{sage_forward.5} parent=0
    _
  %s9 = ssub.s32 1, %s7
  %s10 = scalar_select 0, %s9, %s7
  $region1: #{sage_forward.5} parent=0
    #allocation3 [shape = 'u8[524288]{0}', space=vmem, size = 0x80000, scoped, tag = 'input window, operand 0']
    loop: start=0, step=1, limit=10
    $region2: #{sage_forward.5} parent=1 // loop_pre_header
      _
    $region3: #{sage_forward.5} parent=1 // loop_header
      %s12 = sphi 0, %s16
      %p13 = scmp.ge.s32.totalorder %s12, 10
      %s19 = sphi 0, %s31
      %s20 = sphi 0, %s27
      %s21 = sphi 0, %s19
      %s22 = sphi 0, %s20
      %s23 = sphi 0, %s21
      %s24 = sphi 0, %s22
      %s36 = sphi 0, %s38
      %s39 = sphi 0, %s36
      %s40 = sphi 0, %s39
      %s56 = sphi 0, %s40
      %s62 = sphi 0, %s64
      %s65 = sphi 0, %s62
      %s66 = sphi 0, %s65
      %s82 = sphi 0, %s66
      %s88 = sphi 0, %s90
      %s91 = sphi 0, %s88
      %s92 = sphi 0, %s91
      %s108 = sphi 0, %s92
      %s112 = sphi 0, %s112
      %s114 = sphi 0, %s112
      %s115 = sphi 0, %s114
      %s129 = sphi 0, %s115
      %s133 = sphi 0, %s133
      %s135 = sphi 0, %s133
      %s136 = sphi 0, %s135
      %s150 = sphi 0, %s136
      %s154 = sphi 0, %s154
      %s156 = sphi 0, %s154
      %s157 = sphi 0, %s156
      %s171 = sphi 0, %s157
      %s177 = sphi 0, %s179
      %s180 = sphi 0, %s177
      %s181 = sphi 0, %s180
      %s197 = sphi 0, %s181
    $region4: #{sage_forward.5} parent=1 // loop_header_branch
      %15 = sbr.rel (%p13) target = $region8
    $region5: #{sage_forward.5} parent=1 // loop_body
      %s17 = ssub.s32 %s12, 1
      %s18 = ssub.s32 %s12, 2
      %s25 = sadd.s32 1, %s20
      %p26 = scmp.ge.s32.totalorder %s25, 2
      %s27 = scalar_select %p26, 0, %s25
      %s28 = sadd.s32 1, %s19
      %s29 = scalar_select %p26, %s28, %s19
      %p30 = scmp.ge.s32.totalorder %s29, 4
      %s31 = scalar_select %p30, 0, %s29
      %s32 = ssub.s32 %s19, %s31
      %s33 = ssub.s32 %s20, %s27
      %s34 = sor.u32 %s32, %s33
      %p35 = scmp.eq.s32.totalorder %s34, 0
      %s37 = sadd.s32 %s36, 1
      %s38 = scalar_select %p35, %s36, %s37
      %p41 = pneg %p35
      %p42 = scmp.eq.s32.totalorder %s12, 7
      %p43 = por %p41, %p42
      %p44 = scmp.ne.s32.totalorder %s36, %s39
      %p45 = scmp.eq.s32.totalorder %s12, 0
      %p46 = por %p44, %p45
      %p47 = scmp.ne.s32.totalorder %s36, %s39
      %p48 = scmp.eq.s32.totalorder %s17, 7
      %p49 = por %p47, %p48
      %p50 = scmp.ne.s32.totalorder %s39, %s40
      %p51 = scmp.eq.s32.totalorder %s17, 0
      %p52 = por %p50, %p51
      %p53 = scmp.ne.s32.totalorder %s39, %s40
      %p54 = scmp.eq.s32.totalorder %s18, 7
      %p55 = por %p53, %p54
      %p57 = scmp.ne.s32.totalorder %s40, %s56
      %p58 = scmp.eq.s32.totalorder %s18, 0
      %p59 = por %p57, %p58
      %s60 = ssub.s32 %s20, %s27
      %p61 = scmp.eq.s32.totalorder %s60, 0
      %s63 = sadd.s32 %s62, 1
      %s64 = scalar_select %p61, %s62, %s63
      %p67 = pneg %p61
      %p68 = scmp.eq.s32.totalorder %s12, 7
      %p69 = por %p67, %p68
      %p70 = scmp.ne.s32.totalorder %s62, %s65
      %p71 = scmp.eq.s32.totalorder %s12, 0
      %p72 = por %p70, %p71
      %p73 = scmp.ne.s32.totalorder %s62, %s65
      %p74 = scmp.eq.s32.totalorder %s17, 7
      %p75 = por %p73, %p74
      %p76 = scmp.ne.s32.totalorder %s65, %s66
      %p77 = scmp.eq.s32.totalorder %s17, 0
      %p78 = por %p76, %p77
      %p79 = scmp.ne.s32.totalorder %s65, %s66
      %p80 = scmp.eq.s32.totalorder %s18, 7
      %p81 = por %p79, %p80
      %p83 = scmp.ne.s32.totalorder %s66, %s82
      %p84 = scmp.eq.s32.totalorder %s18, 0
      %p85 = por %p83, %p84
      %s86 = ssub.s32 %s19, %s31
      %p87 = scmp.eq.s32.totalorder %s86, 0
      %s89 = sadd.s32 %s88, 1
      %s90 = scalar_select %p87, %s88, %s89
      %p93 = pneg %p87
      %p94 = scmp.eq.s32.totalorder %s12, 7
      %p95 = por %p93, %p94
      %p96 = scmp.ne.s32.totalorder %s88, %s91
      %p97 = scmp.eq.s32.totalorder %s12, 0
      %p98 = por %p96, %p97
      %p99 = scmp.ne.s32.totalorder %s88, %s91
      %p100 = scmp.eq.s32.totalorder %s17, 7
      %p101 = por %p99, %p100
      %p102 = scmp.ne.s32.totalorder %s91, %s92
      %p103 = scmp.eq.s32.totalorder %s17, 0
      %p104 = por %p102, %p103
      %p105 = scmp.ne.s32.totalorder %s91, %s92
      %p106 = scmp.eq.s32.totalorder %s18, 7
      %p107 = por %p105, %p106
      %p109 = scmp.ne.s32.totalorder %s92, %s108
      %p110 = scmp.eq.s32.totalorder %s18, 0
      %p111 = por %p109, %p110
      %s113 = sadd.s32 %s112, 1
      %p116 = scmp.eq.s32.totalorder %s12, 7
      %p117 = scmp.ne.s32.totalorder %s112, %s114
      %p118 = scmp.eq.s32.totalorder %s12, 0
      %p119 = por %p117, %p118
      %p120 = scmp.ne.s32.totalorder %s112, %s114
      %p121 = scmp.eq.s32.totalorder %s17, 7
      %p122 = por %p120, %p121
      %p123 = scmp.ne.s32.totalorder %s114, %s115
      %p124 = scmp.eq.s32.totalorder %s17, 0
      %p125 = por %p123, %p124
      %p126 = scmp.ne.s32.totalorder %s114, %s115
      %p127 = scmp.eq.s32.totalorder %s18, 7
      %p128 = por %p126, %p127
      %p130 = scmp.ne.s32.totalorder %s115, %s129
      %p131 = scmp.eq.s32.totalorder %s18, 0
      %p132 = por %p130, %p131
      %s134 = sadd.s32 %s133, 1
      %p137 = scmp.eq.s32.totalorder %s12, 7
      %p138 = scmp.ne.s32.totalorder %s133, %s135
      %p139 = scmp.eq.s32.totalorder %s12, 0
      %p140 = por %p138, %p139
      %p141 = scmp.ne.s32.totalorder %s133, %s135
      %p142 = scmp.eq.s32.totalorder %s17, 7
      %p143 = por %p141, %p142
      %p144 = scmp.ne.s32.totalorder %s135, %s136
      %p145 = scmp.eq.s32.totalorder %s17, 0
      %p146 = por %p144, %p145
      %p147 = scmp.ne.s32.totalorder %s135, %s136
      %p148 = scmp.eq.s32.totalorder %s18, 7
      %p149 = por %p147, %p148
      %p151 = scmp.ne.s32.totalorder %s136, %s150
      %p152 = scmp.eq.s32.totalorder %s18, 0
      %p153 = por %p151, %p152
      %s155 = sadd.s32 %s154, 1
      %p158 = scmp.eq.s32.totalorder %s12, 7
      %p159 = scmp.ne.s32.totalorder %s154, %s156
      %p160 = scmp.eq.s32.totalorder %s12, 0
      %p161 = por %p159, %p160
      %p162 = scmp.ne.s32.totalorder %s154, %s156
      %p163 = scmp.eq.s32.totalorder %s17, 7
      %p164 = por %p162, %p163
      %p165 = scmp.ne.s32.totalorder %s156, %s157
      %p166 = scmp.eq.s32.totalorder %s17, 0
      %p167 = por %p165, %p166
      %p168 = scmp.ne.s32.totalorder %s156, %s157
      %p169 = scmp.eq.s32.totalorder %s18, 7
      %p170 = por %p168, %p169
      %p172 = scmp.ne.s32.totalorder %s157, %s171
      %p173 = scmp.eq.s32.totalorder %s18, 0
      %p174 = por %p172, %p173
      %s175 = ssub.s32 %s19, %s31
      %p176 = scmp.eq.s32.totalorder %s175, 0
      %s178 = sadd.s32 %s177, 1
      %s179 = scalar_select %p176, %s177, %s178
      %p182 = pneg %p176
      %p183 = scmp.eq.s32.totalorder %s12, 7
      %p184 = por %p182, %p183
      %p185 = scmp.ne.s32.totalorder %s177, %s180
      %p186 = scmp.eq.s32.totalorder %s12, 0
      %p187 = por %p185, %p186
      %p188 = scmp.ne.s32.totalorder %s177, %s180
      %p189 = scmp.eq.s32.totalorder %s17, 7
      %p190 = por %p188, %p189
      %p191 = scmp.ne.s32.totalorder %s180, %s181
      %p192 = scmp.eq.s32.totalorder %s17, 0
      %p193 = por %p191, %p192
      %p194 = scmp.ne.s32.totalorder %s180, %s181
      %p195 = scmp.eq.s32.totalorder %s18, 7
      %p196 = por %p194, %p195
      %p198 = scmp.ne.s32.totalorder %s181, %s197
      %p199 = scmp.eq.s32.totalorder %s18, 0
      %p200 = por %p198, %p199
      %p201 = scmp.le.s32.totalorder 1, %s12
      %p202 = scmp.lt.s32.totalorder %s12, 9
      %p203 = pnand %p201, %p202
      %p204 = pneg %p203
      // Predicated region
      $region9: #{sage_forward.5} parent=5 // pred_check
        _
      $region10: #{sage_forward.5} parent=5 // pred_check_branch
        %206 = sbr.rel (%p203) target = $region12
      $region11: #{sage_forward.5} parent=5 // pred_region
        %s207 = ssub.s32 %s12, 1
        // Predicated region
        $region13: #{sage_forward.5} parent=11 // pred_check
          %p208 = pneg %p125
        $region14: #{sage_forward.5} parent=11 // pred_check_branch
          %210 = sbr.rel (%p208) target = $region16
        $region15: #{sage_forward.5} parent=11 // pred_region
          _
        $region16: #{sage_forward.5} parent=11 // pred_fallthru
          _
        // Predicated region
        $region17: #{sage_forward.5} parent=11 // pred_check
          %p211 = pneg %p146
        $region18: #{sage_forward.5} parent=11 // pred_check_branch
          %213 = sbr.rel (%p211) target = $region20
        $region19: #{sage_forward.5} parent=11 // pred_region
          _
        $region20: #{sage_forward.5} parent=11 // pred_fallthru
          _
        // Predicated region
        $region21: #{sage_forward.5} parent=11 // pred_check
          %p214 = pneg %p167
        $region22: #{sage_forward.5} parent=11 // pred_check_branch
          %216 = sbr.rel (%p214) target = $region24
        $region23: #{sage_forward.5} parent=11 // pred_region
          _
        $region24: #{sage_forward.5} parent=11 // pred_fallthru
          _
      $region12: #{sage_forward.5} parent=5 // pred_fallthru
        _
      %p217 = scmp.lt.s32.totalorder %s12, 8
      // Predicated region
      $region25: #{sage_forward.5} parent=5 // pred_check
        %p218 = pneg %p217
      $region26: #{sage_forward.5} parent=5 // pred_check_branch
        %220 = sbr.rel (%p218) target = $region28
      $region27: #{sage_forward.5} parent=5 // pred_region
        // Predicated region
        $region29: #{sage_forward.5} parent=27 // pred_check
          %p221 = pneg %p46
        $region30: #{sage_forward.5} parent=27 // pred_check_branch
          %223 = sbr.rel (%p221) target = $region32
        $region31: #{sage_forward.5} parent=27 // pred_region
          %s224 = sand.u32 %s36, 1
          %s225 = sand.u32 %s36, 1
          %s226 = smul.addr %s225, 512
          %s227 = scalar_lea.vmem [#allocation3], %s226
          %s228 = smul.u32 32, %s19
          %s229 = smul.u32 4, %s20
          %s230 = smul.addr %s228, 8
          %s231 = sadd.s32 %s229, %s230
          %s232 = smul.addr %s231, 4
          %s233 = scalar_lea.vmem %s0, %s232
          // Predicated region
          $region33: #{sage_forward.5} parent=31 // pred_check
            _
          $region34: #{sage_forward.5} parent=31 // pred_check_branch
            %235 = sbr.rel (0) target = $region36
          $region35: #{sage_forward.5} parent=31 // pred_region
            // Predicated region
            $region37: #{sage_forward.5} parent=35 // pred_check
              _
            $region38: #{sage_forward.5} parent=35 // pred_check_branch
              %237 = sbr.rel (0) target = $region40
            $region39: #{sage_forward.5} parent=35 // pred_region
              loop: start=0, step=1, limit=1
              $region41: #{sage_forward.5} parent=39 // loop_pre_header
                _
              $region42: #{sage_forward.5} parent=39 // loop_header
                %s239 = sphi 0, %s243
                %p240 = scmp.ge.s32.totalorder %s239, 1
                %s244 = sphi %s233, %s233
                %s245 = sphi %s227, %s227
              $region43: #{sage_forward.5} parent=39 // loop_header_branch
                %242 = sbr.rel (%p240) target = $region47
              $region44: #{sage_forward.5} parent=39 // loop_body
                %v246 = vld [vmem:[%s244] sm:$0xff]
                %247 = vst [vmem:[%s245] sm:$0xff] %v246
                %v248 = vld [vmem:[%s244 + $0x8] sm:$0xff]
                %249 = vst [vmem:[%s245 + $0x8] sm:$0xff] %v248
                %v250 = vld [vmem:[%s244 + $0x20] sm:$0xff]
                %251 = vst [vmem:[%s245 + $0x10] sm:$0xff] %v250
                %v252 = vld [vmem:[%s244 + $0x28] sm:$0xff]
                %253 = vst [vmem:[%s245 + $0x18] sm:$0xff] %v252
                %v254 = vld [vmem:[%s244 + $0x40] sm:$0xff]
                %255 = vst [vmem:[%s245 + $0x20] sm:$0xff] %v254
                %v256 = vld [vmem:[%s244 + $0x48] sm:$0xff]
                %257 = vst [vmem:[%s245 + $0x28] sm:$0xff] %v256
                %v258 = vld [vmem:[%s244 + $0x60] sm:$0xff]
                %259 = vst [vmem:[%s245 + $0x30] sm:$0xff] %v258
                %v260 = vld [vmem:[%s244 + $0x68] sm:$0xff]
                %261 = vst [vmem:[%s245 + $0x38] sm:$0xff] %v260
                %v262 = vld [vmem:[%s244 + $0x80] sm:$0xff]
                %263 = vst [vmem:[%s245 + $0x40] sm:$0xff] %v262
                %v264 = vld [vmem:[%s244 + $0x88] sm:$0xff]
                %265 = vst [vmem:[%s245 + $0x48] sm:$0xff] %v264
                %v266 = vld [vmem:[%s244 + $0xa0] sm:$0xff]
                %267 = vst [vmem:[%s245 + $0x50] sm:$0xff] %v266
                %v268 = vld [vmem:[%s244 + $0xa8] sm:$0xff]
                %269 = vst [vmem:[%s245 + $0x58] sm:$0xff] %v268
                %v270 = vld [vmem:[%s244 + $0xc0] sm:$0xff]
                %271 = vst [vmem:[%s245 + $0x60] sm:$0xff] %v270
                %v272 = vld [vmem:[%s244 + $0xc8] sm:$0xff]
                %273 = vst [vmem:[%s245 + $0x68] sm:$0xff] %v272
                %v274 = vld [vmem:[%s244 + $0xe0] sm:$0xff]
                %275 = vst [vmem:[%s245 + $0x70] sm:$0xff] %v274
                %v276 = vld [vmem:[%s244 + $0xe8] sm:$0xff]
                %277 = vst [vmem:[%s245 + $0x78] sm:$0xff] %v276
                %v278 = vld [vmem:[%s244 + $0x100] sm:$0xff]
                %279 = vst [vmem:[%s245 + $0x80] sm:$0xff] %v278
                %v280 = vld [vmem:[%s244 + $0x108] sm:$0xff]
                %281 = vst [vmem:[%s245 + $0x88] sm:$0xff] %v280
                %v282 = vld [vmem:[%s244 + $0x120] sm:$0xff]
                %283 = vst [vmem:[%s245 + $0x90] sm:$0xff] %v282
                %v284 = vld [vmem:[%s244 + $0x128] sm:$0xff]
                %285 = vst [vmem:[%s245 + $0x98] sm:$0xff] %v284
                %v286 = vld [vmem:[%s244 + $0x140] sm:$0xff]
                %287 = vst [vmem:[%s245 + $0xa0] sm:$0xff] %v286
                %v288 = vld [vmem:[%s244 + $0x148] sm:$0xff]
                %289 = vst [vmem:[%s245 + $0xa8] sm:$0xff] %v288
                %v290 = vld [vmem:[%s244 + $0x160] sm:$0xff]
                %291 = vst [vmem:[%s245 + $0xb0] sm:$0xff] %v290
                %v292 = vld [vmem:[%s244 + $0x168] sm:$0xff]
                %293 = vst [vmem:[%s245 + $0xb8] sm:$0xff] %v292
                %v294 = vld [vmem:[%s244 + $0x180] sm:$0xff]
                %295 = vst [vmem:[%s245 + $0xc0] sm:$0xff] %v294
                %v296 = vld [vmem:[%s244 + $0x188] sm:$0xff]
                %297 = vst [vmem:[%s245 + $0xc8] sm:$0xff] %v296
                %v298 = vld [vmem:[%s244 + $0x1a0] sm:$0xff]
                %299 = vst [vmem:[%s245 + $0xd0] sm:$0xff] %v298
                %v300 = vld [vmem:[%s244 + $0x1a8] sm:$0xff]
                %301 = vst [vmem:[%s245 + $0xd8] sm:$0xff] %v300
                %v302 = vld [vmem:[%s244 + $0x1c0] sm:$0xff]
                %303 = vst [vmem:[%s245 + $0xe0] sm:$0xff] %v302
                %v304 = vld [vmem:[%s244 + $0x1c8] sm:$0xff]
                %305 = vst [vmem:[%s245 + $0xe8] sm:$0xff] %v304
                %v306 = vld [vmem:[%s244 + $0x1e0] sm:$0xff]
                %307 = vst [vmem:[%s245 + $0xf0] sm:$0xff] %v306
                %v308 = vld [vmem:[%s244 + $0x1e8] sm:$0xff]
                %309 = vst [vmem:[%s245 + $0xf8] sm:$0xff] %v308
                %v310 = vld [vmem:[%s244 + $0x200] sm:$0xff]
                %311 = vst [vmem:[%s245 + $0x100] sm:$0xff] %v310
                %v312 = vld [vmem:[%s244 + $0x208] sm:$0xff]
                %313 = vst [vmem:[%s245 + $0x108] sm:$0xff] %v312
                %v314 = vld [vmem:[%s244 + $0x220] sm:$0xff]
                %315 = vst [vmem:[%s245 + $0x110] sm:$0xff] %v314
                %v316 = vld [vmem:[%s244 + $0x228] sm:$0xff]
                %317 = vst [vmem:[%s245 + $0x118] sm:$0xff] %v316
                %v318 = vld [vmem:[%s244 + $0x240] sm:$0xff]
                %319 = vst [vmem:[%s245 + $0x120] sm:$0xff] %v318
                %v320 = vld [vmem:[%s244 + $0x248] sm:$0xff]
                %321 = vst [vmem:[%s245 + $0x128] sm:$0xff] %v320
                %v322 = vld [vmem:[%s244 + $0x260] sm:$0xff]
                %323 = vst [vmem:[%s245 + $0x130] sm:$0xff] %v322
                %v324 = vld [vmem:[%s244 + $0x268] sm:$0xff]
                %325 = vst [vmem:[%s245 + $0x138] sm:$0xff] %v324
                %v326 = vld [vmem:[%s244 + $0x280] sm:$0xff]
                %327 = vst [vmem:[%s245 + $0x140] sm:$0xff] %v326
                %v328 = vld [vmem:[%s244 + $0x288] sm:$0xff]
                %329 = vst [vmem:[%s245 + $0x148] sm:$0xff] %v328
                %v330 = vld [vmem:[%s244 + $0x2a0] sm:$0xff]
                %331 = vst [vmem:[%s245 + $0x150] sm:$0xff] %v330
                %v332 = vld [vmem:[%s244 + $0x2a8] sm:$0xff]
                %333 = vst [vmem:[%s245 + $0x158] sm:$0xff] %v332
                %v334 = vld [vmem:[%s244 + $0x2c0] sm:$0xff]
                %335 = vst [vmem:[%s245 + $0x160] sm:$0xff] %v334
                %v336 = vld [vmem:[%s244 + $0x2c8] sm:$0xff]
                %337 = vst [vmem:[%s245 + $0x168] sm:$0xff] %v336
                %v338 = vld [vmem:[%s244 + $0x2e0] sm:$0xff]
                %339 = vst [vmem:[%s245 + $0x170] sm:$0xff] %v338
                %v340 = vld [vmem:[%s244 + $0x2e8] sm:$0xff]
                %341 = vst [vmem:[%s245 + $0x178] sm:$0xff] %v340
                %v342 = vld [vmem:[%s244 + $0x300] sm:$0xff]
                %343 = vst [vmem:[%s245 + $0x180] sm:$0xff] %v342
                %v344 = vld [vmem:[%s244 + $0x308] sm:$0xff]
                %345 = vst [vmem:[%s245 + $0x188] sm:$0xff] %v344
                %v346 = vld [vmem:[%s244 + $0x320] sm:$0xff]
                %347 = vst [vmem:[%s245 + $0x190] sm:$0xff] %v346
                %v348 = vld [vmem:[%s244 + $0x328] sm:$0xff]
                %349 = vst [vmem:[%s245 + $0x198] sm:$0xff] %v348
                %v350 = vld [vmem:[%s244 + $0x340] sm:$0xff]
                %351 = vst [vmem:[%s245 + $0x1a0] sm:$0xff] %v350
                %v352 = vld [vmem:[%s244 + $0x348] sm:$0xff]
                %353 = vst [vmem:[%s245 + $0x1a8] sm:$0xff] %v352
                %v354 = vld [vmem:[%s244 + $0x360] sm:$0xff]
                %355 = vst [vmem:[%s245 + $0x1b0] sm:$0xff] %v354
                %v356 = vld [vmem:[%s244 + $0x368] sm:$0xff]
                %357 = vst [vmem:[%s245 + $0x1b8] sm:$0xff] %v356
                %v358 = vld [vmem:[%s244 + $0x380] sm:$0xff]
                %359 = vst [vmem:[%s245 + $0x1c0] sm:$0xff] %v358
                %v360 = vld [vmem:[%s244 + $0x388] sm:$0xff]
                %361 = vst [vmem:[%s245 + $0x1c8] sm:$0xff] %v360
                %v362 = vld [vmem:[%s244 + $0x3a0] sm:$0xff]
                %363 = vst [vmem:[%s245 + $0x1d0] sm:$0xff] %v362
                %v364 = vld [vmem:[%s244 + $0x3a8] sm:$0xff]
                %365 = vst [vmem:[%s245 + $0x1d8] sm:$0xff] %v364
                %v366 = vld [vmem:[%s244 + $0x3c0] sm:$0xff]
                %367 = vst [vmem:[%s245 + $0x1e0] sm:$0xff] %v366
                %v368 = vld [vmem:[%s244 + $0x3c8] sm:$0xff]
                %369 = vst [vmem:[%s245 + $0x1e8] sm:$0xff] %v368
                %v370 = vld [vmem:[%s244 + $0x3e0] sm:$0xff]
                %371 = vst [vmem:[%s245 + $0x1f0] sm:$0xff] %v370
                %v372 = vld [vmem:[%s244 + $0x3e8] sm:$0xff]
                %373 = vst [vmem:[%s245 + $0x1f8] sm:$0xff] %v372
              $region45: #{sage_forward.5} parent=39 // loop_footer
                %s243 = sadd.s32 1, %s239
              $region46: #{sage_forward.5} parent=39 // loop_footer_branch
                %238 = sbr.rel target = $region42
              $region47: #{sage_forward.5} parent=39 // loop_exit
                _
            $region40: #{sage_forward.5} parent=35 // pred_fallthru
              _
            // Predicated region
            $region48: #{sage_forward.5} parent=35 // pred_check
              _
            $region49: #{sage_forward.5} parent=35 // pred_check_branch
              %375 = sbr.rel target = $region51
            $region50: #{sage_forward.5} parent=35 // pred_region
              _
            $region51: #{sage_forward.5} parent=35 // pred_fallthru
              _
          $region36: #{sage_forward.5} parent=31 // pred_fallthru
            _
          %376 = vnop
        $region32: #{sage_forward.5} parent=27 // pred_fallthru
          _
        // Predicated region
        $region52: #{sage_forward.5} parent=27 // pred_check
          %p377 = pneg %p72
        $region53: #{sage_forward.5} parent=27 // pred_check_branch
          %379 = sbr.rel (%p377) target = $region55
        $region54: #{sage_forward.5} parent=27 // pred_region
          %s380 = smul.u32 64, %s20
          %p381 = scmp.lt.s32.totalorder %s380, 127
          %s382 = scalar_select %p381, %s380, 127
          %s383 = smul.addr %s382, 4
          %s384 = scalar_lea.vmem %s1, %s383
          %s385 = smul.u32 64, %s20
        $region55: #{sage_forward.5} parent=27 // pred_fallthru
          _
        // Predicated region
        $region56: #{sage_forward.5} parent=27 // pred_check
          %p386 = pneg %p98
        $region57: #{sage_forward.5} parent=27 // pred_check_branch
          %388 = sbr.rel (%p386) target = $region59
        $region58: #{sage_forward.5} parent=27 // pred_region
          %s389 = smul.u32 32, %s19
          %p390 = scmp.lt.s32.totalorder %s389, 127
          %s391 = scalar_select %p390, %s389, 127
          %s392 = smul.addr %s391, 4
          %s393 = scalar_lea.vmem %s2, %s392
          %s394 = smul.u32 32, %s19
        $region59: #{sage_forward.5} parent=27 // pred_fallthru
          _
      $region28: #{sage_forward.5} parent=5 // pred_fallthru
        _
      %p395 = scmp.le.s32.totalorder 1, %s12
      %p396 = scmp.lt.s32.totalorder %s12, 9
      %p397 = pnand %p395, %p396
      %p398 = pneg %p397
      // Predicated region
      $region60: #{sage_forward.5} parent=5 // pred_check
        _
      $region61: #{sage_forward.5} parent=5 // pred_check_branch
        %400 = sbr.rel (%p397) target = $region63
      $region62: #{sage_forward.5} parent=5 // pred_region
        %s401 = ssub.s32 %s12, 1
        %s402 = sand.u32 %s39, 1
        %s403 = sand.u32 %s39, 1
        %s404 = smul.addr %s403, 512
        %s405 = scalar_lea.vmem [#allocation3], %s404
        // Predicated region
        $region64: #{sage_forward.5} parent=62 // pred_check
          %p406 = pneg %p52
        $region65: #{sage_forward.5} parent=62 // pred_check_branch
          %408 = sbr.rel (%p406) target = $region67
        $region66: #{sage_forward.5} parent=62 // pred_region
          _
        $region67: #{sage_forward.5} parent=62 // pred_fallthru
          _
        %s409 = sand.u32 %s39, 1
        %s410 = sand.u32 %s39, 1
        %s411 = smul.addr %s410, 512
        %s412 = scalar_lea.vmem [#allocation3], %s411
        %p413 = pneg %p52
        %p414 = pneg %p49
        %s415 = smul.u32 64, %s22
        %p416 = scmp.lt.s32.totalorder %s415, 127
        %s417 = scalar_select %p416, %s415, 127
        %s418 = smul.addr %s417, 4
        %s419 = scalar_lea.vmem %s1, %s418
        %p420 = pneg %p78
        %p421 = pneg %p75
        %s422 = smul.u32 32, %s21
        %p423 = scmp.lt.s32.totalorder %s422, 127
        %s424 = scalar_select %p423, %s422, 127
        %s425 = smul.addr %s424, 4
        %s426 = scalar_lea.vmem %s2, %s425
        %p427 = pneg %p104
        %p428 = pneg %p101
        %p429 = pneg %p125
        %p430 = pneg %p122
        %p431 = pneg %p146
        %p432 = pneg %p143
        %p433 = pneg %p167
        %p434 = pneg %p164
        %p435 = pneg %p193
        %p436 = pneg %p190
        %s437 = smul.u32 32, %s21
        %p438 = scmp.lt.s32.totalorder %s437, 127
        %s439 = scalar_select %p438, %s437, 127
        %s440 = smul.addr %s439, 8
        %s441 = scalar_lea.vmem %s6, %s440
        %s442 = smul.u32 32, %s21
        %s443 = smul.u32 4, %s22
        %s444 = smul.u32 64, %s22
        %p445 = scmp.lt.s32.totalorder %s444, 127
        %s446 = scalar_select %p445, %s444, 127
        %s447 = smul.addr %s446, 4
        %s448 = scalar_lea.vmem %s1, %s447
        %s449 = smul.u32 64, %s22
        %s450 = smul.u32 32, %s21
        %p451 = scmp.lt.s32.totalorder %s450, 127
        %s452 = scalar_select %p451, %s450, 127
        %s453 = smul.addr %s452, 4
        %s454 = scalar_lea.vmem %s2, %s453
        %s455 = smul.u32 32, %s21
        %s456 = smul.u32 32, %s21
        %p457 = scmp.lt.s32.totalorder %s456, 127
        %s458 = scalar_select %p457, %s456, 127
        %s459 = smul.addr %s458, 8
        %s460 = scalar_lea.vmem %s6, %s459
        %s461 = smul.u32 32, %s21
        %p463 = scmp.eq.s32.totalorder %s22, 0
        // Predicated region
        $region68: #{sage_forward.5} parent=62 // pred_check
          %p464 = pneg %p463
        $region69: #{sage_forward.5} parent=62 // pred_check_branch
          %466 = sbr.rel (%p464) target = $region71
        $region70: #{sage_forward.5} parent=62 // pred_region
          %467 = vst [vmem:[#allocation2] sm:$0xff] 0.0
          %468 = vst [vmem:[#allocation2 + $0x8] sm:$0xff] 0.0
          %469 = vst [vmem:[#allocation2 + $0x10] sm:$0xff] 0.0
          %470 = vst [vmem:[#allocation2 + $0x18] sm:$0xff] 0.0
          %471 = vst [vmem:[#allocation2 + $0x20] sm:$0xff] 0.0
          %472 = vst [vmem:[#allocation2 + $0x28] sm:$0xff] 0.0
          %473 = vst [vmem:[#allocation2 + $0x30] sm:$0xff] 0.0
          %474 = vst [vmem:[#allocation2 + $0x38] sm:$0xff] 0.0
          %475 = vst [vmem:[#allocation2 + $0x40] sm:$0xff] 0.0
          %476 = vst [vmem:[#allocation2 + $0x48] sm:$0xff] 0.0
          %477 = vst [vmem:[#allocation2 + $0x50] sm:$0xff] 0.0
          %478 = vst [vmem:[#allocation2 + $0x58] sm:$0xff] 0.0
          %479 = vst [vmem:[#allocation2 + $0x60] sm:$0xff] 0.0
          %480 = vst [vmem:[#allocation2 + $0x68] sm:$0xff] 0.0
          %481 = vst [vmem:[#allocation2 + $0x70] sm:$0xff] 0.0
          %482 = vst [vmem:[#allocation2 + $0x78] sm:$0xff] 0.0
          %483 = vst [vmem:[#allocation2 + $0x80] sm:$0xff] 0.0
          %484 = vst [vmem:[#allocation2 + $0x88] sm:$0xff] 0.0
          %485 = vst [vmem:[#allocation2 + $0x90] sm:$0xff] 0.0
          %486 = vst [vmem:[#allocation2 + $0x98] sm:$0xff] 0.0
          %487 = vst [vmem:[#allocation2 + $0xa0] sm:$0xff] 0.0
          %488 = vst [vmem:[#allocation2 + $0xa8] sm:$0xff] 0.0
          %489 = vst [vmem:[#allocation2 + $0xb0] sm:$0xff] 0.0
          %490 = vst [vmem:[#allocation2 + $0xb8] sm:$0xff] 0.0
          %491 = vst [vmem:[#allocation2 + $0xc0] sm:$0xff] 0.0
          %492 = vst [vmem:[#allocation2 + $0xc8] sm:$0xff] 0.0
          %493 = vst [vmem:[#allocation2 + $0xd0] sm:$0xff] 0.0
          %494 = vst [vmem:[#allocation2 + $0xd8] sm:$0xff] 0.0
          %495 = vst [vmem:[#allocation2 + $0xe0] sm:$0xff] 0.0
          %496 = vst [vmem:[#allocation2 + $0xe8] sm:$0xff] 0.0
          %497 = vst [vmem:[#allocation2 + $0xf0] sm:$0xff] 0.0
          %498 = vst [vmem:[#allocation2 + $0xf8] sm:$0xff] 0.0
        $region71: #{sage_forward.5} parent=62 // pred_fallthru
          _
        %v499 = vld [vmem:[#allocation2] sm:$0xff]
        %v500 = vld [vmem:[#allocation2 + $0x8] sm:$0xff]
        %v501 = vld [vmem:[#allocation2 + $0x10] sm:$0xff]
        %v502 = vld [vmem:[#allocation2 + $0x18] sm:$0xff]
        %v503 = vld [vmem:[#allocation2 + $0x20] sm:$0xff]
        %v504 = vld [vmem:[#allocation2 + $0x28] sm:$0xff]
        %v505 = vld [vmem:[#allocation2 + $0x30] sm:$0xff]
        %v506 = vld [vmem:[#allocation2 + $0x38] sm:$0xff]
        %v507 = vld [vmem:[#allocation2 + $0x40] sm:$0xff]
        %v508 = vld [vmem:[#allocation2 + $0x48] sm:$0xff]
        %v509 = vld [vmem:[#allocation2 + $0x50] sm:$0xff]
        %v510 = vld [vmem:[#allocation2 + $0x58] sm:$0xff]
        %v511 = vld [vmem:[#allocation2 + $0x60] sm:$0xff]
        %v512 = vld [vmem:[#allocation2 + $0x68] sm:$0xff]
        %v513 = vld [vmem:[#allocation2 + $0x70] sm:$0xff]
        %v514 = vld [vmem:[#allocation2 + $0x78] sm:$0xff]
        %v515 = vld [vmem:[#allocation2 + $0x80] sm:$0xff]
        %v516 = vld [vmem:[#allocation2 + $0x88] sm:$0xff]
        %v517 = vld [vmem:[#allocation2 + $0x90] sm:$0xff]
        %v518 = vld [vmem:[#allocation2 + $0x98] sm:$0xff]
        %v519 = vld [vmem:[#allocation2 + $0xa0] sm:$0xff]
        %v520 = vld [vmem:[#allocation2 + $0xa8] sm:$0xff]
        %v521 = vld [vmem:[#allocation2 + $0xb0] sm:$0xff]
        %v522 = vld [vmem:[#allocation2 + $0xb8] sm:$0xff]
        %v523 = vld [vmem:[#allocation2 + $0xc0] sm:$0xff]
        %v524 = vld [vmem:[#allocation2 + $0xc8] sm:$0xff]
        %v525 = vld [vmem:[#allocation2 + $0xd0] sm:$0xff]
        %v526 = vld [vmem:[#allocation2 + $0xd8] sm:$0xff]
        %v527 = vld [vmem:[#allocation2 + $0xe0] sm:$0xff]
        %v528 = vld [vmem:[#allocation2 + $0xe8] sm:$0xff]
        %v529 = vld [vmem:[#allocation2 + $0xf0] sm:$0xff]
        %v530 = vld [vmem:[#allocation2 + $0xf8] sm:$0xff]
        %v531 = vld [vmem:[%s405] sm:$0xff]
        %v532 = vld [vmem:[%s405 + $0x8] sm:$0xff]
        %v533 = vld [vmem:[%s405 + $0x10] sm:$0xff]
        %v534 = vld [vmem:[%s405 + $0x18] sm:$0xff]
        %v535 = vld [vmem:[%s405 + $0x20] sm:$0xff]
        %v536 = vld [vmem:[%s405 + $0x28] sm:$0xff]
        %v537 = vld [vmem:[%s405 + $0x30] sm:$0xff]
        %v538 = vld [vmem:[%s405 + $0x38] sm:$0xff]
        %v539 = vld [vmem:[%s405 + $0x40] sm:$0xff]
        %v540 = vld [vmem:[%s405 + $0x48] sm:$0xff]
        %v541 = vld [vmem:[%s405 + $0x50] sm:$0xff]
        %v542 = vld [vmem:[%s405 + $0x58] sm:$0xff]
        %v543 = vld [vmem:[%s405 + $0x60] sm:$0xff]
        %v544 = vld [vmem:[%s405 + $0x68] sm:$0xff]
        %v545 = vld [vmem:[%s405 + $0x70] sm:$0xff]
        %v546 = vld [vmem:[%s405 + $0x78] sm:$0xff]
        %v547 = vld [vmem:[%s405 + $0x80] sm:$0xff]
        %v548 = vld [vmem:[%s405 + $0x88] sm:$0xff]
        %v549 = vld [vmem:[%s405 + $0x90] sm:$0xff]
        %v550 = vld [vmem:[%s405 + $0x98] sm:$0xff]
        %v551 = vld [vmem:[%s405 + $0xa0] sm:$0xff]
        %v552 = vld [vmem:[%s405 + $0xa8] sm:$0xff]
        %v553 = vld [vmem:[%s405 + $0xb0] sm:$0xff]
        %v554 = vld [vmem:[%s405 + $0xb8] sm:$0xff]
        %v555 = vld [vmem:[%s405 + $0xc0] sm:$0xff]
        %v556 = vld [vmem:[%s405 + $0xc8] sm:$0xff]
        %v557 = vld [vmem:[%s405 + $0xd0] sm:$0xff]
        %v558 = vld [vmem:[%s405 + $0xd8] sm:$0xff]
        %v559 = vld [vmem:[%s405 + $0xe0] sm:$0xff]
        %v560 = vld [vmem:[%s405 + $0xe8] sm:$0xff]
        %v561 = vld [vmem:[%s405 + $0xf0] sm:$0xff]
        %v562 = vld [vmem:[%s405 + $0xf8] sm:$0xff]
        %v563 = vld [vmem:[%s405 + $0x100] sm:$0xff]
        %v564 = vld [vmem:[%s405 + $0x108] sm:$0xff]
        %v565 = vld [vmem:[%s405 + $0x110] sm:$0xff]
        %v566 = vld [vmem:[%s405 + $0x118] sm:$0xff]
        %v567 = vld [vmem:[%s405 + $0x120] sm:$0xff]
        %v568 = vld [vmem:[%s405 + $0x128] sm:$0xff]
        %v569 = vld [vmem:[%s405 + $0x130] sm:$0xff]
        %v570 = vld [vmem:[%s405 + $0x138] sm:$0xff]
        %v571 = vld [vmem:[%s405 + $0x140] sm:$0xff]
        %v572 = vld [vmem:[%s405 + $0x148] sm:$0xff]
        %v573 = vld [vmem:[%s405 + $0x150] sm:$0xff]
        %v574 = vld [vmem:[%s405 + $0x158] sm:$0xff]
        %v575 = vld [vmem:[%s405 + $0x160] sm:$0xff]
        %v576 = vld [vmem:[%s405 + $0x168] sm:$0xff]
        %v577 = vld [vmem:[%s405 + $0x170] sm:$0xff]
        %v578 = vld [vmem:[%s405 + $0x178] sm:$0xff]
        %v579 = vld [vmem:[%s405 + $0x180] sm:$0xff]
        %v580 = vld [vmem:[%s405 + $0x188] sm:$0xff]
        %v581 = vld [vmem:[%s405 + $0x190] sm:$0xff]
        %v582 = vld [vmem:[%s405 + $0x198] sm:$0xff]
        %v583 = vld [vmem:[%s405 + $0x1a0] sm:$0xff]
        %v584 = vld [vmem:[%s405 + $0x1a8] sm:$0xff]
        %v585 = vld [vmem:[%s405 + $0x1b0] sm:$0xff]
        %v586 = vld [vmem:[%s405 + $0x1b8] sm:$0xff]
        %v587 = vld [vmem:[%s405 + $0x1c0] sm:$0xff]
        %v588 = vld [vmem:[%s405 + $0x1c8] sm:$0xff]
        %v589 = vld [vmem:[%s405 + $0x1d0] sm:$0xff]
        %v590 = vld [vmem:[%s405 + $0x1d8] sm:$0xff]
        %v591 = vld [vmem:[%s405 + $0x1e0] sm:$0xff]
        %v592 = vld [vmem:[%s405 + $0x1e8] sm:$0xff]
        %v593 = vld [vmem:[%s405 + $0x1f0] sm:$0xff]
        %v594 = vld [vmem:[%s405 + $0x1f8] sm:$0xff]
        %v595 = vld [vmem:[%s448] sm:$0xf]
        %v596 = vld [vmem:[%s448 + $0x4] sm:$0xf]
        %v597 = vld [vmem:[%s448 + $0x8] sm:$0xf]
        %v598 = vld [vmem:[%s448 + $0xc] sm:$0xf]
        %v599 = vld [vmem:[%s448 + $0x10] sm:$0xf]
        %v600 = vld [vmem:[%s448 + $0x14] sm:$0xf]
        %v601 = vld [vmem:[%s448 + $0x18] sm:$0xf]
        %v602 = vld [vmem:[%s448 + $0x1c] sm:$0xf]
        %v603 = vld [vmem:[%s448 + $0x20] sm:$0xf]
        %v604 = vld [vmem:[%s448 + $0x24] sm:$0xf]
        %v605 = vld [vmem:[%s448 + $0x28] sm:$0xf]
        %v606 = vld [vmem:[%s448 + $0x2c] sm:$0xf]
        %v607 = vld [vmem:[%s448 + $0x30] sm:$0xf]
        %v608 = vld [vmem:[%s448 + $0x34] sm:$0xf]
        %v609 = vld [vmem:[%s448 + $0x38] sm:$0xf]
        %v610 = vld [vmem:[%s448 + $0x3c] sm:$0xf]
        %v611 = vld [vmem:[%s448 + $0x40] sm:$0xf]
        %v612 = vld [vmem:[%s448 + $0x44] sm:$0xf]
        %v613 = vld [vmem:[%s448 + $0x48] sm:$0xf]
        %v614 = vld [vmem:[%s448 + $0x4c] sm:$0xf]
        %v615 = vld [vmem:[%s448 + $0x50] sm:$0xf]
        %v616 = vld [vmem:[%s448 + $0x54] sm:$0xf]
        %v617 = vld [vmem:[%s448 + $0x58] sm:$0xf]
        %v618 = vld [vmem:[%s448 + $0x5c] sm:$0xf]
        %v619 = vld [vmem:[%s448 + $0x60] sm:$0xf]
        %v620 = vld [vmem:[%s448 + $0x64] sm:$0xf]
        %v621 = vld [vmem:[%s448 + $0x68] sm:$0xf]
        %v622 = vld [vmem:[%s448 + $0x6c] sm:$0xf]
        %v623 = vld [vmem:[%s448 + $0x70] sm:$0xf]
        %v624 = vld [vmem:[%s448 + $0x74] sm:$0xf]
        %v625 = vld [vmem:[%s448 + $0x78] sm:$0xf]
        %v626 = vld [vmem:[%s448 + $0x7c] sm:$0xf]
        %v627 = vld [vmem:[%s448 + $0x80] sm:$0xf]
        %v628 = vld [vmem:[%s448 + $0x84] sm:$0xf]
        %v629 = vld [vmem:[%s448 + $0x88] sm:$0xf]
        %v630 = vld [vmem:[%s448 + $0x8c] sm:$0xf]
        %v631 = vld [vmem:[%s448 + $0x90] sm:$0xf]
        %v632 = vld [vmem:[%s448 + $0x94] sm:$0xf]
        %v633 = vld [vmem:[%s448 + $0x98] sm:$0xf]
        %v634 = vld [vmem:[%s448 + $0x9c] sm:$0xf]
        %v635 = vld [vmem:[%s448 + $0xa0] sm:$0xf]
        %v636 = vld [vmem:[%s448 + $0xa4] sm:$0xf]
        %v637 = vld [vmem:[%s448 + $0xa8] sm:$0xf]
        %v638 = vld [vmem:[%s448 + $0xac] sm:$0xf]
        %v639 = vld [vmem:[%s448 + $0xb0] sm:$0xf]
        %v640 = vld [vmem:[%s448 + $0xb4] sm:$0xf]
        %v641 = vld [vmem:[%s448 + $0xb8] sm:$0xf]
        %v642 = vld [vmem:[%s448 + $0xbc] sm:$0xf]
        %v643 = vld [vmem:[%s448 + $0xc0] sm:$0xf]
        %v644 = vld [vmem:[%s448 + $0xc4] sm:$0xf]
        %v645 = vld [vmem:[%s448 + $0xc8] sm:$0xf]
        %v646 = vld [vmem:[%s448 + $0xcc] sm:$0xf]
        %v647 = vld [vmem:[%s448 + $0xd0] sm:$0xf]
        %v648 = vld [vmem:[%s448 + $0xd4] sm:$0xf]
        %v649 = vld [vmem:[%s448 + $0xd8] sm:$0xf]
        %v650 = vld [vmem:[%s448 + $0xdc] sm:$0xf]
        %v651 = vld [vmem:[%s448 + $0xe0] sm:$0xf]
        %v652 = vld [vmem:[%s448 + $0xe4] sm:$0xf]
        %v653 = vld [vmem:[%s448 + $0xe8] sm:$0xf]
        %v654 = vld [vmem:[%s448 + $0xec] sm:$0xf]
        %v655 = vld [vmem:[%s448 + $0xf0] sm:$0xf]
        %v656 = vld [vmem:[%s448 + $0xf4] sm:$0xf]
        %v657 = vld [vmem:[%s448 + $0xf8] sm:$0xf]
        %v658 = vld [vmem:[%s448 + $0xfc] sm:$0xf]
        %v723 = vunpack.c.l.b16 %v531
        %v724 = vunpack.c.h.b16 %v531
        %v725 = vunpack.c.l.b16 %v532
        %v726 = vunpack.c.h.b16 %v532
        %v727 = vunpack.c.l.b16 %v533
        %v728 = vunpack.c.h.b16 %v533
        %v729 = vunpack.c.l.b16 %v534
        %v730 = vunpack.c.h.b16 %v534
        %v731 = vunpack.c.l.b16 %v535
        %v732 = vunpack.c.h.b16 %v535
        %v733 = vunpack.c.l.b16 %v536
        %v734 = vunpack.c.h.b16 %v536
        %v735 = vunpack.c.l.b16 %v537
        %v736 = vunpack.c.h.b16 %v537
        %v737 = vunpack.c.l.b16 %v538
        %v738 = vunpack.c.h.b16 %v538
        %v739 = vunpack.c.l.b16 %v539
        %v740 = vunpack.c.h.b16 %v539
        %v741 = vunpack.c.l.b16 %v540
        %v742 = vunpack.c.h.b16 %v540
        %v743 = vunpack.c.l.b16 %v541
        %v744 = vunpack.c.h.b16 %v541
        %v745 = vunpack.c.l.b16 %v542
        %v746 = vunpack.c.h.b16 %v542
        %v747 = vunpack.c.l.b16 %v543
        %v748 = vunpack.c.h.b16 %v543
        %v749 = vunpack.c.l.b16 %v544
        %v750 = vunpack.c.h.b16 %v544
        %v751 = vunpack.c.l.b16 %v545
        %v752 = vunpack.c.h.b16 %v545
        %v753 = vunpack.c.l.b16 %v546
        %v754 = vunpack.c.h.b16 %v546
        %v755 = vunpack.c.l.b16 %v547
        %v756 = vunpack.c.h.b16 %v547
        %v757 = vunpack.c.l.b16 %v548
        %v758 = vunpack.c.h.b16 %v548
        %v759 = vunpack.c.l.b16 %v549
        %v760 = vunpack.c.h.b16 %v549
        %v761 = vunpack.c.l.b16 %v550
        %v762 = vunpack.c.h.b16 %v550
        %v763 = vunpack.c.l.b16 %v551
        %v764 = vunpack.c.h.b16 %v551
        %v765 = vunpack.c.l.b16 %v552
        %v766 = vunpack.c.h.b16 %v552
        %v767 = vunpack.c.l.b16 %v553
        %v768 = vunpack.c.h.b16 %v553
        %v769 = vunpack.c.l.b16 %v554
        %v770 = vunpack.c.h.b16 %v554
        %v771 = vunpack.c.l.b16 %v555
        %v772 = vunpack.c.h.b16 %v555
        %v773 = vunpack.c.l.b16 %v556
        %v774 = vunpack.c.h.b16 %v556
        %v775 = vunpack.c.l.b16 %v557
        %v776 = vunpack.c.h.b16 %v557
        %v777 = vunpack.c.l.b16 %v558
        %v778 = vunpack.c.h.b16 %v558
        %v779 = vunpack.c.l.b16 %v559
        %v780 = vunpack.c.h.b16 %v559
        %v781 = vunpack.c.l.b16 %v560
        %v782 = vunpack.c.h.b16 %v560
        %v783 = vunpack.c.l.b16 %v561
        %v784 = vunpack.c.h.b16 %v561
        %v785 = vunpack.c.l.b16 %v562
        %v786 = vunpack.c.h.b16 %v562
        %v787 = vunpack.c.l.b16 %v563
        %v788 = vunpack.c.h.b16 %v563
        %v789 = vunpack.c.l.b16 %v564
        %v790 = vunpack.c.h.b16 %v564
        %v791 = vunpack.c.l.b16 %v565
        %v792 = vunpack.c.h.b16 %v565
        %v793 = vunpack.c.l.b16 %v566
        %v794 = vunpack.c.h.b16 %v566
        %v795 = vunpack.c.l.b16 %v567
        %v796 = vunpack.c.h.b16 %v567
        %v797 = vunpack.c.l.b16 %v568
        %v798 = vunpack.c.h.b16 %v568
        %v799 = vunpack.c.l.b16 %v569
        %v800 = vunpack.c.h.b16 %v569
        %v801 = vunpack.c.l.b16 %v570
        %v802 = vunpack.c.h.b16 %v570
        %v803 = vunpack.c.l.b16 %v571
        %v804 = vunpack.c.h.b16 %v571
        %v805 = vunpack.c.l.b16 %v572
        %v806 = vunpack.c.h.b16 %v572
        %v807 = vunpack.c.l.b16 %v573
        %v808 = vunpack.c.h.b16 %v573
        %v809 = vunpack.c.l.b16 %v574
        %v810 = vunpack.c.h.b16 %v574
        %v811 = vunpack.c.l.b16 %v575
        %v812 = vunpack.c.h.b16 %v575
        %v813 = vunpack.c.l.b16 %v576
        %v814 = vunpack.c.h.b16 %v576
        %v815 = vunpack.c.l.b16 %v577
        %v816 = vunpack.c.h.b16 %v577
        %v817 = vunpack.c.l.b16 %v578
        %v818 = vunpack.c.h.b16 %v578
        %v819 = vunpack.c.l.b16 %v579
        %v820 = vunpack.c.h.b16 %v579
        %v821 = vunpack.c.l.b16 %v580
        %v822 = vunpack.c.h.b16 %v580
        %v823 = vunpack.c.l.b16 %v581
        %v824 = vunpack.c.h.b16 %v581
        %v825 = vunpack.c.l.b16 %v582
        %v826 = vunpack.c.h.b16 %v582
        %v827 = vunpack.c.l.b16 %v583
        %v828 = vunpack.c.h.b16 %v583
        %v829 = vunpack.c.l.b16 %v584
        %v830 = vunpack.c.h.b16 %v584
        %v831 = vunpack.c.l.b16 %v585
        %v832 = vunpack.c.h.b16 %v585
        %v833 = vunpack.c.l.b16 %v586
        %v834 = vunpack.c.h.b16 %v586
        %v835 = vunpack.c.l.b16 %v587
        %v836 = vunpack.c.h.b16 %v587
        %v837 = vunpack.c.l.b16 %v588
        %v838 = vunpack.c.h.b16 %v588
        %v839 = vunpack.c.l.b16 %v589
        %v840 = vunpack.c.h.b16 %v589
        %v841 = vunpack.c.l.b16 %v590
        %v842 = vunpack.c.h.b16 %v590
        %v843 = vunpack.c.l.b16 %v591
        %v844 = vunpack.c.h.b16 %v591
        %v845 = vunpack.c.l.b16 %v592
        %v846 = vunpack.c.h.b16 %v592
        %v847 = vunpack.c.l.b16 %v593
        %v848 = vunpack.c.h.b16 %v593
        %v849 = vunpack.c.l.b16 %v594
        %v850 = vunpack.c.h.b16 %v594
        %v851 = vpack.c.b16 %v727, %v723
        %v852 = vpack.c.b16 %v728, %v724
        %v853 = vpack.c.b16 %v729, %v725
        %v854 = vpack.c.b16 %v730, %v726
        %v855 = vpack.c.b16 %v735, %v731
        %v856 = vpack.c.b16 %v736, %v732
        %v857 = vpack.c.b16 %v737, %v733
        %v858 = vpack.c.b16 %v738, %v734
        %v859 = vpack.c.b16 %v743, %v739
        %v860 = vpack.c.b16 %v744, %v740
        %v861 = vpack.c.b16 %v745, %v741
        %v862 = vpack.c.b16 %v746, %v742
        %v863 = vpack.c.b16 %v751, %v747
        %v864 = vpack.c.b16 %v752, %v748
        %v865 = vpack.c.b16 %v753, %v749
        %v866 = vpack.c.b16 %v754, %v750
        %v867 = vpack.c.b16 %v759, %v755
        %v868 = vpack.c.b16 %v760, %v756
        %v869 = vpack.c.b16 %v761, %v757
        %v870 = vpack.c.b16 %v762, %v758
        %v871 = vpack.c.b16 %v767, %v763
        %v872 = vpack.c.b16 %v768, %v764
        %v873 = vpack.c.b16 %v769, %v765
        %v874 = vpack.c.b16 %v770, %v766
        %v875 = vpack.c.b16 %v775, %v771
        %v876 = vpack.c.b16 %v776, %v772
        %v877 = vpack.c.b16 %v777, %v773
        %v878 = vpack.c.b16 %v778, %v774
        %v879 = vpack.c.b16 %v783, %v779
        %v880 = vpack.c.b16 %v784, %v780
        %v881 = vpack.c.b16 %v785, %v781
        %v882 = vpack.c.b16 %v786, %v782
        %v883 = vpack.c.b16 %v791, %v787
        %v884 = vpack.c.b16 %v792, %v788
        %v885 = vpack.c.b16 %v793, %v789
        %v886 = vpack.c.b16 %v794, %v790
        %v887 = vpack.c.b16 %v799, %v795
        %v888 = vpack.c.b16 %v800, %v796
        %v889 = vpack.c.b16 %v801, %v797
        %v890 = vpack.c.b16 %v802, %v798
        %v891 = vpack.c.b16 %v807, %v803
        %v892 = vpack.c.b16 %v808, %v804
        %v893 = vpack.c.b16 %v809, %v805
        %v894 = vpack.c.b16 %v810, %v806
        %v895 = vpack.c.b16 %v815, %v811
        %v896 = vpack.c.b16 %v816, %v812
        %v897 = vpack.c.b16 %v817, %v813
        %v898 = vpack.c.b16 %v818, %v814
        %v899 = vpack.c.b16 %v823, %v819
        %v900 = vpack.c.b16 %v824, %v820
        %v901 = vpack.c.b16 %v825, %v821
        %v902 = vpack.c.b16 %v826, %v822
        %v903 = vpack.c.b16 %v831, %v827
        %v904 = vpack.c.b16 %v832, %v828
        %v905 = vpack.c.b16 %v833, %v829
        %v906 = vpack.c.b16 %v834, %v830
        %v907 = vpack.c.b16 %v839, %v835
        %v908 = vpack.c.b16 %v840, %v836
        %v909 = vpack.c.b16 %v841, %v837
        %v910 = vpack.c.b16 %v842, %v838
        %v911 = vpack.c.b16 %v847, %v843
        %v912 = vpack.c.b16 %v848, %v844
        %v913 = vpack.c.b16 %v849, %v845
        %v914 = vpack.c.b16 %v850, %v846
        %v1043 = vunpack.c.l.b16 %v595
        %v1044 = vunpack.c.l.b16 %v596
        %v1045 = vunpack.c.l.b16 %v597
        %v1046 = vunpack.c.l.b16 %v598
        %v1047 = vunpack.c.l.b16 %v599
        %v1048 = vunpack.c.l.b16 %v600
        %v1049 = vunpack.c.l.b16 %v601
        %v1050 = vunpack.c.l.b16 %v602
        %v1051 = vunpack.c.l.b16 %v603
        %v1052 = vunpack.c.l.b16 %v604
        %v1053 = vunpack.c.l.b16 %v605
        %v1054 = vunpack.c.l.b16 %v606
        %v1055 = vunpack.c.l.b16 %v607
        %v1056 = vunpack.c.l.b16 %v608
        %v1057 = vunpack.c.l.b16 %v609
        %v1058 = vunpack.c.l.b16 %v610
        %v1059 = vunpack.c.l.b16 %v611
        %v1060 = vunpack.c.l.b16 %v612
        %v1061 = vunpack.c.l.b16 %v613
        %v1062 = vunpack.c.l.b16 %v614
        %v1063 = vunpack.c.l.b16 %v615
        %v1064 = vunpack.c.l.b16 %v616
        %v1065 = vunpack.c.l.b16 %v617
        %v1066 = vunpack.c.l.b16 %v618
        %v1067 = vunpack.c.l.b16 %v619
        %v1068 = vunpack.c.l.b16 %v620
        %v1069 = vunpack.c.l.b16 %v621
        %v1070 = vunpack.c.l.b16 %v622
        %v1071 = vunpack.c.l.b16 %v623
        %v1072 = vunpack.c.l.b16 %v624
        %v1073 = vunpack.c.l.b16 %v625
        %v1074 = vunpack.c.l.b16 %v626
        %v1075 = vunpack.c.l.b16 %v627
        %v1076 = vunpack.c.l.b16 %v628
        %v1077 = vunpack.c.l.b16 %v629
        %v1078 = vunpack.c.l.b16 %v630
        %v1079 = vunpack.c.l.b16 %v631
        %v1080 = vunpack.c.l.b16 %v632
        %v1081 = vunpack.c.l.b16 %v633
        %v1082 = vunpack.c.l.b16 %v634
        %v1083 = vunpack.c.l.b16 %v635
        %v1084 = vunpack.c.l.b16 %v636
        %v1085 = vunpack.c.l.b16 %v637
        %v1086 = vunpack.c.l.b16 %v638
        %v1087 = vunpack.c.l.b16 %v639
        %v1088 = vunpack.c.l.b16 %v640
        %v1089 = vunpack.c.l.b16 %v641
        %v1090 = vunpack.c.l.b16 %v642
        %v1091 = vunpack.c.l.b16 %v643
        %v1092 = vunpack.c.l.b16 %v644
        %v1093 = vunpack.c.l.b16 %v645
        %v1094 = vunpack.c.l.b16 %v646
        %v1095 = vunpack.c.l.b16 %v647
        %v1096 = vunpack.c.l.b16 %v648
        %v1097 = vunpack.c.l.b16 %v649
        %v1098 = vunpack.c.l.b16 %v650
        %v1099 = vunpack.c.l.b16 %v651
        %v1100 = vunpack.c.l.b16 %v652
        %v1101 = vunpack.c.l.b16 %v653
        %v1102 = vunpack.c.l.b16 %v654
        %v1103 = vunpack.c.l.b16 %v655
        %v1104 = vunpack.c.l.b16 %v656
        %v1105 = vunpack.c.l.b16 %v657
        %v1106 = vunpack.c.l.b16 %v658
        %v1107 = vpack.c.b16 %v1044, %v1043
        %v1108 = vpack.c.b16 %v1046, %v1045
        %v1109 = vpack.c.b16 %v1048, %v1047
        %v1110 = vpack.c.b16 %v1050, %v1049
        %v1111 = vpack.c.b16 %v1052, %v1051
        %v1112 = vpack.c.b16 %v1054, %v1053
        %v1113 = vpack.c.b16 %v1056, %v1055
        %v1114 = vpack.c.b16 %v1058, %v1057
        %v1115 = vpack.c.b16 %v1060, %v1059
        %v1116 = vpack.c.b16 %v1062, %v1061
        %v1117 = vpack.c.b16 %v1064, %v1063
        %v1118 = vpack.c.b16 %v1066, %v1065
        %v1119 = vpack.c.b16 %v1068, %v1067
        %v1120 = vpack.c.b16 %v1070, %v1069
        %v1121 = vpack.c.b16 %v1072, %v1071
        %v1122 = vpack.c.b16 %v1074, %v1073
        %v1123 = vpack.c.b16 %v1076, %v1075
        %v1124 = vpack.c.b16 %v1078, %v1077
        %v1125 = vpack.c.b16 %v1080, %v1079
        %v1126 = vpack.c.b16 %v1082, %v1081
        %v1127 = vpack.c.b16 %v1084, %v1083
        %v1128 = vpack.c.b16 %v1086, %v1085
        %v1129 = vpack.c.b16 %v1088, %v1087
        %v1130 = vpack.c.b16 %v1090, %v1089
        %v1131 = vpack.c.b16 %v1092, %v1091
        %v1132 = vpack.c.b16 %v1094, %v1093
        %v1133 = vpack.c.b16 %v1096, %v1095
        %v1134 = vpack.c.b16 %v1098, %v1097
        %v1135 = vpack.c.b16 %v1100, %v1099
        %v1136 = vpack.c.b16 %v1102, %v1101
        %v1137 = vpack.c.b16 %v1104, %v1103
        %v1138 = vpack.c.b16 %v1106, %v1105
        %1171 = vmatprep.subr.bf16.mxu0 0
        %1172 = vmatpush1.bf16.msra.mxu0 %v1107
        %1173 = vmatprep.subr.bf16.mxu0 0
        %1174 = vmatpush1.bf16.msra.mxu0 %v1108
        %1175 = vmatprep.subr.bf16.mxu0 0
        %1176 = vmatpush1.bf16.msra.mxu0 %v1109
        %1177 = vmatprep.subr.bf16.mxu0 0
        %1178 = vmatpush1.bf16.msra.mxu0 %v1110
        %1179 = vmatprep.subr.bf16.mxu0 0
        %1180 = vmatpush1.bf16.msra.mxu0 %v1111
        %1181 = vmatprep.subr.bf16.mxu0 0
        %1182 = vmatpush1.bf16.msra.mxu0 %v1112
        %1183 = vmatprep.subr.bf16.mxu0 0
        %1184 = vmatpush1.bf16.msra.mxu0 %v1113
        %1185 = vmatprep.subr.bf16.mxu0 0
        %1186 = vmatpush1.bf16.msra.mxu0 %v1114
        %1187 = vmatprep.subr.bf16.mxu0 0
        %1188 = vmatpush1.bf16.msra.mxu0 %v1115
        %1189 = vmatprep.subr.bf16.mxu0 0
        %1190 = vmatpush1.bf16.msra.mxu0 %v1116
        %1191 = vmatprep.subr.bf16.mxu0 0
        %1192 = vmatpush1.bf16.msra.mxu0 %v1117
        %1193 = vmatprep.subr.bf16.mxu0 0
        %1194 = vmatpush1.bf16.msra.mxu0 %v1118
        %1195 = vmatprep.subr.bf16.mxu0 0
        %1196 = vmatpush1.bf16.msra.mxu0 %v1119
        %1197 = vmatprep.subr.bf16.mxu0 0
        %1198 = vmatpush1.bf16.msra.mxu0 %v1120
        %1199 = vmatprep.subr.bf16.mxu0 0
        %1200 = vmatpush1.bf16.msra.mxu0 %v1121
        %1201 = vmatprep.subr.bf16.mxu0 0
        %1202 = vmatpush1.bf16.msra.mxu0 %v1122
        %1203 = vmatprep.mubr.bf16.mxu0 %v852
        %1204 = vmatmul.mubr.bf16.gmra.mrb[0].mxu0 %v851
        %v1205 = vpop.f32.mrb[0].mxu0
        %v1206 = vadd.f32 0.0, %v1205
        %v1207 = vpop.f32.mrb[0].mxu0
        %v1208 = vpop.f32.mrb[0].mxu0
        %v1209 = vadd.f32 0.0, %v1208
        %v1210 = vpop.f32.mrb[0].mxu0
        %1211 = vmatprep.mubr.bf16.mxu0 %v856
        %1212 = vmatmul.mubr.bf16.gmra.mrb[0].mxu0 %v855
        %v1213 = vpop.f32.mrb[0].mxu0
        %v1214 = vadd.f32 0.0, %v1213
        %v1215 = vpop.f32.mrb[0].mxu0
        %v1216 = vpop.f32.mrb[0].mxu0
        %v1217 = vadd.f32 0.0, %v1216
        %v1218 = vpop.f32.mrb[0].mxu0
        %1219 = vmatprep.mubr.bf16.mxu0 %v860
        %1220 = vmatmul.mubr.bf16.gmra.mrb[0].mxu0 %v859
        %v1221 = vpop.f32.mrb[0].mxu0
        %v1222 = vadd.f32 0.0, %v1221
        %v1223 = vpop.f32.mrb[0].mxu0
        %v1224 = vpop.f32.mrb[0].mxu0
        %v1225 = vadd.f32 0.0, %v1224
        %v1226 = vpop.f32.mrb[0].mxu0
        %1227 = vmatprep.mubr.bf16.mxu0 %v864
        %1228 = vmatmul.mubr.bf16.gmra.mrb[0].mxu0 %v863
        %v1229 = vpop.f32.mrb[0].mxu0
        %v1230 = vadd.f32 0.0, %v1229
        %v1231 = vpop.f32.mrb[0].mxu0
        %v1232 = vpop.f32.mrb[0].mxu0
        %v1233 = vadd.f32 0.0, %v1232
        %v1234 = vpop.f32.mrb[0].mxu0
        %1235 = vmatprep.mubr.bf16.mxu0 %v868
        %1236 = vmatmul.mubr.bf16.gmra.mrb[0].mxu0 %v867
        %v1237 = vpop.f32.mrb[0].mxu0
        %v1238 = vadd.f32 0.0, %v1237
        %v1239 = vpop.f32.mrb[0].mxu0
        %v1240 = vpop.f32.mrb[0].mxu0
        %v1241 = vadd.f32 0.0, %v1240
        %v1242 = vpop.f32.mrb[0].mxu0
        %1243 = vmatprep.mubr.bf16.mxu0 %v872
        %1244 = vmatmul.mubr.bf16.gmra.mrb[0].mxu0 %v871
        %v1245 = vpop.f32.mrb[0].mxu0
        %v1246 = vadd.f32 0.0, %v1245
        %v1247 = vpop.f32.mrb[0].mxu0
        %v1248 = vpop.f32.mrb[0].mxu0
        %v1249 = vadd.f32 0.0, %v1248
        %v1250 = vpop.f32.mrb[0].mxu0
        %1251 = vmatprep.mubr.bf16.mxu0 %v876
        %1252 = vmatmul.mubr.bf16.gmra.mrb[0].mxu0 %v875
        %v1253 = vpop.f32.mrb[0].mxu0
        %v1254 = vadd.f32 0.0, %v1253
        %v1255 = vpop.f32.mrb[0].mxu0
        %v1256 = vpop.f32.mrb[0].mxu0
        %v1257 = vadd.f32 0.0, %v1256
        %v1258 = vpop.f32.mrb[0].mxu0
        %1259 = vmatprep.mubr.bf16.mxu0 %v880
        %1260 = vmatmul.mubr.bf16.gmra.mrb[0].mxu0 %v879
        %v1261 = vpop.f32.mrb[0].mxu0
        %v1262 = vadd.f32 0.0, %v1261
        %v1263 = vpop.f32.mrb[0].mxu0
        %v1264 = vpop.f32.mrb[0].mxu0
        %v1265 = vadd.f32 0.0, %v1264
        %v1266 = vpop.f32.mrb[0].mxu0
        %1267 = vmatprep.mubr.bf16.mxu0 %v884
        %1268 = vmatmul.mubr.bf16.gmra.mrb[0].mxu0 %v883
        %v1269 = vpop.f32.mrb[0].mxu0
        %v1270 = vadd.f32 0.0, %v1269
        %v1271 = vpop.f32.mrb[0].mxu0
        %v1272 = vpop.f32.mrb[0].mxu0
        %v1273 = vadd.f32 0.0, %v1272
        %v1274 = vpop.f32.mrb[0].mxu0
        %1275 = vmatprep.mubr.bf16.mxu0 %v888
        %1276 = vmatmul.mubr.bf16.gmra.mrb[0].mxu0 %v887
        %v1277 = vpop.f32.mrb[0].mxu0
        %v1278 = vadd.f32 0.0, %v1277
        %v1279 = vpop.f32.mrb[0].mxu0
        %v1280 = vpop.f32.mrb[0].mxu0
        %v1281 = vadd.f32 0.0, %v1280
        %v1282 = vpop.f32.mrb[0].mxu0
        %1283 = vmatprep.mubr.bf16.mxu0 %v892
        %1284 = vmatmul.mubr.bf16.gmra.mrb[0].mxu0 %v891
        %v1285 = vpop.f32.mrb[0].mxu0
        %v1286 = vadd.f32 0.0, %v1285
        %v1287 = vpop.f32.mrb[0].mxu0
        %v1288 = vpop.f32.mrb[0].mxu0
        %v1289 = vadd.f32 0.0, %v1288
        %v1290 = vpop.f32.mrb[0].mxu0
        %1291 = vmatprep.mubr.bf16.mxu0 %v896
        %1292 = vmatmul.mubr.bf16.gmra.mrb[0].mxu0 %v895
        %v1293 = vpop.f32.mrb[0].mxu0
        %v1294 = vadd.f32 0.0, %v1293
        %v1295 = vpop.f32.mrb[0].mxu0
        %v1296 = vpop.f32.mrb[0].mxu0
        %v1297 = vadd.f32 0.0, %v1296
        %v1298 = vpop.f32.mrb[0].mxu0
        %1299 = vmatprep.mubr.bf16.mxu0 %v900
        %1300 = vmatmul.mubr.bf16.gmra.mrb[0].mxu0 %v899
        %v1301 = vpop.f32.mrb[0].mxu0
        %v1302 = vadd.f32 0.0, %v1301
        %v1303 = vpop.f32.mrb[0].mxu0
        %v1304 = vpop.f32.mrb[0].mxu0
        %v1305 = vadd.f32 0.0, %v1304
        %v1306 = vpop.f32.mrb[0].mxu0
        %1307 = vmatprep.mubr.bf16.mxu0 %v904
        %1308 = vmatmul.mubr.bf16.gmra.mrb[0].mxu0 %v903
        %v1309 = vpop.f32.mrb[0].mxu0
        %v1310 = vadd.f32 0.0, %v1309
        %v1311 = vpop.f32.mrb[0].mxu0
        %v1312 = vpop.f32.mrb[0].mxu0
        %v1313 = vadd.f32 0.0, %v1312
        %v1314 = vpop.f32.mrb[0].mxu0
        %1315 = vmatprep.mubr.bf16.mxu0 %v908
        %1316 = vmatmul.mubr.bf16.gmra.mrb[0].mxu0 %v907
        %v1317 = vpop.f32.mrb[0].mxu0
        %v1318 = vadd.f32 0.0, %v1317
        %v1319 = vpop.f32.mrb[0].mxu0
        %v1320 = vpop.f32.mrb[0].mxu0
        %v1321 = vadd.f32 0.0, %v1320
        %v1322 = vpop.f32.mrb[0].mxu0
        %1323 = vmatprep.mubr.bf16.mxu0 %v912
        %1324 = vmatmul.mubr.bf16.gmra.mrb[0].mxu0 %v911
        %v1325 = vpop.f32.mrb[0].mxu0
        %v1326 = vadd.f32 0.0, %v1325
        %v1327 = vpop.f32.mrb[0].mxu0
        %v1328 = vpop.f32.mrb[0].mxu0
        %v1329 = vadd.f32 0.0, %v1328
        %v1330 = vpop.f32.mrb[0].mxu0
        %1331 = vdwg.mxu0
        %1332 = vmatprep.subr.bf16.mxu0 0
        %1333 = vmatpush1.bf16.msra.mxu0 %v1123
        %1334 = vmatprep.subr.bf16.mxu0 0
        %1335 = vmatpush1.bf16.msra.mxu0 %v1124
        %1336 = vmatprep.subr.bf16.mxu0 0
        %1337 = vmatpush1.bf16.msra.mxu0 %v1125
        %1338 = vmatprep.subr.bf16.mxu0 0
        %1339 = vmatpush1.bf16.msra.mxu0 %v1126
        %1340 = vmatprep.subr.bf16.mxu0 0
        %1341 = vmatpush1.bf16.msra.mxu0 %v1127
        %1342 = vmatprep.subr.bf16.mxu0 0
        %1343 = vmatpush1.bf16.msra.mxu0 %v1128
        %1344 = vmatprep.subr.bf16.mxu0 0
        %1345 = vmatpush1.bf16.msra.mxu0 %v1129
        %1346 = vmatprep.subr.bf16.mxu0 0
        %1347 = vmatpush1.bf16.msra.mxu0 %v1130
        %1348 = vmatprep.subr.bf16.mxu0 0
        %1349 = vmatpush1.bf16.msra.mxu0 %v1131
        %1350 = vmatprep.subr.bf16.mxu0 0
        %1351 = vmatpush1.bf16.msra.mxu0 %v1132
        %1352 = vmatprep.subr.bf16.mxu0 0
        %1353 = vmatpush1.bf16.msra.mxu0 %v1133
        %1354 = vmatprep.subr.bf16.mxu0 0
        %1355 = vmatpush1.bf16.msra.mxu0 %v1134
        %1356 = vmatprep.subr.bf16.mxu0 0
        %1357 = vmatpush1.bf16.msra.mxu0 %v1135
        %1358 = vmatprep.subr.bf16.mxu0 0
        %1359 = vmatpush1.bf16.msra.mxu0 %v1136
        %1360 = vmatprep.subr.bf16.mxu0 0
        %1361 = vmatpush1.bf16.msra.mxu0 %v1137
        %1362 = vmatprep.subr.bf16.mxu0 0
        %1363 = vmatpush1.bf16.msra.mxu0 %v1138
        %1364 = vmatprep.mubr.bf16.mxu0 %v854
        %1365 = vmatmul.mubr.bf16.gmra.mrb[0].mxu0 %v853
        %v1366 = vpop.f32.mrb[0].mxu0
        %v1367 = vadd.f32 %v1206, %v1366
        %v1368 = vpop.f32.mrb[0].mxu0
        %v1369 = vpop.f32.mrb[0].mxu0
        %v1370 = vadd.f32 %v1209, %v1369
        %v1371 = vpop.f32.mrb[0].mxu0
        %1372 = vmatprep.mubr.bf16.mxu0 %v858
        %1373 = vmatmul.mubr.bf16.gmra.mrb[0].mxu0 %v857
        %v1374 = vpop.f32.mrb[0].mxu0
        %v1375 = vadd.f32 %v1214, %v1374
        %v1376 = vpop.f32.mrb[0].mxu0
        %v1377 = vpop.f32.mrb[0].mxu0
        %v1378 = vadd.f32 %v1217, %v1377
        %v1379 = vpop.f32.mrb[0].mxu0
        %1380 = vmatprep.mubr.bf16.mxu0 %v862
        %1381 = vmatmul.mubr.bf16.gmra.mrb[0].mxu0 %v861
        %v1382 = vpop.f32.mrb[0].mxu0
        %v1383 = vadd.f32 %v1222, %v1382
        %v1384 = vpop.f32.mrb[0].mxu0
        %v1385 = vpop.f32.mrb[0].mxu0
        %v1386 = vadd.f32 %v1225, %v1385
        %v1387 = vpop.f32.mrb[0].mxu0
        %1388 = vmatprep.mubr.bf16.mxu0 %v866
        %1389 = vmatmul.mubr.bf16.gmra.mrb[0].mxu0 %v865
        %v1390 = vpop.f32.mrb[0].mxu0
        %v1391 = vadd.f32 %v1230, %v1390
        %v1392 = vpop.f32.mrb[0].mxu0
        %v1393 = vpop.f32.mrb[0].mxu0
        %v1394 = vadd.f32 %v1233, %v1393
        %v1395 = vpop.f32.mrb[0].mxu0
        %1396 = vmatprep.mubr.bf16.mxu0 %v870
        %1397 = vmatmul.mubr.bf16.gmra.mrb[0].mxu0 %v869
        %v1398 = vpop.f32.mrb[0].mxu0
        %v1399 = vadd.f32 %v1238, %v1398
        %v1400 = vpop.f32.mrb[0].mxu0
        %v1401 = vpop.f32.mrb[0].mxu0
        %v1402 = vadd.f32 %v1241, %v1401
        %v1403 = vpop.f32.mrb[0].mxu0
        %1404 = vmatprep.mubr.bf16.mxu0 %v874
        %1405 = vmatmul.mubr.bf16.gmra.mrb[0].mxu0 %v873
        %v1406 = vpop.f32.mrb[0].mxu0
        %v1407 = vadd.f32 %v1246, %v1406
        %v1408 = vpop.f32.mrb[0].mxu0
        %v1409 = vpop.f32.mrb[0].mxu0
        %v1410 = vadd.f32 %v1249, %v1409
        %v1411 = vpop.f32.mrb[0].mxu0
        %1412 = vmatprep.mubr.bf16.mxu0 %v878
        %1413 = vmatmul.mubr.bf16.gmra.mrb[0].mxu0 %v877
        %v1414 = vpop.f32.mrb[0].mxu0
        %v1415 = vadd.f32 %v1254, %v1414
        %v1416 = vpop.f32.mrb[0].mxu0
        %v1417 = vpop.f32.mrb[0].mxu0
        %v1418 = vadd.f32 %v1257, %v1417
        %v1419 = vpop.f32.mrb[0].mxu0
        %1420 = vmatprep.mubr.bf16.mxu0 %v882
        %1421 = vmatmul.mubr.bf16.gmra.mrb[0].mxu0 %v881
        %v1422 = vpop.f32.mrb[0].mxu0
        %v1423 = vadd.f32 %v1262, %v1422
        %v1424 = vpop.f32.mrb[0].mxu0
        %v1425 = vpop.f32.mrb[0].mxu0
        %v1426 = vadd.f32 %v1265, %v1425
        %v1427 = vpop.f32.mrb[0].mxu0
        %1428 = vmatprep.mubr.bf16.mxu0 %v886
        %1429 = vmatmul.mubr.bf16.gmra.mrb[0].mxu0 %v885
        %v1430 = vpop.f32.mrb[0].mxu0
        %v1431 = vadd.f32 %v1270, %v1430
        %v1432 = vpop.f32.mrb[0].mxu0
        %v1433 = vpop.f32.mrb[0].mxu0
        %v1434 = vadd.f32 %v1273, %v1433
        %v1435 = vpop.f32.mrb[0].mxu0
        %1436 = vmatprep.mubr.bf16.mxu0 %v890
        %1437 = vmatmul.mubr.bf16.gmra.mrb[0].mxu0 %v889
        %v1438 = vpop.f32.mrb[0].mxu0
        %v1439 = vadd.f32 %v1278, %v1438
        %v1440 = vpop.f32.mrb[0].mxu0
        %v1441 = vpop.f32.mrb[0].mxu0
        %v1442 = vadd.f32 %v1281, %v1441
        %v1443 = vpop.f32.mrb[0].mxu0
        %1444 = vmatprep.mubr.bf16.mxu0 %v894
        %1445 = vmatmul.mubr.bf16.gmra.mrb[0].mxu0 %v893
        %v1446 = vpop.f32.mrb[0].mxu0
        %v1447 = vadd.f32 %v1286, %v1446
        %v1448 = vpop.f32.mrb[0].mxu0
        %v1449 = vpop.f32.mrb[0].mxu0
        %v1450 = vadd.f32 %v1289, %v1449
        %v1451 = vpop.f32.mrb[0].mxu0
        %1452 = vmatprep.mubr.bf16.mxu0 %v898
        %1453 = vmatmul.mubr.bf16.gmra.mrb[0].mxu0 %v897
        %v1454 = vpop.f32.mrb[0].mxu0
        %v1455 = vadd.f32 %v1294, %v1454
        %v1456 = vpop.f32.mrb[0].mxu0
        %v1457 = vpop.f32.mrb[0].mxu0
        %v1458 = vadd.f32 %v1297, %v1457
        %v1459 = vpop.f32.mrb[0].mxu0
        %1460 = vmatprep.mubr.bf16.mxu0 %v902
        %1461 = vmatmul.mubr.bf16.gmra.mrb[0].mxu0 %v901
        %v1462 = vpop.f32.mrb[0].mxu0
        %v1463 = vadd.f32 %v1302, %v1462
        %v1464 = vpop.f32.mrb[0].mxu0
        %v1465 = vpop.f32.mrb[0].mxu0
        %v1466 = vadd.f32 %v1305, %v1465
        %v1467 = vpop.f32.mrb[0].mxu0
        %1468 = vmatprep.mubr.bf16.mxu0 %v906
        %1469 = vmatmul.mubr.bf16.gmra.mrb[0].mxu0 %v905
        %v1470 = vpop.f32.mrb[0].mxu0
        %v1471 = vadd.f32 %v1310, %v1470
        %v1472 = vpop.f32.mrb[0].mxu0
        %v1473 = vpop.f32.mrb[0].mxu0
        %v1474 = vadd.f32 %v1313, %v1473
        %v1475 = vpop.f32.mrb[0].mxu0
        %1476 = vmatprep.mubr.bf16.mxu0 %v910
        %1477 = vmatmul.mubr.bf16.gmra.mrb[0].mxu0 %v909
        %v1478 = vpop.f32.mrb[0].mxu0
        %v1479 = vadd.f32 %v1318, %v1478
        %v1480 = vpop.f32.mrb[0].mxu0
        %v1481 = vpop.f32.mrb[0].mxu0
        %v1482 = vadd.f32 %v1321, %v1481
        %v1483 = vpop.f32.mrb[0].mxu0
        %1484 = vmatprep.mubr.bf16.mxu0 %v914
        %1485 = vmatmul.mubr.bf16.gmra.mrb[0].mxu0 %v913
        %v1486 = vpop.f32.mrb[0].mxu0
        %v1487 = vadd.f32 %v1326, %v1486
        %v1488 = vpop.f32.mrb[0].mxu0
        %v1489 = vpop.f32.mrb[0].mxu0
        %v1490 = vadd.f32 %v1329, %v1489
        %v1491 = vpop.f32.mrb[0].mxu0
        %1492 = vdwg.mxu0
        %v1493 = vadd.f32 %v499, %v1367
        %v1494 = vadd.f32 %v500, %v1370
        %v1495 = vadd.f32 %v501, %v1375
        %v1496 = vadd.f32 %v502, %v1378
        %v1497 = vadd.f32 %v503, %v1383
        %v1498 = vadd.f32 %v504, %v1386
        %v1499 = vadd.f32 %v505, %v1391
        %v1500 = vadd.f32 %v506, %v1394
        %v1501 = vadd.f32 %v507, %v1399
        %v1502 = vadd.f32 %v508, %v1402
        %v1503 = vadd.f32 %v509, %v1407
        %v1504 = vadd.f32 %v510, %v1410
        %v1505 = vadd.f32 %v511, %v1415
        %v1506 = vadd.f32 %v512, %v1418
        %v1507 = vadd.f32 %v513, %v1423
        %v1508 = vadd.f32 %v514, %v1426
        %v1509 = vadd.f32 %v515, %v1431
        %v1510 = vadd.f32 %v516, %v1434
        %v1511 = vadd.f32 %v517, %v1439
        %v1512 = vadd.f32 %v518, %v1442
        %v1513 = vadd.f32 %v519, %v1447
        %v1514 = vadd.f32 %v520, %v1450
        %v1515 = vadd.f32 %v521, %v1455
        %v1516 = vadd.f32 %v522, %v1458
        %v1517 = vadd.f32 %v523, %v1463
        %v1518 = vadd.f32 %v524, %v1466
        %v1519 = vadd.f32 %v525, %v1471
        %v1520 = vadd.f32 %v526, %v1474
        %v1521 = vadd.f32 %v527, %v1479
        %v1522 = vadd.f32 %v528, %v1482
        %v1523 = vadd.f32 %v529, %v1487
        %v1524 = vadd.f32 %v530, %v1490
        %1525 = vst [vmem:[#allocation2] sm:$0xff] %v1493
        %1526 = vst [vmem:[#allocation2 + $0x8] sm:$0xff] %v1494
        %1527 = vst [vmem:[#allocation2 + $0x10] sm:$0xff] %v1495
        %1528 = vst [vmem:[#allocation2 + $0x18] sm:$0xff] %v1496
        %1529 = vst [vmem:[#allocation2 + $0x20] sm:$0xff] %v1497
        %1530 = vst [vmem:[#allocation2 + $0x28] sm:$0xff] %v1498
        %1531 = vst [vmem:[#allocation2 + $0x30] sm:$0xff] %v1499
        %1532 = vst [vmem:[#allocation2 + $0x38] sm:$0xff] %v1500
        %1533 = vst [vmem:[#allocation2 + $0x40] sm:$0xff] %v1501
        %1534 = vst [vmem:[#allocation2 + $0x48] sm:$0xff] %v1502
        %1535 = vst [vmem:[#allocation2 + $0x50] sm:$0xff] %v1503
        %1536 = vst [vmem:[#allocation2 + $0x58] sm:$0xff] %v1504
        %1537 = vst [vmem:[#allocation2 + $0x60] sm:$0xff] %v1505
        %1538 = vst [vmem:[#allocation2 + $0x68] sm:$0xff] %v1506
        %1539 = vst [vmem:[#allocation2 + $0x70] sm:$0xff] %v1507
        %1540 = vst [vmem:[#allocation2 + $0x78] sm:$0xff] %v1508
        %1541 = vst [vmem:[#allocation2 + $0x80] sm:$0xff] %v1509
        %1542 = vst [vmem:[#allocation2 + $0x88] sm:$0xff] %v1510
        %1543 = vst [vmem:[#allocation2 + $0x90] sm:$0xff] %v1511
        %1544 = vst [vmem:[#allocation2 + $0x98] sm:$0xff] %v1512
        %1545 = vst [vmem:[#allocation2 + $0xa0] sm:$0xff] %v1513
        %1546 = vst [vmem:[#allocation2 + $0xa8] sm:$0xff] %v1514
        %1547 = vst [vmem:[#allocation2 + $0xb0] sm:$0xff] %v1515
        %1548 = vst [vmem:[#allocation2 + $0xb8] sm:$0xff] %v1516
        %1549 = vst [vmem:[#allocation2 + $0xc0] sm:$0xff] %v1517
        %1550 = vst [vmem:[#allocation2 + $0xc8] sm:$0xff] %v1518
        %1551 = vst [vmem:[#allocation2 + $0xd0] sm:$0xff] %v1519
        %1552 = vst [vmem:[#allocation2 + $0xd8] sm:$0xff] %v1520
        %1553 = vst [vmem:[#allocation2 + $0xe0] sm:$0xff] %v1521
        %1554 = vst [vmem:[#allocation2 + $0xe8] sm:$0xff] %v1522
        %1555 = vst [vmem:[#allocation2 + $0xf0] sm:$0xff] %v1523
        %1556 = vst [vmem:[#allocation2 + $0xf8] sm:$0xff] %v1524
        %p1557 = scmp.eq.s32.totalorder %s22, 1
        // Predicated region
        $region72: #{sage_forward.5} parent=62 // pred_check
          %p1558 = pneg %p1557
        $region73: #{sage_forward.5} parent=62 // pred_check_branch
          %1560 = sbr.rel (%p1558) target = $region75
        $region74: #{sage_forward.5} parent=62 // pred_region
          %v1561 = vld [vmem:[#allocation2] sm:$0xff]
          %v1562 = vld [vmem:[#allocation2 + $0x8] sm:$0xff]
          %v1563 = vld [vmem:[#allocation2 + $0x10] sm:$0xff]
          %v1564 = vld [vmem:[#allocation2 + $0x18] sm:$0xff]
          %v1565 = vld [vmem:[#allocation2 + $0x20] sm:$0xff]
          %v1566 = vld [vmem:[#allocation2 + $0x28] sm:$0xff]
          %v1567 = vld [vmem:[#allocation2 + $0x30] sm:$0xff]
          %v1568 = vld [vmem:[#allocation2 + $0x38] sm:$0xff]
          %v1569 = vld [vmem:[#allocation2 + $0x40] sm:$0xff]
          %v1570 = vld [vmem:[#allocation2 + $0x48] sm:$0xff]
          %v1571 = vld [vmem:[#allocation2 + $0x50] sm:$0xff]
          %v1572 = vld [vmem:[#allocation2 + $0x58] sm:$0xff]
          %v1573 = vld [vmem:[#allocation2 + $0x60] sm:$0xff]
          %v1574 = vld [vmem:[#allocation2 + $0x68] sm:$0xff]
          %v1575 = vld [vmem:[#allocation2 + $0x70] sm:$0xff]
          %v1576 = vld [vmem:[#allocation2 + $0x78] sm:$0xff]
          %v1577 = vld [vmem:[#allocation2 + $0x80] sm:$0xff]
          %v1578 = vld [vmem:[#allocation2 + $0x88] sm:$0xff]
          %v1579 = vld [vmem:[#allocation2 + $0x90] sm:$0xff]
          %v1580 = vld [vmem:[#allocation2 + $0x98] sm:$0xff]
          %v1581 = vld [vmem:[#allocation2 + $0xa0] sm:$0xff]
          %v1582 = vld [vmem:[#allocation2 + $0xa8] sm:$0xff]
          %v1583 = vld [vmem:[#allocation2 + $0xb0] sm:$0xff]
          %v1584 = vld [vmem:[#allocation2 + $0xb8] sm:$0xff]
          %v1585 = vld [vmem:[#allocation2 + $0xc0] sm:$0xff]
          %v1586 = vld [vmem:[#allocation2 + $0xc8] sm:$0xff]
          %v1587 = vld [vmem:[#allocation2 + $0xd0] sm:$0xff]
          %v1588 = vld [vmem:[#allocation2 + $0xd8] sm:$0xff]
          %v1589 = vld [vmem:[#allocation2 + $0xe0] sm:$0xff]
          %v1590 = vld [vmem:[#allocation2 + $0xe8] sm:$0xff]
          %v1591 = vld [vmem:[#allocation2 + $0xf0] sm:$0xff]
          %v1592 = vld [vmem:[#allocation2 + $0xf8] sm:$0xff]
          %v1593 = vpack.c.bf16 %v1562, %v1561
          %v1594 = vpack.c.bf16 %v1564, %v1563
          %v1595 = vpack.c.bf16 %v1566, %v1565
          %v1596 = vpack.c.bf16 %v1568, %v1567
          %v1597 = vpack.c.bf16 %v1570, %v1569
          %v1598 = vpack.c.bf16 %v1572, %v1571
          %v1599 = vpack.c.bf16 %v1574, %v1573
          %v1600 = vpack.c.bf16 %v1576, %v1575
          %v1601 = vpack.c.bf16 %v1578, %v1577
          %v1602 = vpack.c.bf16 %v1580, %v1579
          %v1603 = vpack.c.bf16 %v1582, %v1581
          %v1604 = vpack.c.bf16 %v1584, %v1583
          %v1605 = vpack.c.bf16 %v1586, %v1585
          %v1606 = vpack.c.bf16 %v1588, %v1587
          %v1607 = vpack.c.bf16 %v1590, %v1589
          %v1608 = vpack.c.bf16 %v1592, %v1591
          %v1609 = vld [vmem:[%s3] sm:$0xf]
          %v1610 = vld [vmem:[%s3 + $0x4] sm:$0xf]
          %v1611 = vld [vmem:[%s3 + $0x8] sm:$0xf]
          %v1612 = vld [vmem:[%s3 + $0xc] sm:$0xf]
          %v1613 = vld [vmem:[%s3 + $0x10] sm:$0xf]
          %v1614 = vld [vmem:[%s3 + $0x14] sm:$0xf]
          %v1615 = vld [vmem:[%s3 + $0x18] sm:$0xf]
          %v1616 = vld [vmem:[%s3 + $0x1c] sm:$0xf]
          %v1617 = vld [vmem:[%s3 + $0x20] sm:$0xf]
          %v1618 = vld [vmem:[%s3 + $0x24] sm:$0xf]
          %v1619 = vld [vmem:[%s3 + $0x28] sm:$0xf]
          %v1620 = vld [vmem:[%s3 + $0x2c] sm:$0xf]
          %v1621 = vld [vmem:[%s3 + $0x30] sm:$0xf]
          %v1622 = vld [vmem:[%s3 + $0x34] sm:$0xf]
          %v1623 = vld [vmem:[%s3 + $0x38] sm:$0xf]
          %v1624 = vld [vmem:[%s3 + $0x3c] sm:$0xf]
          %v1625 = vld [vmem:[%s454] sm:$0xf]
          %v1626 = vld [vmem:[%s454 + $0x4] sm:$0xf]
          %v1627 = vld [vmem:[%s454 + $0x8] sm:$0xf]
          %v1628 = vld [vmem:[%s454 + $0xc] sm:$0xf]
          %v1629 = vld [vmem:[%s454 + $0x10] sm:$0xf]
          %v1630 = vld [vmem:[%s454 + $0x14] sm:$0xf]
          %v1631 = vld [vmem:[%s454 + $0x18] sm:$0xf]
          %v1632 = vld [vmem:[%s454 + $0x1c] sm:$0xf]
          %v1633 = vld [vmem:[%s454 + $0x20] sm:$0xf]
          %v1634 = vld [vmem:[%s454 + $0x24] sm:$0xf]
          %v1635 = vld [vmem:[%s454 + $0x28] sm:$0xf]
          %v1636 = vld [vmem:[%s454 + $0x2c] sm:$0xf]
          %v1637 = vld [vmem:[%s454 + $0x30] sm:$0xf]
          %v1638 = vld [vmem:[%s454 + $0x34] sm:$0xf]
          %v1639 = vld [vmem:[%s454 + $0x38] sm:$0xf]
          %v1640 = vld [vmem:[%s454 + $0x3c] sm:$0xf]
          %v1641 = vld [vmem:[%s454 + $0x40] sm:$0xf]
          %v1642 = vld [vmem:[%s454 + $0x44] sm:$0xf]
          %v1643 = vld [vmem:[%s454 + $0x48] sm:$0xf]
          %v1644 = vld [vmem:[%s454 + $0x4c] sm:$0xf]
          %v1645 = vld [vmem:[%s454 + $0x50] sm:$0xf]
          %v1646 = vld [vmem:[%s454 + $0x54] sm:$0xf]
          %v1647 = vld [vmem:[%s454 + $0x58] sm:$0xf]
          %v1648 = vld [vmem:[%s454 + $0x5c] sm:$0xf]
          %v1649 = vld [vmem:[%s454 + $0x60] sm:$0xf]
          %v1650 = vld [vmem:[%s454 + $0x64] sm:$0xf]
          %v1651 = vld [vmem:[%s454 + $0x68] sm:$0xf]
          %v1652 = vld [vmem:[%s454 + $0x6c] sm:$0xf]
          %v1653 = vld [vmem:[%s454 + $0x70] sm:$0xf]
          %v1654 = vld [vmem:[%s454 + $0x74] sm:$0xf]
          %v1655 = vld [vmem:[%s454 + $0x78] sm:$0xf]
          %v1656 = vld [vmem:[%s454 + $0x7c] sm:$0xf]
          %v1657 = vld [vmem:[%s4] sm:$0xf]
          %v1658 = vld [vmem:[%s4 + $0x4] sm:$0xf]
          %v1659 = vld [vmem:[%s4 + $0x8] sm:$0xf]
          %v1660 = vld [vmem:[%s4 + $0xc] sm:$0xf]
          %v1661 = vld [vmem:[%s4 + $0x10] sm:$0xf]
          %v1662 = vld [vmem:[%s4 + $0x14] sm:$0xf]
          %v1663 = vld [vmem:[%s4 + $0x18] sm:$0xf]
          %v1664 = vld [vmem:[%s4 + $0x1c] sm:$0xf]
          %v1665 = vld [vmem:[%s4 + $0x20] sm:$0xf]
          %v1666 = vld [vmem:[%s4 + $0x24] sm:$0xf]
          %v1667 = vld [vmem:[%s4 + $0x28] sm:$0xf]
          %v1668 = vld [vmem:[%s4 + $0x2c] sm:$0xf]
          %v1669 = vld [vmem:[%s4 + $0x30] sm:$0xf]
          %v1670 = vld [vmem:[%s4 + $0x34] sm:$0xf]
          %v1671 = vld [vmem:[%s4 + $0x38] sm:$0xf]
          %v1672 = vld [vmem:[%s4 + $0x3c] sm:$0xf]
          %v1705 = vunpack.c.l.b16 %v1625
          %v1706 = vunpack.c.l.b16 %v1626
          %v1707 = vunpack.c.l.b16 %v1627
          %v1708 = vunpack.c.l.b16 %v1628
          %v1709 = vunpack.c.l.b16 %v1629
          %v1710 = vunpack.c.l.b16 %v1630
          %v1711 = vunpack.c.l.b16 %v1631
          %v1712 = vunpack.c.l.b16 %v1632
          %v1713 = vunpack.c.l.b16 %v1633
          %v1714 = vunpack.c.l.b16 %v1634
          %v1715 = vunpack.c.l.b16 %v1635
          %v1716 = vunpack.c.l.b16 %v1636
          %v1717 = vunpack.c.l.b16 %v1637
          %v1718 = vunpack.c.l.b16 %v1638
          %v1719 = vunpack.c.l.b16 %v1639
          %v1720 = vunpack.c.l.b16 %v1640
          %v1721 = vunpack.c.l.b16 %v1641
          %v1722 = vunpack.c.l.b16 %v1642
          %v1723 = vunpack.c.l.b16 %v1643
          %v1724 = vunpack.c.l.b16 %v1644
          %v1725 = vunpack.c.l.b16 %v1645
          %v1726 = vunpack.c.l.b16 %v1646
          %v1727 = vunpack.c.l.b16 %v1647
          %v1728 = vunpack.c.l.b16 %v1648
          %v1729 = vunpack.c.l.b16 %v1649
          %v1730 = vunpack.c.l.b16 %v1650
          %v1731 = vunpack.c.l.b16 %v1651
          %v1732 = vunpack.c.l.b16 %v1652
          %v1733 = vunpack.c.l.b16 %v1653
          %v1734 = vunpack.c.l.b16 %v1654
          %v1735 = vunpack.c.l.b16 %v1655
          %v1736 = vunpack.c.l.b16 %v1656
          %v1737 = vpack.c.b16 %v1706, %v1705
          %v1738 = vpack.c.b16 %v1708, %v1707
          %v1739 = vpack.c.b16 %v1710, %v1709
          %v1740 = vpack.c.b16 %v1712, %v1711
          %v1741 = vpack.c.b16 %v1714, %v1713
          %v1742 = vpack.c.b16 %v1716, %v1715
          %v1743 = vpack.c.b16 %v1718, %v1717
          %v1744 = vpack.c.b16 %v1720, %v1719
          %v1745 = vpack.c.b16 %v1722, %v1721
          %v1746 = vpack.c.b16 %v1724, %v1723
          %v1747 = vpack.c.b16 %v1726, %v1725
          %v1748 = vpack.c.b16 %v1728, %v1727
          %v1749 = vpack.c.b16 %v1730, %v1729
          %v1750 = vpack.c.b16 %v1732, %v1731
          %v1751 = vpack.c.b16 %v1734, %v1733
          %v1752 = vpack.c.b16 %v1736, %v1735
          %v1785 = vunpack.c.l.b16 %v1657
          %v1786 = vunpack.c.l.b16 %v1658
          %v1787 = vunpack.c.l.b16 %v1659
          %v1788 = vunpack.c.l.b16 %v1660
          %v1789 = vunpack.c.l.b16 %v1661
          %v1790 = vunpack.c.l.b16 %v1662
          %v1791 = vunpack.c.l.b16 %v1663
          %v1792 = vunpack.c.l.b16 %v1664
          %v1793 = vunpack.c.l.b16 %v1665
          %v1794 = vunpack.c.l.b16 %v1666
          %v1795 = vunpack.c.l.b16 %v1667
          %v1796 = vunpack.c.l.b16 %v1668
          %v1797 = vunpack.c.l.b16 %v1669
          %v1798 = vunpack.c.l.b16 %v1670
          %v1799 = vunpack.c.l.b16 %v1671
          %v1800 = vunpack.c.l.b16 %v1672
          %v1801 = vpack.c.b16 %v1786, %v1785
          %v1802 = vpack.c.b16 %v1788, %v1787
          %v1803 = vpack.c.b16 %v1790, %v1789
          %v1804 = vpack.c.b16 %v1792, %v1791
          %v1805 = vpack.c.b16 %v1794, %v1793
          %v1806 = vpack.c.b16 %v1796, %v1795
          %v1807 = vpack.c.b16 %v1798, %v1797
          %v1808 = vpack.c.b16 %v1800, %v1799
          %1817 = vmatprep.subr.bf16.mxu0 0
          %1818 = vmatpush1.bf16.msra.mxu0 %v1801
          %1819 = vmatprep.subr.bf16.mxu0 0
          %1820 = vmatpush1.bf16.msra.mxu0 %v1802
          %1821 = vmatprep.subr.bf16.mxu0 0
          %1822 = vmatpush1.bf16.msra.mxu0 %v1803
          %1823 = vmatprep.subr.bf16.mxu0 0
          %1824 = vmatpush1.bf16.msra.mxu0 %v1804
          %1825 = vmatprep.subr.bf16.mxu0 0
          %1826 = vmatpush1.bf16.msra.mxu0 %v1805
          %1827 = vmatprep.subr.bf16.mxu0 0
          %1828 = vmatpush1.bf16.msra.mxu0 %v1806
          %1829 = vmatprep.subr.bf16.mxu0 0
          %1830 = vmatpush1.bf16.msra.mxu0 %v1807
          %1831 = vmatprep.subr.bf16.mxu0 0
          %1832 = vmatpush1.bf16.msra.mxu0 %v1808
          %1833 = vmatprep.subr.bf16.mxu0 0
          %1834 = vmatpush1.bf16.msra.mxu0 0
          %1835 = vmatprep.subr.bf16.mxu0 0
          %1836 = vmatpush1.bf16.msra.mxu0 0
          %1837 = vmatprep.subr.bf16.mxu0 0
          %1838 = vmatpush1.bf16.msra.mxu0 0
          %1839 = vmatprep.subr.bf16.mxu0 0
          %1840 = vmatpush1.bf16.msra.mxu0 0
          %1841 = vmatprep.subr.bf16.mxu0 0
          %1842 = vmatpush1.bf16.msra.mxu0 0
          %1843 = vmatprep.subr.bf16.mxu0 0
          %1844 = vmatpush1.bf16.msra.mxu0 0
          %1845 = vmatprep.subr.bf16.mxu0 0
          %1846 = vmatpush1.bf16.msra.mxu0 0
          %1847 = vmatprep.subr.bf16.mxu0 0
          %1848 = vmatpush1.bf16.msra.mxu0 0
          %1849 = vmatprep.mubr.bf16.mxu0 0
          %1850 = vmatmul.mubr.bf16.gmra.mrb[0].mxu0 %v1737
          %v1851 = vpop.f32.mrb[0].mxu0
          %v1852 = vadd.f32 0.0, %v1851
          %v1853 = vpop.f32.mrb[0].mxu0
          %v1854 = vpop.f32.mrb[0].mxu0
          %v1855 = vadd.f32 0.0, %v1854
          %v1856 = vpop.f32.mrb[0].mxu0
          %1857 = vmatprep.mubr.bf16.mxu0 0
          %1858 = vmatmul.mubr.bf16.gmra.mrb[0].mxu0 %v1738
          %v1859 = vpop.f32.mrb[0].mxu0
          %v1860 = vadd.f32 0.0, %v1859
          %v1861 = vpop.f32.mrb[0].mxu0
          %v1862 = vpop.f32.mrb[0].mxu0
          %v1863 = vadd.f32 0.0, %v1862
          %v1864 = vpop.f32.mrb[0].mxu0
          %1865 = vmatprep.mubr.bf16.mxu0 0
          %1866 = vmatmul.mubr.bf16.gmra.mrb[0].mxu0 %v1739
          %v1867 = vpop.f32.mrb[0].mxu0
          %v1868 = vadd.f32 0.0, %v1867
          %v1869 = vpop.f32.mrb[0].mxu0
          %v1870 = vpop.f32.mrb[0].mxu0
          %v1871 = vadd.f32 0.0, %v1870
          %v1872 = vpop.f32.mrb[0].mxu0
          %1873 = vmatprep.mubr.bf16.mxu0 0
          %1874 = vmatmul.mubr.bf16.gmra.mrb[0].mxu0 %v1740
          %v1875 = vpop.f32.mrb[0].mxu0
          %v1876 = vadd.f32 0.0, %v1875
          %v1877 = vpop.f32.mrb[0].mxu0
          %v1878 = vpop.f32.mrb[0].mxu0
          %v1879 = vadd.f32 0.0, %v1878
          %v1880 = vpop.f32.mrb[0].mxu0
          %1881 = vmatprep.mubr.bf16.mxu0 0
          %1882 = vmatmul.mubr.bf16.gmra.mrb[0].mxu0 %v1741
          %v1883 = vpop.f32.mrb[0].mxu0
          %v1884 = vadd.f32 0.0, %v1883
          %v1885 = vpop.f32.mrb[0].mxu0
          %v1886 = vpop.f32.mrb[0].mxu0
          %v1887 = vadd.f32 0.0, %v1886
          %v1888 = vpop.f32.mrb[0].mxu0
          %1889 = vmatprep.mubr.bf16.mxu0 0
          %1890 = vmatmul.mubr.bf16.gmra.mrb[0].mxu0 %v1742
          %v1891 = vpop.f32.mrb[0].mxu0
          %v1892 = vadd.f32 0.0, %v1891
          %v1893 = vpop.f32.mrb[0].mxu0
          %v1894 = vpop.f32.mrb[0].mxu0
          %v1895 = vadd.f32 0.0, %v1894
          %v1896 = vpop.f32.mrb[0].mxu0
          %1897 = vmatprep.mubr.bf16.mxu0 0
          %1898 = vmatmul.mubr.bf16.gmra.mrb[0].mxu0 %v1743
          %v1899 = vpop.f32.mrb[0].mxu0
          %v1900 = vadd.f32 0.0, %v1899
          %v1901 = vpop.f32.mrb[0].mxu0
          %v1902 = vpop.f32.mrb[0].mxu0
          %v1903 = vadd.f32 0.0, %v1902
          %v1904 = vpop.f32.mrb[0].mxu0
          %1905 = vmatprep.mubr.bf16.mxu0 0
          %1906 = vmatmul.mubr.bf16.gmra.mrb[0].mxu0 %v1744
          %v1907 = vpop.f32.mrb[0].mxu0
          %v1908 = vadd.f32 0.0, %v1907
          %v1909 = vpop.f32.mrb[0].mxu0
          %v1910 = vpop.f32.mrb[0].mxu0
          %v1911 = vadd.f32 0.0, %v1910
          %v1912 = vpop.f32.mrb[0].mxu0
          %1913 = vmatprep.mubr.bf16.mxu0 0
          %1914 = vmatmul.mubr.bf16.gmra.mrb[0].mxu0 %v1745
          %v1915 = vpop.f32.mrb[0].mxu0
          %v1916 = vadd.f32 0.0, %v1915
          %v1917 = vpop.f32.mrb[0].mxu0
          %v1918 = vpop.f32.mrb[0].mxu0
          %v1919 = vadd.f32 0.0, %v1918
          %v1920 = vpop.f32.mrb[0].mxu0
          %1921 = vmatprep.mubr.bf16.mxu0 0
          %1922 = vmatmul.mubr.bf16.gmra.mrb[0].mxu0 %v1746
          %v1923 = vpop.f32.mrb[0].mxu0
          %v1924 = vadd.f32 0.0, %v1923
          %v1925 = vpop.f32.mrb[0].mxu0
          %v1926 = vpop.f32.mrb[0].mxu0
          %v1927 = vadd.f32 0.0, %v1926
          %v1928 = vpop.f32.mrb[0].mxu0
          %1929 = vmatprep.mubr.bf16.mxu0 0
          %1930 = vmatmul.mubr.bf16.gmra.mrb[0].mxu0 %v1747
          %v1931 = vpop.f32.mrb[0].mxu0
          %v1932 = vadd.f32 0.0, %v1931
          %v1933 = vpop.f32.mrb[0].mxu0
          %v1934 = vpop.f32.mrb[0].mxu0
          %v1935 = vadd.f32 0.0, %v1934
          %v1936 = vpop.f32.mrb[0].mxu0
          %1937 = vmatprep.mubr.bf16.mxu0 0
          %1938 = vmatmul.mubr.bf16.gmra.mrb[0].mxu0 %v1748
          %v1939 = vpop.f32.mrb[0].mxu0
          %v1940 = vadd.f32 0.0, %v1939
          %v1941 = vpop.f32.mrb[0].mxu0
          %v1942 = vpop.f32.mrb[0].mxu0
          %v1943 = vadd.f32 0.0, %v1942
          %v1944 = vpop.f32.mrb[0].mxu0
          %1945 = vmatprep.mubr.bf16.mxu0 0
          %1946 = vmatmul.mubr.bf16.gmra.mrb[0].mxu0 %v1749
          %v1947 = vpop.f32.mrb[0].mxu0
          %v1948 = vadd.f32 0.0, %v1947
          %v1949 = vpop.f32.mrb[0].mxu0
          %v1950 = vpop.f32.mrb[0].mxu0
          %v1951 = vadd.f32 0.0, %v1950
          %v1952 = vpop.f32.mrb[0].mxu0
          %1953 = vmatprep.mubr.bf16.mxu0 0
          %1954 = vmatmul.mubr.bf16.gmra.mrb[0].mxu0 %v1750
          %v1955 = vpop.f32.mrb[0].mxu0
          %v1956 = vadd.f32 0.0, %v1955
          %v1957 = vpop.f32.mrb[0].mxu0
          %v1958 = vpop.f32.mrb[0].mxu0
          %v1959 = vadd.f32 0.0, %v1958
          %v1960 = vpop.f32.mrb[0].mxu0
          %1961 = vmatprep.mubr.bf16.mxu0 0
          %1962 = vmatmul.mubr.bf16.gmra.mrb[0].mxu0 %v1751
          %v1963 = vpop.f32.mrb[0].mxu0
          %v1964 = vadd.f32 0.0, %v1963
          %v1965 = vpop.f32.mrb[0].mxu0
          %v1966 = vpop.f32.mrb[0].mxu0
          %v1967 = vadd.f32 0.0, %v1966
          %v1968 = vpop.f32.mrb[0].mxu0
          %1969 = vmatprep.mubr.bf16.mxu0 0
          %1970 = vmatmul.mubr.bf16.gmra.mrb[0].mxu0 %v1752
          %v1971 = vpop.f32.mrb[0].mxu0
          %v1972 = vadd.f32 0.0, %v1971
          %v1973 = vpop.f32.mrb[0].mxu0
          %v1974 = vpop.f32.mrb[0].mxu0
          %v1975 = vadd.f32 0.0, %v1974
          %v1976 = vpop.f32.mrb[0].mxu0
          %1977 = vdwg.mxu0
          %v1994 = vunpack.c.l.b16 %v1609
          %v1995 = vunpack.c.l.b16 %v1610
          %v1996 = vunpack.c.l.b16 %v1611
          %v1997 = vunpack.c.l.b16 %v1612
          %v1998 = vunpack.c.l.b16 %v1613
          %v1999 = vunpack.c.l.b16 %v1614
          %v2000 = vunpack.c.l.b16 %v1615
          %v2001 = vunpack.c.l.b16 %v1616
          %v2002 = vunpack.c.l.b16 %v1617
          %v2003 = vunpack.c.l.b16 %v1618
          %v2004 = vunpack.c.l.b16 %v1619
          %v2005 = vunpack.c.l.b16 %v1620
          %v2006 = vunpack.c.l.b16 %v1621
          %v2007 = vunpack.c.l.b16 %v1622
          %v2008 = vunpack.c.l.b16 %v1623
          %v2009 = vunpack.c.l.b16 %v1624
          %v2010 = vpack.c.b16 %v1995, %v1994
          %v2011 = vpack.c.b16 %v1997, %v1996
          %v2012 = vpack.c.b16 %v1999, %v1998
          %v2013 = vpack.c.b16 %v2001, %v2000
          %v2014 = vpack.c.b16 %v2003, %v2002
          %v2015 = vpack.c.b16 %v2005, %v2004
          %v2016 = vpack.c.b16 %v2007, %v2006
          %v2017 = vpack.c.b16 %v2009, %v2008
          %2026 = vmatprep.subr.bf16.mxu0 0
          %2027 = vmatpush1.bf16.msra.mxu0 %v2010
          %2028 = vmatprep.subr.bf16.mxu0 0
          %2029 = vmatpush1.bf16.msra.mxu0 %v2011
          %2030 = vmatprep.subr.bf16.mxu0 0
          %2031 = vmatpush1.bf16.msra.mxu0 %v2012
          %2032 = vmatprep.subr.bf16.mxu0 0
          %2033 = vmatpush1.bf16.msra.mxu0 %v2013
          %2034 = vmatprep.subr.bf16.mxu0 0
          %2035 = vmatpush1.bf16.msra.mxu0 %v2014
          %2036 = vmatprep.subr.bf16.mxu0 0
          %2037 = vmatpush1.bf16.msra.mxu0 %v2015
          %2038 = vmatprep.subr.bf16.mxu0 0
          %2039 = vmatpush1.bf16.msra.mxu0 %v2016
          %2040 = vmatprep.subr.bf16.mxu0 0
          %2041 = vmatpush1.bf16.msra.mxu0 %v2017
          %2042 = vmatprep.subr.bf16.mxu0 0
          %2043 = vmatpush1.bf16.msra.mxu0 0
          %2044 = vmatprep.subr.bf16.mxu0 0
          %2045 = vmatpush1.bf16.msra.mxu0 0
          %2046 = vmatprep.subr.bf16.mxu0 0
          %2047 = vmatpush1.bf16.msra.mxu0 0
          %2048 = vmatprep.subr.bf16.mxu0 0
          %2049 = vmatpush1.bf16.msra.mxu0 0
          %2050 = vmatprep.subr.bf16.mxu0 0
          %2051 = vmatpush1.bf16.msra.mxu0 0
          %2052 = vmatprep.subr.bf16.mxu0 0
          %2053 = vmatpush1.bf16.msra.mxu0 0
          %2054 = vmatprep.subr.bf16.mxu0 0
          %2055 = vmatpush1.bf16.msra.mxu0 0
          %2056 = vmatprep.subr.bf16.mxu0 0
          %2057 = vmatpush1.bf16.msra.mxu0 0
          %2058 = vmatprep.mubr.bf16.mxu0 0
          %2059 = vmatmul.mubr.bf16.gmra.mrb[0].mxu0 %v1593
          %v2060 = vpop.f32.mrb[0].mxu0
          %v2061 = vadd.f32 %v1852, %v2060
          %v2062 = vpop.f32.mrb[0].mxu0
          %v2063 = vpop.f32.mrb[0].mxu0
          %v2064 = vadd.f32 %v1855, %v2063
          %v2065 = vpop.f32.mrb[0].mxu0
          %2066 = vmatprep.mubr.bf16.mxu0 0
          %2067 = vmatmul.mubr.bf16.gmra.mrb[0].mxu0 %v1594
          %v2068 = vpop.f32.mrb[0].mxu0
          %v2069 = vadd.f32 %v1860, %v2068
          %v2070 = vpop.f32.mrb[0].mxu0
          %v2071 = vpop.f32.mrb[0].mxu0
          %v2072 = vadd.f32 %v1863, %v2071
          %v2073 = vpop.f32.mrb[0].mxu0
          %2074 = vmatprep.mubr.bf16.mxu0 0
          %2075 = vmatmul.mubr.bf16.gmra.mrb[0].mxu0 %v1595
          %v2076 = vpop.f32.mrb[0].mxu0
          %v2077 = vadd.f32 %v1868, %v2076
          %v2078 = vpop.f32.mrb[0].mxu0
          %v2079 = vpop.f32.mrb[0].mxu0
          %v2080 = vadd.f32 %v1871, %v2079
          %v2081 = vpop.f32.mrb[0].mxu0
          %2082 = vmatprep.mubr.bf16.mxu0 0
          %2083 = vmatmul.mubr.bf16.gmra.mrb[0].mxu0 %v1596
          %v2084 = vpop.f32.mrb[0].mxu0
          %v2085 = vadd.f32 %v1876, %v2084
          %v2086 = vpop.f32.mrb[0].mxu0
          %v2087 = vpop.f32.mrb[0].mxu0
          %v2088 = vadd.f32 %v1879, %v2087
          %v2089 = vpop.f32.mrb[0].mxu0
          %2090 = vmatprep.mubr.bf16.mxu0 0
          %2091 = vmatmul.mubr.bf16.gmra.mrb[0].mxu0 %v1597
          %v2092 = vpop.f32.mrb[0].mxu0
          %v2093 = vadd.f32 %v1884, %v2092
          %v2094 = vpop.f32.mrb[0].mxu0
          %v2095 = vpop.f32.mrb[0].mxu0
          %v2096 = vadd.f32 %v1887, %v2095
          %v2097 = vpop.f32.mrb[0].mxu0
          %2098 = vmatprep.mubr.bf16.mxu0 0
          %2099 = vmatmul.mubr.bf16.gmra.mrb[0].mxu0 %v1598
          %v2100 = vpop.f32.mrb[0].mxu0
          %v2101 = vadd.f32 %v1892, %v2100
          %v2102 = vpop.f32.mrb[0].mxu0
          %v2103 = vpop.f32.mrb[0].mxu0
          %v2104 = vadd.f32 %v1895, %v2103
          %v2105 = vpop.f32.mrb[0].mxu0
          %2106 = vmatprep.mubr.bf16.mxu0 0
          %2107 = vmatmul.mubr.bf16.gmra.mrb[0].mxu0 %v1599
          %v2108 = vpop.f32.mrb[0].mxu0
          %v2109 = vadd.f32 %v1900, %v2108
          %v2110 = vpop.f32.mrb[0].mxu0
          %v2111 = vpop.f32.mrb[0].mxu0
          %v2112 = vadd.f32 %v1903, %v2111
          %v2113 = vpop.f32.mrb[0].mxu0
          %2114 = vmatprep.mubr.bf16.mxu0 0
          %2115 = vmatmul.mubr.bf16.gmra.mrb[0].mxu0 %v1600
          %v2116 = vpop.f32.mrb[0].mxu0
          %v2117 = vadd.f32 %v1908, %v2116
          %v2118 = vpop.f32.mrb[0].mxu0
          %v2119 = vpop.f32.mrb[0].mxu0
          %v2120 = vadd.f32 %v1911, %v2119
          %v2121 = vpop.f32.mrb[0].mxu0
          %2122 = vmatprep.mubr.bf16.mxu0 0
          %2123 = vmatmul.mubr.bf16.gmra.mrb[0].mxu0 %v1601
          %v2124 = vpop.f32.mrb[0].mxu0
          %v2125 = vadd.f32 %v1916, %v2124
          %v2126 = vpop.f32.mrb[0].mxu0
          %v2127 = vpop.f32.mrb[0].mxu0
          %v2128 = vadd.f32 %v1919, %v2127
          %v2129 = vpop.f32.mrb[0].mxu0
          %2130 = vmatprep.mubr.bf16.mxu0 0
          %2131 = vmatmul.mubr.bf16.gmra.mrb[0].mxu0 %v1602
          %v2132 = vpop.f32.mrb[0].mxu0
          %v2133 = vadd.f32 %v1924, %v2132
          %v2134 = vpop.f32.mrb[0].mxu0
          %v2135 = vpop.f32.mrb[0].mxu0
          %v2136 = vadd.f32 %v1927, %v2135
          %v2137 = vpop.f32.mrb[0].mxu0
          %2138 = vmatprep.mubr.bf16.mxu0 0
          %2139 = vmatmul.mubr.bf16.gmra.mrb[0].mxu0 %v1603
          %v2140 = vpop.f32.mrb[0].mxu0
          %v2141 = vadd.f32 %v1932, %v2140
          %v2142 = vpop.f32.mrb[0].mxu0
          %v2143 = vpop.f32.mrb[0].mxu0
          %v2144 = vadd.f32 %v1935, %v2143
          %v2145 = vpop.f32.mrb[0].mxu0
          %2146 = vmatprep.mubr.bf16.mxu0 0
          %2147 = vmatmul.mubr.bf16.gmra.mrb[0].mxu0 %v1604
          %v2148 = vpop.f32.mrb[0].mxu0
          %v2149 = vadd.f32 %v1940, %v2148
          %v2150 = vpop.f32.mrb[0].mxu0
          %v2151 = vpop.f32.mrb[0].mxu0
          %v2152 = vadd.f32 %v1943, %v2151
          %v2153 = vpop.f32.mrb[0].mxu0
          %2154 = vmatprep.mubr.bf16.mxu0 0
          %2155 = vmatmul.mubr.bf16.gmra.mrb[0].mxu0 %v1605
          %v2156 = vpop.f32.mrb[0].mxu0
          %v2157 = vadd.f32 %v1948, %v2156
          %v2158 = vpop.f32.mrb[0].mxu0
          %v2159 = vpop.f32.mrb[0].mxu0
          %v2160 = vadd.f32 %v1951, %v2159
          %v2161 = vpop.f32.mrb[0].mxu0
          %2162 = vmatprep.mubr.bf16.mxu0 0
          %2163 = vmatmul.mubr.bf16.gmra.mrb[0].mxu0 %v1606
          %v2164 = vpop.f32.mrb[0].mxu0
          %v2165 = vadd.f32 %v1956, %v2164
          %v2166 = vpop.f32.mrb[0].mxu0
          %v2167 = vpop.f32.mrb[0].mxu0
          %v2168 = vadd.f32 %v1959, %v2167
          %v2169 = vpop.f32.mrb[0].mxu0
          %2170 = vmatprep.mubr.bf16.mxu0 0
          %2171 = vmatmul.mubr.bf16.gmra.mrb[0].mxu0 %v1607
          %v2172 = vpop.f32.mrb[0].mxu0
          %v2173 = vadd.f32 %v1964, %v2172
          %v2174 = vpop.f32.mrb[0].mxu0
          %v2175 = vpop.f32.mrb[0].mxu0
          %v2176 = vadd.f32 %v1967, %v2175
          %v2177 = vpop.f32.mrb[0].mxu0
          %2178 = vmatprep.mubr.bf16.mxu0 0
          %2179 = vmatmul.mubr.bf16.gmra.mrb[0].mxu0 %v1608
          %v2180 = vpop.f32.mrb[0].mxu0
          %v2181 = vadd.f32 %v1972, %v2180
          %v2182 = vpop.f32.mrb[0].mxu0
          %v2183 = vpop.f32.mrb[0].mxu0
          %v2184 = vadd.f32 %v1975, %v2183
          %v2185 = vpop.f32.mrb[0].mxu0
          %2186 = vdwg.mxu0
          %v2187 = vld [vmem:[%s5] sm:$0x1]
          %v2189 = vlaneseq
          %v2190 = vshrl.u32 %v2189, 7
          %v2191 = vsub.s32 0, %v2190
          %v2192 = vrot.slane %v2187, %v2191
          %v2194 = vadd.f32 %v2061, %v2192
          %v2195 = vadd.f32 %v2064, %v2192
          %v2196 = vadd.f32 %v2069, %v2192
          %v2197 = vadd.f32 %v2072, %v2192
          %v2198 = vadd.f32 %v2077, %v2192
          %v2199 = vadd.f32 %v2080, %v2192
          %v2200 = vadd.f32 %v2085, %v2192
          %v2201 = vadd.f32 %v2088, %v2192
          %v2202 = vadd.f32 %v2093, %v2192
          %v2203 = vadd.f32 %v2096, %v2192
          %v2204 = vadd.f32 %v2101, %v2192
          %v2205 = vadd.f32 %v2104, %v2192
          %v2206 = vadd.f32 %v2109, %v2192
          %v2207 = vadd.f32 %v2112, %v2192
          %v2208 = vadd.f32 %v2117, %v2192
          %v2209 = vadd.f32 %v2120, %v2192
          %v2210 = vadd.f32 %v2125, %v2192
          %v2211 = vadd.f32 %v2128, %v2192
          %v2212 = vadd.f32 %v2133, %v2192
          %v2213 = vadd.f32 %v2136, %v2192
          %v2214 = vadd.f32 %v2141, %v2192
          %v2215 = vadd.f32 %v2144, %v2192
          %v2216 = vadd.f32 %v2149, %v2192
          %v2217 = vadd.f32 %v2152, %v2192
          %v2218 = vadd.f32 %v2157, %v2192
          %v2219 = vadd.f32 %v2160, %v2192
          %v2220 = vadd.f32 %v2165, %v2192
          %v2221 = vadd.f32 %v2168, %v2192
          %v2222 = vadd.f32 %v2173, %v2192
          %v2223 = vadd.f32 %v2176, %v2192
          %v2224 = vadd.f32 %v2181, %v2192
          %v2225 = vadd.f32 %v2184, %v2192
          %2226 = vst [vmem:[%s460] sm:$0xff] %v2194
          %2227 = vst [vmem:[%s460 + $0x8] sm:$0xff] %v2195
          %2228 = vst [vmem:[%s460 + $0x10] sm:$0xff] %v2196
          %2229 = vst [vmem:[%s460 + $0x18] sm:$0xff] %v2197
          %2230 = vst [vmem:[%s460 + $0x20] sm:$0xff] %v2198
          %2231 = vst [vmem:[%s460 + $0x28] sm:$0xff] %v2199
          %2232 = vst [vmem:[%s460 + $0x30] sm:$0xff] %v2200
          %2233 = vst [vmem:[%s460 + $0x38] sm:$0xff] %v2201
          %2234 = vst [vmem:[%s460 + $0x40] sm:$0xff] %v2202
          %2235 = vst [vmem:[%s460 + $0x48] sm:$0xff] %v2203
          %2236 = vst [vmem:[%s460 + $0x50] sm:$0xff] %v2204
          %2237 = vst [vmem:[%s460 + $0x58] sm:$0xff] %v2205
          %2238 = vst [vmem:[%s460 + $0x60] sm:$0xff] %v2206
          %2239 = vst [vmem:[%s460 + $0x68] sm:$0xff] %v2207
          %2240 = vst [vmem:[%s460 + $0x70] sm:$0xff] %v2208
          %2241 = vst [vmem:[%s460 + $0x78] sm:$0xff] %v2209
          %2242 = vst [vmem:[%s460 + $0x80] sm:$0xff] %v2210
          %2243 = vst [vmem:[%s460 + $0x88] sm:$0xff] %v2211
          %2244 = vst [vmem:[%s460 + $0x90] sm:$0xff] %v2212
          %2245 = vst [vmem:[%s460 + $0x98] sm:$0xff] %v2213
          %2246 = vst [vmem:[%s460 + $0xa0] sm:$0xff] %v2214
          %2247 = vst [vmem:[%s460 + $0xa8] sm:$0xff] %v2215
          %2248 = vst [vmem:[%s460 + $0xb0] sm:$0xff] %v2216
          %2249 = vst [vmem:[%s460 + $0xb8] sm:$0xff] %v2217
          %2250 = vst [vmem:[%s460 + $0xc0] sm:$0xff] %v2218
          %2251 = vst [vmem:[%s460 + $0xc8] sm:$0xff] %v2219
          %2252 = vst [vmem:[%s460 + $0xd0] sm:$0xff] %v2220
          %2253 = vst [vmem:[%s460 + $0xd8] sm:$0xff] %v2221
          %2254 = vst [vmem:[%s460 + $0xe0] sm:$0xff] %v2222
          %2255 = vst [vmem:[%s460 + $0xe8] sm:$0xff] %v2223
          %2256 = vst [vmem:[%s460 + $0xf0] sm:$0xff] %v2224
          %2257 = vst [vmem:[%s460 + $0xf8] sm:$0xff] %v2225
        $region75: #{sage_forward.5} parent=62 // pred_fallthru
          _
        %s2258 = smul.u32 32, %s21
        %p2259 = scmp.lt.s32.totalorder %s2258, 127
        %s2260 = scalar_select %p2259, %s2258, 127
        %s2261 = smul.addr %s2260, 8
        %s2262 = scalar_lea.vmem %s6, %s2261
        // Predicated region
        $region76: #{sage_forward.5} parent=62 // pred_check
          %p2263 = pneg %p190
        $region77: #{sage_forward.5} parent=62 // pred_check_branch
          %2265 = sbr.rel (%p2263) target = $region79
        $region78: #{sage_forward.5} parent=62 // pred_region
          %s2266 = smul.u32 32, %s21
        $region79: #{sage_forward.5} parent=62 // pred_fallthru
          _
      $region63: #{sage_forward.5} parent=5 // pred_fallthru
        _
      %p2267 = scmp.le.s32.totalorder 2, %s12
      // Predicated region
      $region80: #{sage_forward.5} parent=5 // pred_check
        %p2268 = pneg %p2267
      $region81: #{sage_forward.5} parent=5 // pred_check_branch
        %2270 = sbr.rel (%p2268) target = $region83
      $region82: #{sage_forward.5} parent=5 // pred_region
        %s2271 = ssub.s32 %s12, 2
        // Predicated region
        $region84: #{sage_forward.5} parent=82 // pred_check
          %p2272 = pneg %p196
        $region85: #{sage_forward.5} parent=82 // pred_check_branch
          %2274 = sbr.rel (%p2272) target = $region87
        $region86: #{sage_forward.5} parent=82 // pred_region
          %s2275 = smul.u32 32, %s23
          %p2276 = scmp.lt.s32.totalorder %s2275, 127
          %s2277 = scalar_select %p2276, %s2275, 127
          %s2278 = smul.addr %s2277, 8
          %s2279 = scalar_lea.vmem %s6, %s2278
        $region87: #{sage_forward.5} parent=82 // pred_fallthru
          _
      $region83: #{sage_forward.5} parent=5 // pred_fallthru
        _
    $region6: #{sage_forward.5} parent=1 // loop_footer
      %s16 = sadd.s32 1, %s12
    $region7: #{sage_forward.5} parent=1 // loop_footer_branch
      %11 = sbr.rel target = $region3
    $region8: #{sage_forward.5} parent=1 // loop_exit
      _

</llo_original>
